<compile_context>
chip_gen: v5e
topology: v5e:2x2
jax: 0.10.0
libtpu: 0.0.40
codegen_flags: <defaults>
</compile_context>

<pallas_src>
import math

import jax
import jax.numpy as jnp
from jax import lax
from jax.experimental import pallas as pl
from jax.experimental.pallas import tpu as pltpu

# ----------------------------- config (small) -------------------------------
BS = 2            # batch
N_ITEMS = 64      # item vocabulary size (rows of input_embeds)
INPUT_DIM = 32    # item embedding dim (args['input_dim'] == output_dim)
HIDDEN = 64       # llama_model.config.hidden_size (synthetic)
N_HEADS = 4
HEAD_DIM = HIDDEN // N_HEADS
HALF = HEAD_DIM // 2
FFN = 128
N_LAYERS = 2      # args['llama_decoder_nums'] (synthetic, truncated decoder)
L_ITEMS = 4       # length of `inputs` item-id sequence
INSTR_LEN = 3     # tokenized instruction_text[0] length (synthetic)
RESP_LEN = 2      # tokenized instruction_text[1] length (synthetic)
SEQ = INSTR_LEN + L_ITEMS + RESP_LEN
ROWS = BS * SEQ

NEG_INF = -1e9
RMS_EPS = 1e-6
SCALE = 1.0 / math.sqrt(HEAD_DIM)


# --------------------------- in-kernel helpers -------------------------------
def _bf16_dot(a, b):
    """a @ b with bf16 MXU operands, f32 accumulation."""
    return jnp.dot(a.astype(jnp.bfloat16), b.astype(jnp.bfloat16),
                   preferred_element_type=jnp.float32)


def _bf16_dot_t(a, b):
    """a @ b.T (contract last dim of both) without materializing a transpose."""
    return lax.dot_general(a.astype(jnp.bfloat16), b.astype(jnp.bfloat16),
                           dimension_numbers=(((1,), (1,)), ((), ())),
                           preferred_element_type=jnp.float32)


def _rms_norm(x, w_row):
    # x: (R, H) f32, w_row: (1, H) f32 -- f32 VPU/EUP math on all generations.
    var = jnp.mean(x * x, axis=-1, keepdims=True)
    return x * lax.rsqrt(var + RMS_EPS) * w_row


# ----------------------------- fused kernel ----------------------------------
def _fused_forward_kernel(
    answers_ref,          # SMEM (BS,) int32 -- scalar prefetch
    item_vecs_ref,        # (BS*L_ITEMS, INPUT_DIM) f32
    instruct_ref,         # (INSTR_LEN, HIDDEN) f32
    response_ref,         # (RESP_LEN, HIDDEN) f32
    bias_ref,             # (ROWS, ROWS) f32  block-diagonal causal+padding bias
    cos_ref, sin_ref,     # (ROWS, HIDDEN) f32 RoPE tables (tiled batch x heads)
    rot_ref,              # (HIDDEN, HIDDEN) bf16 rotate-half permutation/sign
    in_proj_w_ref,        # (INPUT_DIM, HIDDEN) bf16
    in_proj_b_ref,        # (1, HIDDEN) f32
    attn_norm_ref,        # (N_LAYERS, HIDDEN) f32
    mlp_norm_ref,         # (N_LAYERS, HIDDEN) f32
    wqkv_ref,             # (N_LAYERS, HIDDEN, 3*HIDDEN) bf16  (fused q/k/v)
    wo_ref,               # (N_LAYERS, HIDDEN, HIDDEN) bf16
    w_gate_up_ref,        # (N_LAYERS, HIDDEN, 2*FFN) bf16     (fused gate/up)
    w_down_ref,           # (N_LAYERS, FFN, HIDDEN) bf16
    final_norm_ref,       # (1, HIDDEN) f32
    score_w_ref,          # (HIDDEN, INPUT_DIM) bf16
    item_emb_ref,         # (N_ITEMS, INPUT_DIM) bf16
    loss_ref,             # out (1, 1) f32
):
    # ---- 1. input projection (one matmul) + sequence assembly as a value.
    items_all = _bf16_dot(item_vecs_ref[...], in_proj_w_ref[...]) + in_proj_b_ref[...]
    instr = instruct_ref[...]
    resp = response_ref[...]
    pieces = []
    for b in range(BS):
        pieces += [instr, items_all[b * L_ITEMS:(b + 1) * L_ITEMS, :], resp]
    h = jnp.concatenate(pieces, axis=0)                       # (ROWS, HIDDEN) f32

    bias = bias_ref[...]                                      # (ROWS, ROWS)
    cos = cos_ref[...]                                        # (ROWS, HIDDEN)
    sin = sin_ref[...]
    rot = rot_ref[...]                                        # (HIDDEN, HIDDEN)

    # ---- 2. decoder layers (fully unrolled; everything stays in vregs).
    for li in range(N_LAYERS):
        # --- self attention (batch folded via block-diagonal bias) ---
        x = _rms_norm(h, attn_norm_ref[li:li + 1, :])
        qkv = _bf16_dot(x, wqkv_ref[li])                      # (ROWS, 3*HIDDEN) f32
        q = qkv[:, :HIDDEN]
        k = qkv[:, HIDDEN:2 * HIDDEN]
        v = qkv[:, 2 * HIDDEN:]
        # Whole-tensor RoPE: rotate_half via one small MXU matmul, f32 VPU muls.
        q_rot = q * cos + _bf16_dot(q, rot) * sin
        k_rot = k * cos + _bf16_dot(k, rot) * sin

        head_outs = []
        for hd in range(N_HEADS):
            c0 = hd * HEAD_DIM
            q_h = q_rot[:, c0:c0 + HEAD_DIM]
            k_h = k_rot[:, c0:c0 + HEAD_DIM]
            v_h = v[:, c0:c0 + HEAD_DIM]
            s = _bf16_dot_t(q_h, k_h) * SCALE + bias          # (ROWS, ROWS)
            m = jnp.max(s, axis=-1, keepdims=True)
            p = jnp.exp(s - m)
            inv = pl.reciprocal(jnp.sum(p, axis=-1, keepdims=True), approx=True)
            head_outs.append(_bf16_dot(p, v_h) * inv)         # (ROWS, HEAD_DIM)
        attn = jnp.concatenate(head_outs, axis=-1)            # (ROWS, HIDDEN)
        h = h + _bf16_dot(attn, wo_ref[li])

        # --- SwiGLU MLP (fused gate/up weight) ---
        x = _rms_norm(h, mlp_norm_ref[li:li + 1, :])
        gu = _bf16_dot(x, w_gate_up_ref[li])                  # (ROWS, 2*FFN)
        gate = gu[:, :FFN]
        up = gu[:, FFN:]
        act = gate * jax.nn.sigmoid(gate) * up                # SiLU in f32
        h = h + _bf16_dot(act, w_down_ref[li])

    # ---- 3. final norm (last position per example), score head, logits, CE.
    last_rows = jnp.concatenate(
        [h[(b + 1) * SEQ - 1:(b + 1) * SEQ, :] for b in range(BS)], axis=0)   # (BS, HIDDEN)
    pooled = _rms_norm(last_rows, final_norm_ref[...])        # (BS, HIDDEN)
    pooled_logits = _bf16_dot(pooled, score_w_ref[...])       # (BS, INPUT_DIM)
    # logits = pooled_logits @ input_embeds.T  (no transpose materialized)
    logits = _bf16_dot_t(pooled_logits, item_emb_ref[...])    # (BS, N_ITEMS)

    m = jnp.max(logits, axis=-1, keepdims=True)
    lse = jnp.log(jnp.sum(jnp.exp(logits - m), axis=-1, keepdims=True)) + m   # (BS,1)

    row_i = lax.broadcasted_iota(jnp.int32, (BS, N_ITEMS), 0)
    col_i = lax.broadcasted_iota(jnp.int32, (BS, N_ITEMS), 1)
    onehot = jnp.zeros((BS, N_ITEMS), jnp.float32)
    for b in range(BS):
        onehot = onehot + jnp.where(
            (row_i == b) & (col_i == answers_ref[b]), 1.0, 0.0)
    tgt = jnp.sum(logits * onehot, axis=-1, keepdims=True)    # (BS, 1)
    per_ex = lse - tgt                                        # (BS, 1)
    loss_ref[...] = jnp.sum(per_ex, axis=0, keepdims=True) * (1.0 / BS)


# ------------------------------ pallas wrapper --------------------------------
def _full_spec(shape):
    nd = len(shape)
    return pl.BlockSpec(shape, lambda i, ans, _nd=nd: (0,) * _nd)


def _fused_forward_call(answers, *tensor_inputs):
    # TODO(synk): on v7x (2 TensorCores) switch to grid=(BS,) with
    # dimension_semantics=("parallel",) and per-example index_maps to use the
    # second core; at these sizes the single-grid block-diagonal-batch version
    # is the right choice for v5e/v6e.
    grid_spec = pltpu.PrefetchScalarGridSpec(
        num_scalar_prefetch=1,
        grid=(1,),
        in_specs=[_full_spec(t.shape) for t in tensor_inputs],
        out_specs=pl.BlockSpec((1, 1), lambda i, ans: (0, 0)),
    )
    loss2d = pl.pallas_call(
        _fused_forward_kernel,
        out_shape=jax.ShapeDtypeStruct((1, 1), jnp.float32),
        grid_spec=grid_spec,
        compiler_params=pltpu.CompilerParams(
            dimension_semantics=("arbitrary",)),
    )(answers, *tensor_inputs)
    return loss2d[0, 0]


@jax.jit
def _forward_data_type0(params, inputs, inputs_mask, answers):
    bs, L = inputs.shape
    # Embedding gather stays as cheap JAX glue (one HLO op).
    item_vecs = params["input_embeds"][inputs].reshape(bs * L, INPUT_DIM)

    # Key-padding mask per example: [instr ones | inputs_mask | resp ones].
    attn_mask = jnp.concatenate(
        [jnp.ones((bs, INSTR_LEN), jnp.float32),
         inputs_mask.astype(jnp.float32),
         jnp.ones((bs, RESP_LEN), jnp.float32)], axis=1)              # (bs, SEQ)

    # Block-diagonal additive attention bias over all ROWS (constant-shaped,
    # computed once in the jitted wrapper, not in the kernel body).
    rg = jnp.arange(ROWS)
    batch_r, pos_r = rg // SEQ, rg % SEQ
    same_batch = batch_r[:, None] == batch_r[None, :]
    causal = pos_r[None, :] <= pos_r[:, None]
    key_ok = (attn_mask.reshape(-1) > 0.5)                            # (ROWS,)
    allowed = same_batch & causal & key_ok[None, :]
    bias = jnp.where(allowed, 0.0, NEG_INF).astype(jnp.float32)       # (ROWS, ROWS)

    # RoPE tables, tiled to (ROWS, HIDDEN); constants under jit.
    pos = jnp.arange(SEQ, dtype=jnp.float32)
    inv_freq = 1.0 / (10000.0 ** (jnp.arange(0, HEAD_DIM, 2, dtype=jnp.float32)
                                  / HEAD_DIM))
    freqs = pos[:, None] * inv_freq[None, :]
    emb = jnp.concatenate([freqs, freqs], axis=-1)                    # (SEQ, HEAD_DIM)
    cos_full = jnp.tile(jnp.cos(emb), (BS, N_HEADS))                  # (ROWS, HIDDEN)
    sin_full = jnp.tile(jnp.sin(emb), (BS, N_HEADS))

    # Block-diagonal rotate-half permutation/sign matrix: x @ R == rotate_half(x).
    r_head = jnp.zeros((HEAD_DIM, HEAD_DIM), jnp.float32)
    r_head = r_head.at[HALF:, :HALF].set(-jnp.eye(HALF, dtype=jnp.float32))
    r_head = r_head.at[:HALF, HALF:].set(jnp.eye(HALF, dtype=jnp.float32))
    rot_mat = jnp.kron(jnp.eye(N_HEADS, dtype=jnp.float32), r_head).astype(jnp.bfloat16)

    loss = _fused_forward_call(
        answers.reshape(-1).astype(jnp.int32),
        item_vecs,
        params["instruct_embeds"], params["response_embeds"],
        bias, cos_full, sin_full, rot_mat,
        params["input_proj_w"], params["input_proj_b"],
        params["attn_norm"], params["mlp_norm"],
        params["wqkv"], params["wo"], params["w_gate_up"], params["w_down"],
        params["final_norm"], params["score_w"],
        params["input_embeds"].astype(jnp.bfloat16))
    return {"loss": loss, "logits": None}


def forward(params, inputs, inputs_mask, answers, data_type):
    """Mirrors LLM4Rec.forward; only the data_type == 0 branch is implemented."""
    # Host-side dispatch (mirrors torch.max(data_type).item(); kept out of jit).
    if int(jax.device_get(jnp.max(data_type))) != 0:
        # TODO(synk): data_type == 1 (BCE pos/neg) and data_type == 2
        # (multiple_predict over all hidden states) branches are not implemented.
        raise NotImplementedError("only the data_type == 0 branch is implemented")
    return _forward_data_type0(params, inputs, inputs_mask, answers)


# ----------------------------- parameter init ---------------------------------
def init_params(key):
    def nrm(k, shape, scale=0.02, dtype=jnp.float32):
        return (scale * jax.random.normal(k, shape)).astype(dtype)

    keys = jax.random.split(key, 9)
    bf = jnp.bfloat16
    return {
        "input_embeds": nrm(keys[0], (N_ITEMS, INPUT_DIM), 1.0),       # frozen item embedding
        "instruct_embeds": nrm(keys[1], (INSTR_LEN, HIDDEN)),          # tokenizer+embed_tokens stand-in
        "response_embeds": nrm(keys[2], (RESP_LEN, HIDDEN)),
        "input_proj_w": nrm(keys[3], (INPUT_DIM, HIDDEN), dtype=bf),   # nn.Linear(input_dim, hidden).weight^T
        "input_proj_b": jnp.zeros((1, HIDDEN), jnp.float32),
        "score_w": nrm(keys[4], (HIDDEN, INPUT_DIM), dtype=bf),        # nn.Linear(hidden, input_dim, bias=False).weight^T
        "final_norm": jnp.ones((1, HIDDEN), jnp.float32),
        "attn_norm": jnp.ones((N_LAYERS, HIDDEN), jnp.float32),
        "mlp_norm": jnp.ones((N_LAYERS, HIDDEN), jnp.float32),
        "wqkv": nrm(keys[5], (N_LAYERS, HIDDEN, 3 * HIDDEN), dtype=bf),     # fused q/k/v
        "wo": nrm(keys[6], (N_LAYERS, HIDDEN, HIDDEN), dtype=bf),
        "w_gate_up": nrm(keys[7], (N_LAYERS, HIDDEN, 2 * FFN), dtype=bf),   # fused gate/up
        "w_down": nrm(keys[8], (N_LAYERS, FFN, HIDDEN), dtype=bf),
    }


# ---------------------------------- main ---------------------------------------
if __name__ == "__main__":
    root = jax.random.PRNGKey(0)
    k_params, k_in, k_ans = jax.random.split(root, 3)

    params = init_params(k_params)

    inputs = jax.random.randint(k_in, (BS, L_ITEMS), 0, N_ITEMS, dtype=jnp.int32)
    inputs_mask = jnp.ones((BS, L_ITEMS), jnp.int32).at[1, -1].set(0)   # one padded slot
    answers = jax.random.randint(k_ans, (BS, 1), 0, N_ITEMS, dtype=jnp.int32)
    data_type = jnp.zeros((BS,), jnp.int32)
    input_ids = labels = neg_samples = None  # unused in the data_type==0 branch

    out = forward(params, inputs, inputs_mask, answers, data_type)
    loss = jax.block_until_ready(out["loss"])
    assert bool(jnp.isfinite(loss)), f"non-finite loss: {loss}"
    print("KERNEL_OK")
</pallas_src>

<mosaic_0001>
module attributes {stable_mosaic.version = 11 : i64} {
  func.func @_fused_forward_kernel(%arg0: i32, %arg1: memref<2xi32, #tpu.memory_space<smem>>, %arg2: memref<8x32xf32, #tpu.memory_space<vmem>>, %arg3: memref<3x64xf32, #tpu.memory_space<vmem>>, %arg4: memref<2x64xf32, #tpu.memory_space<vmem>>, %arg5: memref<18x18xf32, #tpu.memory_space<vmem>>, %arg6: memref<18x64xf32, #tpu.memory_space<vmem>>, %arg7: memref<18x64xf32, #tpu.memory_space<vmem>>, %arg8: memref<64x64xbf16, #tpu.memory_space<vmem>>, %arg9: memref<32x64xbf16, #tpu.memory_space<vmem>>, %arg10: memref<1x64xf32, #tpu.memory_space<vmem>>, %arg11: memref<2x64xf32, #tpu.memory_space<vmem>>, %arg12: memref<2x64xf32, #tpu.memory_space<vmem>>, %arg13: memref<2x64x192xbf16, #tpu.memory_space<vmem>>, %arg14: memref<2x64x64xbf16, #tpu.memory_space<vmem>>, %arg15: memref<2x64x256xbf16, #tpu.memory_space<vmem>>, %arg16: memref<2x128x64xbf16, #tpu.memory_space<vmem>>, %arg17: memref<1x64xf32, #tpu.memory_space<vmem>>, %arg18: memref<64x32xbf16, #tpu.memory_space<vmem>>, %arg19: memref<64x32xbf16, #tpu.memory_space<vmem>>, %arg20: memref<1x1xf32, #tpu.memory_space<vmem>>) attributes {dimension_semantics = [#tpu.dimension_semantics<arbitrary>], iteration_bounds = array<i64: 1>, scalar_prefetch = 1 : i64, scratch_operands = 0 : i64, tpu.core_type = #tpu.core_type<tc>, window_params = [{pipeline_mode = #tpu.pipeline_mode<synchronous>, transform_indices = @transform_0, window_bounds = array<i64: 8, 32>}, {pipeline_mode = #tpu.pipeline_mode<synchronous>, transform_indices = @transform_1, window_bounds = array<i64: 3, 64>}, {pipeline_mode = #tpu.pipeline_mode<synchronous>, transform_indices = @transform_2, window_bounds = array<i64: 2, 64>}, {pipeline_mode = #tpu.pipeline_mode<synchronous>, transform_indices = @transform_3, window_bounds = array<i64: 18, 18>}, {pipeline_mode = #tpu.pipeline_mode<synchronous>, transform_indices = @transform_4, window_bounds = array<i64: 18, 64>}, {pipeline_mode = #tpu.pipeline_mode<synchronous>, transform_indices = @transform_5, window_bounds = array<i64: 18, 64>}, {pipeline_mode = #tpu.pipeline_mode<synchronous>, transform_indices = @transform_6, window_bounds = array<i64: 64, 64>}, {pipeline_mode = #tpu.pipeline_mode<synchronous>, transform_indices = @transform_7, window_bounds = array<i64: 32, 64>}, {pipeline_mode = #tpu.pipeline_mode<synchronous>, transform_indices = @transform_8, window_bounds = array<i64: 1, 64>}, {pipeline_mode = #tpu.pipeline_mode<synchronous>, transform_indices = @transform_9, window_bounds = array<i64: 2, 64>}, {pipeline_mode = #tpu.pipeline_mode<synchronous>, transform_indices = @transform_10, window_bounds = array<i64: 2, 64>}, {pipeline_mode = #tpu.pipeline_mode<synchronous>, transform_indices = @transform_11, window_bounds = array<i64: 2, 64, 192>}, {pipeline_mode = #tpu.pipeline_mode<synchronous>, transform_indices = @transform_12, window_bounds = array<i64: 2, 64, 64>}, {pipeline_mode = #tpu.pipeline_mode<synchronous>, transform_indices = @transform_13, window_bounds = array<i64: 2, 64, 256>}, {pipeline_mode = #tpu.pipeline_mode<synchronous>, transform_indices = @transform_14, window_bounds = array<i64: 2, 128, 64>}, {pipeline_mode = #tpu.pipeline_mode<synchronous>, transform_indices = @transform_15, window_bounds = array<i64: 1, 64>}, {pipeline_mode = #tpu.pipeline_mode<synchronous>, transform_indices = @transform_16, window_bounds = array<i64: 64, 32>}, {pipeline_mode = #tpu.pipeline_mode<synchronous>, transform_indices = @transform_17, window_bounds = array<i64: 64, 32>}, {pipeline_mode = #tpu.pipeline_mode<synchronous>, transform_indices = @transform_18, window_bounds = array<i64: 1, 1>}]} {
    %c0 = arith.constant 0 : index
    %c0_0 = arith.constant 0 : index
    %0 = vector.load %arg2[%c0, %c0_0] : memref<8x32xf32, #tpu.memory_space<vmem>>, vector<8x32xf32>
    %c0_1 = arith.constant 0 : index
    %c0_2 = arith.constant 0 : index
    %1 = vector.load %arg9[%c0_1, %c0_2] : memref<32x64xbf16, #tpu.memory_space<vmem>>, vector<32x64xbf16>
    %2 = arith.truncf %0 : vector<8x32xf32> to vector<8x32xbf16>
    %cst = arith.constant dense<0.000000e+00> : vector<8x64xf32>
    %3 = tpu.matmul %2, %1, %cst {dimension_numbers = #tpu.dot_dimension_numbers<[1], [0], [0], [1], [0, 0, 1, 1], [], []>} : vector<8x32xbf16>, vector<32x64xbf16>, vector<8x64xf32> -> vector<8x64xf32>
    %c0_3 = arith.constant 0 : index
    %c0_4 = arith.constant 0 : index
    %4 = vector.load %arg10[%c0_3, %c0_4] : memref<1x64xf32, #tpu.memory_space<vmem>>, vector<1x64xf32>
    %5 = vector.broadcast %4 : vector<1x64xf32> to vector<8x64xf32>
    %6 = arith.addf %3, %5 : vector<8x64xf32>
    %c0_5 = arith.constant 0 : index
    %c0_6 = arith.constant 0 : index
    %7 = vector.load %arg3[%c0_5, %c0_6] : memref<3x64xf32, #tpu.memory_space<vmem>>, vector<3x64xf32>
    %c0_7 = arith.constant 0 : index
    %c0_8 = arith.constant 0 : index
    %8 = vector.load %arg4[%c0_7, %c0_8] : memref<2x64xf32, #tpu.memory_space<vmem>>, vector<2x64xf32>
    %9 = vector.extract_strided_slice %6 {offsets = [0, 0], sizes = [4, 64], strides = [1, 1]} : vector<8x64xf32> to vector<4x64xf32>
    %10 = vector.extract_strided_slice %6 {offsets = [4, 0], sizes = [4, 64], strides = [1, 1]} : vector<8x64xf32> to vector<4x64xf32>
    %11 = tpu.concatenate %7, %9, %8, %7, %10, %8 in 0 : vector<3x64xf32>, vector<4x64xf32>, vector<2x64xf32>, vector<3x64xf32>, vector<4x64xf32>, vector<2x64xf32> -> vector<18x64xf32>
    %c0_9 = arith.constant 0 : index
    %c0_10 = arith.constant 0 : index
    %12 = vector.load %arg5[%c0_9, %c0_10] : memref<18x18xf32, #tpu.memory_space<vmem>>, vector<18x18xf32>
    %c0_11 = arith.constant 0 : index
    %c0_12 = arith.constant 0 : index
    %13 = vector.load %arg6[%c0_11, %c0_12] : memref<18x64xf32, #tpu.memory_space<vmem>>, vector<18x64xf32>
    %c0_13 = arith.constant 0 : index
    %c0_14 = arith.constant 0 : index
    %14 = vector.load %arg7[%c0_13, %c0_14] : memref<18x64xf32, #tpu.memory_space<vmem>>, vector<18x64xf32>
    %c0_15 = arith.constant 0 : index
    %c0_16 = arith.constant 0 : index
    %15 = vector.load %arg8[%c0_15, %c0_16] : memref<64x64xbf16, #tpu.memory_space<vmem>>, vector<64x64xbf16>
    %c0_17 = arith.constant 0 : index
    %c0_18 = arith.constant 0 : index
    %16 = vector.load %arg11[%c0_17, %c0_18] : memref<2x64xf32, #tpu.memory_space<vmem>>, vector<1x64xf32>
    %17 = arith.mulf %11, %11 : vector<18x64xf32>
    %cst_19 = arith.constant dense<0.000000e+00> : vector<18xf32>
    %18 = vector.multi_reduction <add>, %17, %cst_19 [1] : vector<18x64xf32> to vector<18xf32>
    %19 = vector.shape_cast %18 : vector<18xf32> to vector<18x1xf32>
    %cst_20 = arith.constant 6.400000e+01 : f32
    %20 = vector.broadcast %cst_20 : f32 to vector<18x1xf32>
    %21 = arith.divf %19, %20 : vector<18x1xf32>
    %cst_21 = arith.constant 9.99999997E-7 : f32
    %22 = vector.broadcast %cst_21 : f32 to vector<18x1xf32>
    %23 = arith.addf %21, %22 : vector<18x1xf32>
    %24 = math.rsqrt %23 : vector<18x1xf32>
    %25 = vector.broadcast %24 : vector<18x1xf32> to vector<18x64xf32>
    %26 = arith.mulf %11, %25 : vector<18x64xf32>
    %27 = vector.broadcast %16 : vector<1x64xf32> to vector<18x64xf32>
    %28 = arith.mulf %26, %27 : vector<18x64xf32>
    %c0_22 = arith.constant 0 : index
    %c0_23 = arith.constant 0 : index
    %c0_24 = arith.constant 0 : index
    %29 = vector.load %arg13[%c0_22, %c0_23, %c0_24] : memref<2x64x192xbf16, #tpu.memory_space<vmem>>, vector<1x64x192xbf16>
    %30 = vector.shape_cast %29 : vector<1x64x192xbf16> to vector<64x192xbf16>
    %31 = arith.truncf %28 : vector<18x64xf32> to vector<18x64xbf16>
    %cst_25 = arith.constant dense<0.000000e+00> : vector<18x192xf32>
    %32 = tpu.matmul %31, %30, %cst_25 {dimension_numbers = #tpu.dot_dimension_numbers<[1], [0], [0], [1], [0, 0, 1, 1], [], []>} : vector<18x64xbf16>, vector<64x192xbf16>, vector<18x192xf32> -> vector<18x192xf32>
    %33 = vector.extract_strided_slice %32 {offsets = [0, 0], sizes = [18, 64], strides = [1, 1]} : vector<18x192xf32> to vector<18x64xf32>
    %34 = vector.extract_strided_slice %32 {offsets = [0, 64], sizes = [18, 64], strides = [1, 1]} : vector<18x192xf32> to vector<18x64xf32>
    %35 = vector.extract_strided_slice %32 {offsets = [0, 128], sizes = [18, 64], strides = [1, 1]} : vector<18x192xf32> to vector<18x64xf32>
    %36 = arith.mulf %33, %13 : vector<18x64xf32>
    %37 = arith.truncf %33 : vector<18x64xf32> to vector<18x64xbf16>
    %cst_26 = arith.constant dense<0.000000e+00> : vector<18x64xf32>
    %38 = tpu.matmul %37, %15, %cst_26 {dimension_numbers = #tpu.dot_dimension_numbers<[1], [0], [0], [1], [0, 0, 1, 1], [], []>} : vector<18x64xbf16>, vector<64x64xbf16>, vector<18x64xf32> -> vector<18x64xf32>
    %39 = arith.mulf %38, %14 : vector<18x64xf32>
    %40 = arith.addf %36, %39 : vector<18x64xf32>
    %41 = arith.mulf %34, %13 : vector<18x64xf32>
    %42 = arith.truncf %34 : vector<18x64xf32> to vector<18x64xbf16>
    %cst_27 = arith.constant dense<0.000000e+00> : vector<18x64xf32>
    %43 = tpu.matmul %42, %15, %cst_27 {dimension_numbers = #tpu.dot_dimension_numbers<[1], [0], [0], [1], [0, 0, 1, 1], [], []>} : vector<18x64xbf16>, vector<64x64xbf16>, vector<18x64xf32> -> vector<18x64xf32>
    %44 = arith.mulf %43, %14 : vector<18x64xf32>
    %45 = arith.addf %41, %44 : vector<18x64xf32>
    %46 = vector.extract_strided_slice %40 {offsets = [0, 0], sizes = [18, 16], strides = [1, 1]} : vector<18x64xf32> to vector<18x16xf32>
    %47 = vector.extract_strided_slice %45 {offsets = [0, 0], sizes = [18, 16], strides = [1, 1]} : vector<18x64xf32> to vector<18x16xf32>
    %48 = vector.extract_strided_slice %35 {offsets = [0, 0], sizes = [18, 16], strides = [1, 1]} : vector<18x64xf32> to vector<18x16xf32>
    %49 = arith.truncf %46 : vector<18x16xf32> to vector<18x16xbf16>
    %50 = arith.truncf %47 : vector<18x16xf32> to vector<18x16xbf16>
    %cst_28 = arith.constant dense<0.000000e+00> : vector<18x18xf32>
    %51 = tpu.matmul %49, %50, %cst_28 {dimension_numbers = #tpu.dot_dimension_numbers<[1], [1], [0], [0], [0, 0, 1, 0], [], []>} : vector<18x16xbf16>, vector<18x16xbf16>, vector<18x18xf32> -> vector<18x18xf32>
    %cst_29 = arith.constant 2.500000e-01 : f32
    %52 = vector.broadcast %cst_29 : f32 to vector<18x18xf32>
    %53 = arith.mulf %51, %52 : vector<18x18xf32>
    %54 = arith.addf %53, %12 : vector<18x18xf32>
    %cst_30 = arith.constant dense<0xFF800000> : vector<18xf32>
    %55 = vector.multi_reduction <maximumf>, %54, %cst_30 [1] : vector<18x18xf32> to vector<18xf32>
    %56 = vector.shape_cast %55 : vector<18xf32> to vector<18x1xf32>
    %57 = vector.broadcast %56 : vector<18x1xf32> to vector<18x18xf32>
    %58 = arith.subf %54, %57 : vector<18x18xf32>
    %59 = math.exp %58 : vector<18x18xf32>
    %cst_31 = arith.constant dense<0.000000e+00> : vector<18xf32>
    %60 = vector.multi_reduction <add>, %59, %cst_31 [1] : vector<18x18xf32> to vector<18xf32>
    %61 = vector.shape_cast %60 : vector<18xf32> to vector<18x1xf32>
    %62 = tpu.reciprocal %61 {approx = true} : vector<18x1xf32> -> vector<18x1xf32>
    %63 = arith.truncf %59 : vector<18x18xf32> to vector<18x18xbf16>
    %64 = arith.truncf %48 : vector<18x16xf32> to vector<18x16xbf16>
    %cst_32 = arith.constant dense<0.000000e+00> : vector<18x16xf32>
    %65 = tpu.matmul %63, %64, %cst_32 {dimension_numbers = #tpu.dot_dimension_numbers<[1], [0], [0], [1], [0, 0, 1, 1], [], []>} : vector<18x18xbf16>, vector<18x16xbf16>, vector<18x16xf32> -> vector<18x16xf32>
    %66 = vector.broadcast %62 : vector<18x1xf32> to vector<18x16xf32>
    %67 = arith.mulf %65, %66 : vector<18x16xf32>
    %68 = vector.extract_strided_slice %40 {offsets = [0, 16], sizes = [18, 16], strides = [1, 1]} : vector<18x64xf32> to vector<18x16xf32>
    %69 = vector.extract_strided_slice %45 {offsets = [0, 16], sizes = [18, 16], strides = [1, 1]} : vector<18x64xf32> to vector<18x16xf32>
    %70 = vector.extract_strided_slice %35 {offsets = [0, 16], sizes = [18, 16], strides = [1, 1]} : vector<18x64xf32> to vector<18x16xf32>
    %71 = arith.truncf %68 : vector<18x16xf32> to vector<18x16xbf16>
    %72 = arith.truncf %69 : vector<18x16xf32> to vector<18x16xbf16>
    %cst_33 = arith.constant dense<0.000000e+00> : vector<18x18xf32>
    %73 = tpu.matmul %71, %72, %cst_33 {dimension_numbers = #tpu.dot_dimension_numbers<[1], [1], [0], [0], [0, 0, 1, 0], [], []>} : vector<18x16xbf16>, vector<18x16xbf16>, vector<18x18xf32> -> vector<18x18xf32>
    %cst_34 = arith.constant 2.500000e-01 : f32
    %74 = vector.broadcast %cst_34 : f32 to vector<18x18xf32>
    %75 = arith.mulf %73, %74 : vector<18x18xf32>
    %76 = arith.addf %75, %12 : vector<18x18xf32>
    %cst_35 = arith.constant dense<0xFF800000> : vector<18xf32>
    %77 = vector.multi_reduction <maximumf>, %76, %cst_35 [1] : vector<18x18xf32> to vector<18xf32>
    %78 = vector.shape_cast %77 : vector<18xf32> to vector<18x1xf32>
    %79 = vector.broadcast %78 : vector<18x1xf32> to vector<18x18xf32>
    %80 = arith.subf %76, %79 : vector<18x18xf32>
    %81 = math.exp %80 : vector<18x18xf32>
    %cst_36 = arith.constant dense<0.000000e+00> : vector<18xf32>
    %82 = vector.multi_reduction <add>, %81, %cst_36 [1] : vector<18x18xf32> to vector<18xf32>
    %83 = vector.shape_cast %82 : vector<18xf32> to vector<18x1xf32>
    %84 = tpu.reciprocal %83 {approx = true} : vector<18x1xf32> -> vector<18x1xf32>
    %85 = arith.truncf %81 : vector<18x18xf32> to vector<18x18xbf16>
    %86 = arith.truncf %70 : vector<18x16xf32> to vector<18x16xbf16>
    %cst_37 = arith.constant dense<0.000000e+00> : vector<18x16xf32>
    %87 = tpu.matmul %85, %86, %cst_37 {dimension_numbers = #tpu.dot_dimension_numbers<[1], [0], [0], [1], [0, 0, 1, 1], [], []>} : vector<18x18xbf16>, vector<18x16xbf16>, vector<18x16xf32> -> vector<18x16xf32>
    %88 = vector.broadcast %84 : vector<18x1xf32> to vector<18x16xf32>
    %89 = arith.mulf %87, %88 : vector<18x16xf32>
    %90 = vector.extract_strided_slice %40 {offsets = [0, 32], sizes = [18, 16], strides = [1, 1]} : vector<18x64xf32> to vector<18x16xf32>
    %91 = vector.extract_strided_slice %45 {offsets = [0, 32], sizes = [18, 16], strides = [1, 1]} : vector<18x64xf32> to vector<18x16xf32>
    %92 = vector.extract_strided_slice %35 {offsets = [0, 32], sizes = [18, 16], strides = [1, 1]} : vector<18x64xf32> to vector<18x16xf32>
    %93 = arith.truncf %90 : vector<18x16xf32> to vector<18x16xbf16>
    %94 = arith.truncf %91 : vector<18x16xf32> to vector<18x16xbf16>
    %cst_38 = arith.constant dense<0.000000e+00> : vector<18x18xf32>
    %95 = tpu.matmul %93, %94, %cst_38 {dimension_numbers = #tpu.dot_dimension_numbers<[1], [1], [0], [0], [0, 0, 1, 0], [], []>} : vector<18x16xbf16>, vector<18x16xbf16>, vector<18x18xf32> -> vector<18x18xf32>
    %cst_39 = arith.constant 2.500000e-01 : f32
    %96 = vector.broadcast %cst_39 : f32 to vector<18x18xf32>
    %97 = arith.mulf %95, %96 : vector<18x18xf32>
    %98 = arith.addf %97, %12 : vector<18x18xf32>
    %cst_40 = arith.constant dense<0xFF800000> : vector<18xf32>
    %99 = vector.multi_reduction <maximumf>, %98, %cst_40 [1] : vector<18x18xf32> to vector<18xf32>
    %100 = vector.shape_cast %99 : vector<18xf32> to vector<18x1xf32>
    %101 = vector.broadcast %100 : vector<18x1xf32> to vector<18x18xf32>
    %102 = arith.subf %98, %101 : vector<18x18xf32>
    %103 = math.exp %102 : vector<18x18xf32>
    %cst_41 = arith.constant dense<0.000000e+00> : vector<18xf32>
    %104 = vector.multi_reduction <add>, %103, %cst_41 [1] : vector<18x18xf32> to vector<18xf32>
    %105 = vector.shape_cast %104 : vector<18xf32> to vector<18x1xf32>
    %106 = tpu.reciprocal %105 {approx = true} : vector<18x1xf32> -> vector<18x1xf32>
    %107 = arith.truncf %103 : vector<18x18xf32> to vector<18x18xbf16>
    %108 = arith.truncf %92 : vector<18x16xf32> to vector<18x16xbf16>
    %cst_42 = arith.constant dense<0.000000e+00> : vector<18x16xf32>
    %109 = tpu.matmul %107, %108, %cst_42 {dimension_numbers = #tpu.dot_dimension_numbers<[1], [0], [0], [1], [0, 0, 1, 1], [], []>} : vector<18x18xbf16>, vector<18x16xbf16>, vector<18x16xf32> -> vector<18x16xf32>
    %110 = vector.broadcast %106 : vector<18x1xf32> to vector<18x16xf32>
    %111 = arith.mulf %109, %110 : vector<18x16xf32>
    %112 = vector.extract_strided_slice %40 {offsets = [0, 48], sizes = [18, 16], strides = [1, 1]} : vector<18x64xf32> to vector<18x16xf32>
    %113 = vector.extract_strided_slice %45 {offsets = [0, 48], sizes = [18, 16], strides = [1, 1]} : vector<18x64xf32> to vector<18x16xf32>
    %114 = vector.extract_strided_slice %35 {offsets = [0, 48], sizes = [18, 16], strides = [1, 1]} : vector<18x64xf32> to vector<18x16xf32>
    %115 = arith.truncf %112 : vector<18x16xf32> to vector<18x16xbf16>
    %116 = arith.truncf %113 : vector<18x16xf32> to vector<18x16xbf16>
    %cst_43 = arith.constant dense<0.000000e+00> : vector<18x18xf32>
    %117 = tpu.matmul %115, %116, %cst_43 {dimension_numbers = #tpu.dot_dimension_numbers<[1], [1], [0], [0], [0, 0, 1, 0], [], []>} : vector<18x16xbf16>, vector<18x16xbf16>, vector<18x18xf32> -> vector<18x18xf32>
    %cst_44 = arith.constant 2.500000e-01 : f32
    %118 = vector.broadcast %cst_44 : f32 to vector<18x18xf32>
    %119 = arith.mulf %117, %118 : vector<18x18xf32>
    %120 = arith.addf %119, %12 : vector<18x18xf32>
    %cst_45 = arith.constant dense<0xFF800000> : vector<18xf32>
    %121 = vector.multi_reduction <maximumf>, %120, %cst_45 [1] : vector<18x18xf32> to vector<18xf32>
    %122 = vector.shape_cast %121 : vector<18xf32> to vector<18x1xf32>
    %123 = vector.broadcast %122 : vector<18x1xf32> to vector<18x18xf32>
    %124 = arith.subf %120, %123 : vector<18x18xf32>
    %125 = math.exp %124 : vector<18x18xf32>
    %cst_46 = arith.constant dense<0.000000e+00> : vector<18xf32>
    %126 = vector.multi_reduction <add>, %125, %cst_46 [1] : vector<18x18xf32> to vector<18xf32>
    %127 = vector.shape_cast %126 : vector<18xf32> to vector<18x1xf32>
    %128 = tpu.reciprocal %127 {approx = true} : vector<18x1xf32> -> vector<18x1xf32>
    %129 = arith.truncf %125 : vector<18x18xf32> to vector<18x18xbf16>
    %130 = arith.truncf %114 : vector<18x16xf32> to vector<18x16xbf16>
    %cst_47 = arith.constant dense<0.000000e+00> : vector<18x16xf32>
    %131 = tpu.matmul %129, %130, %cst_47 {dimension_numbers = #tpu.dot_dimension_numbers<[1], [0], [0], [1], [0, 0, 1, 1], [], []>} : vector<18x18xbf16>, vector<18x16xbf16>, vector<18x16xf32> -> vector<18x16xf32>
    %132 = vector.broadcast %128 : vector<18x1xf32> to vector<18x16xf32>
    %133 = arith.mulf %131, %132 : vector<18x16xf32>
    %134 = tpu.concatenate %67, %89, %111, %133 in 1 : vector<18x16xf32>, vector<18x16xf32>, vector<18x16xf32>, vector<18x16xf32> -> vector<18x64xf32>
    %c0_48 = arith.constant 0 : index
    %c0_49 = arith.constant 0 : index
    %c0_50 = arith.constant 0 : index
    %135 = vector.load %arg14[%c0_48, %c0_49, %c0_50] : memref<2x64x64xbf16, #tpu.memory_space<vmem>>, vector<1x64x64xbf16>
    %136 = vector.shape_cast %135 : vector<1x64x64xbf16> to vector<64x64xbf16>
    %137 = arith.truncf %134 : vector<18x64xf32> to vector<18x64xbf16>
    %cst_51 = arith.constant dense<0.000000e+00> : vector<18x64xf32>
    %138 = tpu.matmul %137, %136, %cst_51 {dimension_numbers = #tpu.dot_dimension_numbers<[1], [0], [0], [1], [0, 0, 1, 1], [], []>} : vector<18x64xbf16>, vector<64x64xbf16>, vector<18x64xf32> -> vector<18x64xf32>
    %139 = arith.addf %11, %138 : vector<18x64xf32>
    %c0_52 = arith.constant 0 : index
    %c0_53 = arith.constant 0 : index
    %140 = vector.load %arg12[%c0_52, %c0_53] : memref<2x64xf32, #tpu.memory_space<vmem>>, vector<1x64xf32>
    %141 = arith.mulf %139, %139 : vector<18x64xf32>
    %cst_54 = arith.constant dense<0.000000e+00> : vector<18xf32>
    %142 = vector.multi_reduction <add>, %141, %cst_54 [1] : vector<18x64xf32> to vector<18xf32>
    %143 = vector.shape_cast %142 : vector<18xf32> to vector<18x1xf32>
    %cst_55 = arith.constant 6.400000e+01 : f32
    %144 = vector.broadcast %cst_55 : f32 to vector<18x1xf32>
    %145 = arith.divf %143, %144 : vector<18x1xf32>
    %cst_56 = arith.constant 9.99999997E-7 : f32
    %146 = vector.broadcast %cst_56 : f32 to vector<18x1xf32>
    %147 = arith.addf %145, %146 : vector<18x1xf32>
    %148 = math.rsqrt %147 : vector<18x1xf32>
    %149 = vector.broadcast %148 : vector<18x1xf32> to vector<18x64xf32>
    %150 = arith.mulf %139, %149 : vector<18x64xf32>
    %151 = vector.broadcast %140 : vector<1x64xf32> to vector<18x64xf32>
    %152 = arith.mulf %150, %151 : vector<18x64xf32>
    %c0_57 = arith.constant 0 : index
    %c0_58 = arith.constant 0 : index
    %c0_59 = arith.constant 0 : index
    %153 = vector.load %arg15[%c0_57, %c0_58, %c0_59] : memref<2x64x256xbf16, #tpu.memory_space<vmem>>, vector<1x64x256xbf16>
    %154 = vector.shape_cast %153 : vector<1x64x256xbf16> to vector<64x256xbf16>
    %155 = arith.truncf %152 : vector<18x64xf32> to vector<18x64xbf16>
    %cst_60 = arith.constant dense<0.000000e+00> : vector<18x256xf32>
    %156 = tpu.matmul %155, %154, %cst_60 {dimension_numbers = #tpu.dot_dimension_numbers<[1], [0], [0], [1], [0, 0, 1, 1], [], []>} : vector<18x64xbf16>, vector<64x256xbf16>, vector<18x256xf32> -> vector<18x256xf32>
    %157 = vector.extract_strided_slice %156 {offsets = [0, 0], sizes = [18, 128], strides = [1, 1]} : vector<18x256xf32> to vector<18x128xf32>
    %158 = vector.extract_strided_slice %156 {offsets = [0, 128], sizes = [18, 128], strides = [1, 1]} : vector<18x256xf32> to vector<18x128xf32>
    %159 = arith.negf %157 : vector<18x128xf32>
    %160 = math.exp %159 : vector<18x128xf32>
    %cst_61 = arith.constant 1.000000e+00 : f32
    %161 = vector.broadcast %cst_61 : f32 to vector<18x128xf32>
    %162 = arith.addf %161, %160 : vector<18x128xf32>
    %163 = arith.divf %161, %162 : vector<18x128xf32>
    %164 = arith.mulf %157, %163 : vector<18x128xf32>
    %165 = arith.mulf %164, %158 : vector<18x128xf32>
    %c0_62 = arith.constant 0 : index
    %c0_63 = arith.constant 0 : index
    %c0_64 = arith.constant 0 : index
    %166 = vector.load %arg16[%c0_62, %c0_63, %c0_64] : memref<2x128x64xbf16, #tpu.memory_space<vmem>>, vector<1x128x64xbf16>
    %167 = vector.shape_cast %166 : vector<1x128x64xbf16> to vector<128x64xbf16>
    %168 = arith.truncf %165 : vector<18x128xf32> to vector<18x128xbf16>
    %cst_65 = arith.constant dense<0.000000e+00> : vector<18x64xf32>
    %169 = tpu.matmul %168, %167, %cst_65 {dimension_numbers = #tpu.dot_dimension_numbers<[1], [0], [0], [1], [0, 0, 1, 1], [], []>} : vector<18x128xbf16>, vector<128x64xbf16>, vector<18x64xf32> -> vector<18x64xf32>
    %170 = arith.addf %139, %169 : vector<18x64xf32>
    %c1 = arith.constant 1 : index
    %c0_66 = arith.constant 0 : index
    %171 = vector.load %arg11[%c1, %c0_66] : memref<2x64xf32, #tpu.memory_space<vmem>>, vector<1x64xf32>
    %172 = arith.mulf %170, %170 : vector<18x64xf32>
    %cst_67 = arith.constant dense<0.000000e+00> : vector<18xf32>
    %173 = vector.multi_reduction <add>, %172, %cst_67 [1] : vector<18x64xf32> to vector<18xf32>
    %174 = vector.shape_cast %173 : vector<18xf32> to vector<18x1xf32>
    %cst_68 = arith.constant 6.400000e+01 : f32
    %175 = vector.broadcast %cst_68 : f32 to vector<18x1xf32>
    %176 = arith.divf %174, %175 : vector<18x1xf32>
    %cst_69 = arith.constant 9.99999997E-7 : f32
    %177 = vector.broadcast %cst_69 : f32 to vector<18x1xf32>
    %178 = arith.addf %176, %177 : vector<18x1xf32>
    %179 = math.rsqrt %178 : vector<18x1xf32>
    %180 = vector.broadcast %179 : vector<18x1xf32> to vector<18x64xf32>
    %181 = arith.mulf %170, %180 : vector<18x64xf32>
    %182 = vector.broadcast %171 : vector<1x64xf32> to vector<18x64xf32>
    %183 = arith.mulf %181, %182 : vector<18x64xf32>
    %c1_70 = arith.constant 1 : index
    %c0_71 = arith.constant 0 : index
    %c0_72 = arith.constant 0 : index
    %184 = vector.load %arg13[%c1_70, %c0_71, %c0_72] : memref<2x64x192xbf16, #tpu.memory_space<vmem>>, vector<1x64x192xbf16>
    %185 = vector.shape_cast %184 : vector<1x64x192xbf16> to vector<64x192xbf16>
    %186 = arith.truncf %183 : vector<18x64xf32> to vector<18x64xbf16>
    %cst_73 = arith.constant dense<0.000000e+00> : vector<18x192xf32>
    %187 = tpu.matmul %186, %185, %cst_73 {dimension_numbers = #tpu.dot_dimension_numbers<[1], [0], [0], [1], [0, 0, 1, 1], [], []>} : vector<18x64xbf16>, vector<64x192xbf16>, vector<18x192xf32> -> vector<18x192xf32>
    %188 = vector.extract_strided_slice %187 {offsets = [0, 0], sizes = [18, 64], strides = [1, 1]} : vector<18x192xf32> to vector<18x64xf32>
    %189 = vector.extract_strided_slice %187 {offsets = [0, 64], sizes = [18, 64], strides = [1, 1]} : vector<18x192xf32> to vector<18x64xf32>
    %190 = vector.extract_strided_slice %187 {offsets = [0, 128], sizes = [18, 64], strides = [1, 1]} : vector<18x192xf32> to vector<18x64xf32>
    %191 = arith.mulf %188, %13 : vector<18x64xf32>
    %192 = arith.truncf %188 : vector<18x64xf32> to vector<18x64xbf16>
    %cst_74 = arith.constant dense<0.000000e+00> : vector<18x64xf32>
    %193 = tpu.matmul %192, %15, %cst_74 {dimension_numbers = #tpu.dot_dimension_numbers<[1], [0], [0], [1], [0, 0, 1, 1], [], []>} : vector<18x64xbf16>, vector<64x64xbf16>, vector<18x64xf32> -> vector<18x64xf32>
    %194 = arith.mulf %193, %14 : vector<18x64xf32>
    %195 = arith.addf %191, %194 : vector<18x64xf32>
    %196 = arith.mulf %189, %13 : vector<18x64xf32>
    %197 = arith.truncf %189 : vector<18x64xf32> to vector<18x64xbf16>
    %cst_75 = arith.constant dense<0.000000e+00> : vector<18x64xf32>
    %198 = tpu.matmul %197, %15, %cst_75 {dimension_numbers = #tpu.dot_dimension_numbers<[1], [0], [0], [1], [0, 0, 1, 1], [], []>} : vector<18x64xbf16>, vector<64x64xbf16>, vector<18x64xf32> -> vector<18x64xf32>
    %199 = arith.mulf %198, %14 : vector<18x64xf32>
    %200 = arith.addf %196, %199 : vector<18x64xf32>
    %201 = vector.extract_strided_slice %195 {offsets = [0, 0], sizes = [18, 16], strides = [1, 1]} : vector<18x64xf32> to vector<18x16xf32>
    %202 = vector.extract_strided_slice %200 {offsets = [0, 0], sizes = [18, 16], strides = [1, 1]} : vector<18x64xf32> to vector<18x16xf32>
    %203 = vector.extract_strided_slice %190 {offsets = [0, 0], sizes = [18, 16], strides = [1, 1]} : vector<18x64xf32> to vector<18x16xf32>
    %204 = arith.truncf %201 : vector<18x16xf32> to vector<18x16xbf16>
    %205 = arith.truncf %202 : vector<18x16xf32> to vector<18x16xbf16>
    %cst_76 = arith.constant dense<0.000000e+00> : vector<18x18xf32>
    %206 = tpu.matmul %204, %205, %cst_76 {dimension_numbers = #tpu.dot_dimension_numbers<[1], [1], [0], [0], [0, 0, 1, 0], [], []>} : vector<18x16xbf16>, vector<18x16xbf16>, vector<18x18xf32> -> vector<18x18xf32>
    %cst_77 = arith.constant 2.500000e-01 : f32
    %207 = vector.broadcast %cst_77 : f32 to vector<18x18xf32>
    %208 = arith.mulf %206, %207 : vector<18x18xf32>
    %209 = arith.addf %208, %12 : vector<18x18xf32>
    %cst_78 = arith.constant dense<0xFF800000> : vector<18xf32>
    %210 = vector.multi_reduction <maximumf>, %209, %cst_78 [1] : vector<18x18xf32> to vector<18xf32>
    %211 = vector.shape_cast %210 : vector<18xf32> to vector<18x1xf32>
    %212 = vector.broadcast %211 : vector<18x1xf32> to vector<18x18xf32>
    %213 = arith.subf %209, %212 : vector<18x18xf32>
    %214 = math.exp %213 : vector<18x18xf32>
    %cst_79 = arith.constant dense<0.000000e+00> : vector<18xf32>
    %215 = vector.multi_reduction <add>, %214, %cst_79 [1] : vector<18x18xf32> to vector<18xf32>
    %216 = vector.shape_cast %215 : vector<18xf32> to vector<18x1xf32>
    %217 = tpu.reciprocal %216 {approx = true} : vector<18x1xf32> -> vector<18x1xf32>
    %218 = arith.truncf %214 : vector<18x18xf32> to vector<18x18xbf16>
    %219 = arith.truncf %203 : vector<18x16xf32> to vector<18x16xbf16>
    %cst_80 = arith.constant dense<0.000000e+00> : vector<18x16xf32>
    %220 = tpu.matmul %218, %219, %cst_80 {dimension_numbers = #tpu.dot_dimension_numbers<[1], [0], [0], [1], [0, 0, 1, 1], [], []>} : vector<18x18xbf16>, vector<18x16xbf16>, vector<18x16xf32> -> vector<18x16xf32>
    %221 = vector.broadcast %217 : vector<18x1xf32> to vector<18x16xf32>
    %222 = arith.mulf %220, %221 : vector<18x16xf32>
    %223 = vector.extract_strided_slice %195 {offsets = [0, 16], sizes = [18, 16], strides = [1, 1]} : vector<18x64xf32> to vector<18x16xf32>
    %224 = vector.extract_strided_slice %200 {offsets = [0, 16], sizes = [18, 16], strides = [1, 1]} : vector<18x64xf32> to vector<18x16xf32>
    %225 = vector.extract_strided_slice %190 {offsets = [0, 16], sizes = [18, 16], strides = [1, 1]} : vector<18x64xf32> to vector<18x16xf32>
    %226 = arith.truncf %223 : vector<18x16xf32> to vector<18x16xbf16>
    %227 = arith.truncf %224 : vector<18x16xf32> to vector<18x16xbf16>
    %cst_81 = arith.constant dense<0.000000e+00> : vector<18x18xf32>
    %228 = tpu.matmul %226, %227, %cst_81 {dimension_numbers = #tpu.dot_dimension_numbers<[1], [1], [0], [0], [0, 0, 1, 0], [], []>} : vector<18x16xbf16>, vector<18x16xbf16>, vector<18x18xf32> -> vector<18x18xf32>
    %cst_82 = arith.constant 2.500000e-01 : f32
    %229 = vector.broadcast %cst_82 : f32 to vector<18x18xf32>
    %230 = arith.mulf %228, %229 : vector<18x18xf32>
    %231 = arith.addf %230, %12 : vector<18x18xf32>
    %cst_83 = arith.constant dense<0xFF800000> : vector<18xf32>
    %232 = vector.multi_reduction <maximumf>, %231, %cst_83 [1] : vector<18x18xf32> to vector<18xf32>
    %233 = vector.shape_cast %232 : vector<18xf32> to vector<18x1xf32>
    %234 = vector.broadcast %233 : vector<18x1xf32> to vector<18x18xf32>
    %235 = arith.subf %231, %234 : vector<18x18xf32>
    %236 = math.exp %235 : vector<18x18xf32>
    %cst_84 = arith.constant dense<0.000000e+00> : vector<18xf32>
    %237 = vector.multi_reduction <add>, %236, %cst_84 [1] : vector<18x18xf32> to vector<18xf32>
    %238 = vector.shape_cast %237 : vector<18xf32> to vector<18x1xf32>
    %239 = tpu.reciprocal %238 {approx = true} : vector<18x1xf32> -> vector<18x1xf32>
    %240 = arith.truncf %236 : vector<18x18xf32> to vector<18x18xbf16>
    %241 = arith.truncf %225 : vector<18x16xf32> to vector<18x16xbf16>
    %cst_85 = arith.constant dense<0.000000e+00> : vector<18x16xf32>
    %242 = tpu.matmul %240, %241, %cst_85 {dimension_numbers = #tpu.dot_dimension_numbers<[1], [0], [0], [1], [0, 0, 1, 1], [], []>} : vector<18x18xbf16>, vector<18x16xbf16>, vector<18x16xf32> -> vector<18x16xf32>
    %243 = vector.broadcast %239 : vector<18x1xf32> to vector<18x16xf32>
    %244 = arith.mulf %242, %243 : vector<18x16xf32>
    %245 = vector.extract_strided_slice %195 {offsets = [0, 32], sizes = [18, 16], strides = [1, 1]} : vector<18x64xf32> to vector<18x16xf32>
    %246 = vector.extract_strided_slice %200 {offsets = [0, 32], sizes = [18, 16], strides = [1, 1]} : vector<18x64xf32> to vector<18x16xf32>
    %247 = vector.extract_strided_slice %190 {offsets = [0, 32], sizes = [18, 16], strides = [1, 1]} : vector<18x64xf32> to vector<18x16xf32>
    %248 = arith.truncf %245 : vector<18x16xf32> to vector<18x16xbf16>
    %249 = arith.truncf %246 : vector<18x16xf32> to vector<18x16xbf16>
    %cst_86 = arith.constant dense<0.000000e+00> : vector<18x18xf32>
    %250 = tpu.matmul %248, %249, %cst_86 {dimension_numbers = #tpu.dot_dimension_numbers<[1], [1], [0], [0], [0, 0, 1, 0], [], []>} : vector<18x16xbf16>, vector<18x16xbf16>, vector<18x18xf32> -> vector<18x18xf32>
    %cst_87 = arith.constant 2.500000e-01 : f32
    %251 = vector.broadcast %cst_87 : f32 to vector<18x18xf32>
    %252 = arith.mulf %250, %251 : vector<18x18xf32>
    %253 = arith.addf %252, %12 : vector<18x18xf32>
    %cst_88 = arith.constant dense<0xFF800000> : vector<18xf32>
    %254 = vector.multi_reduction <maximumf>, %253, %cst_88 [1] : vector<18x18xf32> to vector<18xf32>
    %255 = vector.shape_cast %254 : vector<18xf32> to vector<18x1xf32>
    %256 = vector.broadcast %255 : vector<18x1xf32> to vector<18x18xf32>
    %257 = arith.subf %253, %256 : vector<18x18xf32>
    %258 = math.exp %257 : vector<18x18xf32>
    %cst_89 = arith.constant dense<0.000000e+00> : vector<18xf32>
    %259 = vector.multi_reduction <add>, %258, %cst_89 [1] : vector<18x18xf32> to vector<18xf32>
    %260 = vector.shape_cast %259 : vector<18xf32> to vector<18x1xf32>
    %261 = tpu.reciprocal %260 {approx = true} : vector<18x1xf32> -> vector<18x1xf32>
    %262 = arith.truncf %258 : vector<18x18xf32> to vector<18x18xbf16>
    %263 = arith.truncf %247 : vector<18x16xf32> to vector<18x16xbf16>
    %cst_90 = arith.constant dense<0.000000e+00> : vector<18x16xf32>
    %264 = tpu.matmul %262, %263, %cst_90 {dimension_numbers = #tpu.dot_dimension_numbers<[1], [0], [0], [1], [0, 0, 1, 1], [], []>} : vector<18x18xbf16>, vector<18x16xbf16>, vector<18x16xf32> -> vector<18x16xf32>
    %265 = vector.broadcast %261 : vector<18x1xf32> to vector<18x16xf32>
    %266 = arith.mulf %264, %265 : vector<18x16xf32>
    %267 = vector.extract_strided_slice %195 {offsets = [0, 48], sizes = [18, 16], strides = [1, 1]} : vector<18x64xf32> to vector<18x16xf32>
    %268 = vector.extract_strided_slice %200 {offsets = [0, 48], sizes = [18, 16], strides = [1, 1]} : vector<18x64xf32> to vector<18x16xf32>
    %269 = vector.extract_strided_slice %190 {offsets = [0, 48], sizes = [18, 16], strides = [1, 1]} : vector<18x64xf32> to vector<18x16xf32>
    %270 = arith.truncf %267 : vector<18x16xf32> to vector<18x16xbf16>
    %271 = arith.truncf %268 : vector<18x16xf32> to vector<18x16xbf16>
    %cst_91 = arith.constant dense<0.000000e+00> : vector<18x18xf32>
    %272 = tpu.matmul %270, %271, %cst_91 {dimension_numbers = #tpu.dot_dimension_numbers<[1], [1], [0], [0], [0, 0, 1, 0], [], []>} : vector<18x16xbf16>, vector<18x16xbf16>, vector<18x18xf32> -> vector<18x18xf32>
    %cst_92 = arith.constant 2.500000e-01 : f32
    %273 = vector.broadcast %cst_92 : f32 to vector<18x18xf32>
    %274 = arith.mulf %272, %273 : vector<18x18xf32>
    %275 = arith.addf %274, %12 : vector<18x18xf32>
    %cst_93 = arith.constant dense<0xFF800000> : vector<18xf32>
    %276 = vector.multi_reduction <maximumf>, %275, %cst_93 [1] : vector<18x18xf32> to vector<18xf32>
    %277 = vector.shape_cast %276 : vector<18xf32> to vector<18x1xf32>
    %278 = vector.broadcast %277 : vector<18x1xf32> to vector<18x18xf32>
    %279 = arith.subf %275, %278 : vector<18x18xf32>
    %280 = math.exp %279 : vector<18x18xf32>
    %cst_94 = arith.constant dense<0.000000e+00> : vector<18xf32>
    %281 = vector.multi_reduction <add>, %280, %cst_94 [1] : vector<18x18xf32> to vector<18xf32>
    %282 = vector.shape_cast %281 : vector<18xf32> to vector<18x1xf32>
    %283 = tpu.reciprocal %282 {approx = true} : vector<18x1xf32> -> vector<18x1xf32>
    %284 = arith.truncf %280 : vector<18x18xf32> to vector<18x18xbf16>
    %285 = arith.truncf %269 : vector<18x16xf32> to vector<18x16xbf16>
    %cst_95 = arith.constant dense<0.000000e+00> : vector<18x16xf32>
    %286 = tpu.matmul %284, %285, %cst_95 {dimension_numbers = #tpu.dot_dimension_numbers<[1], [0], [0], [1], [0, 0, 1, 1], [], []>} : vector<18x18xbf16>, vector<18x16xbf16>, vector<18x16xf32> -> vector<18x16xf32>
    %287 = vector.broadcast %283 : vector<18x1xf32> to vector<18x16xf32>
    %288 = arith.mulf %286, %287 : vector<18x16xf32>
    %289 = tpu.concatenate %222, %244, %266, %288 in 1 : vector<18x16xf32>, vector<18x16xf32>, vector<18x16xf32>, vector<18x16xf32> -> vector<18x64xf32>
    %c1_96 = arith.constant 1 : index
    %c0_97 = arith.constant 0 : index
    %c0_98 = arith.constant 0 : index
    %290 = vector.load %arg14[%c1_96, %c0_97, %c0_98] : memref<2x64x64xbf16, #tpu.memory_space<vmem>>, vector<1x64x64xbf16>
    %291 = vector.shape_cast %290 : vector<1x64x64xbf16> to vector<64x64xbf16>
    %292 = arith.truncf %289 : vector<18x64xf32> to vector<18x64xbf16>
    %cst_99 = arith.constant dense<0.000000e+00> : vector<18x64xf32>
    %293 = tpu.matmul %292, %291, %cst_99 {dimension_numbers = #tpu.dot_dimension_numbers<[1], [0], [0], [1], [0, 0, 1, 1], [], []>} : vector<18x64xbf16>, vector<64x64xbf16>, vector<18x64xf32> -> vector<18x64xf32>
    %294 = arith.addf %170, %293 : vector<18x64xf32>
    %c1_100 = arith.constant 1 : index
    %c0_101 = arith.constant 0 : index
    %295 = vector.load %arg12[%c1_100, %c0_101] : memref<2x64xf32, #tpu.memory_space<vmem>>, vector<1x64xf32>
    %296 = arith.mulf %294, %294 : vector<18x64xf32>
    %cst_102 = arith.constant dense<0.000000e+00> : vector<18xf32>
    %297 = vector.multi_reduction <add>, %296, %cst_102 [1] : vector<18x64xf32> to vector<18xf32>
    %298 = vector.shape_cast %297 : vector<18xf32> to vector<18x1xf32>
    %cst_103 = arith.constant 6.400000e+01 : f32
    %299 = vector.broadcast %cst_103 : f32 to vector<18x1xf32>
    %300 = arith.divf %298, %299 : vector<18x1xf32>
    %cst_104 = arith.constant 9.99999997E-7 : f32
    %301 = vector.broadcast %cst_104 : f32 to vector<18x1xf32>
    %302 = arith.addf %300, %301 : vector<18x1xf32>
    %303 = math.rsqrt %302 : vector<18x1xf32>
    %304 = vector.broadcast %303 : vector<18x1xf32> to vector<18x64xf32>
    %305 = arith.mulf %294, %304 : vector<18x64xf32>
    %306 = vector.broadcast %295 : vector<1x64xf32> to vector<18x64xf32>
    %307 = arith.mulf %305, %306 : vector<18x64xf32>
    %c1_105 = arith.constant 1 : index
    %c0_106 = arith.constant 0 : index
    %c0_107 = arith.constant 0 : index
    %308 = vector.load %arg15[%c1_105, %c0_106, %c0_107] : memref<2x64x256xbf16, #tpu.memory_space<vmem>>, vector<1x64x256xbf16>
    %309 = vector.shape_cast %308 : vector<1x64x256xbf16> to vector<64x256xbf16>
    %310 = arith.truncf %307 : vector<18x64xf32> to vector<18x64xbf16>
    %cst_108 = arith.constant dense<0.000000e+00> : vector<18x256xf32>
    %311 = tpu.matmul %310, %309, %cst_108 {dimension_numbers = #tpu.dot_dimension_numbers<[1], [0], [0], [1], [0, 0, 1, 1], [], []>} : vector<18x64xbf16>, vector<64x256xbf16>, vector<18x256xf32> -> vector<18x256xf32>
    %312 = vector.extract_strided_slice %311 {offsets = [0, 0], sizes = [18, 128], strides = [1, 1]} : vector<18x256xf32> to vector<18x128xf32>
    %313 = vector.extract_strided_slice %311 {offsets = [0, 128], sizes = [18, 128], strides = [1, 1]} : vector<18x256xf32> to vector<18x128xf32>
    %314 = arith.negf %312 : vector<18x128xf32>
    %315 = math.exp %314 : vector<18x128xf32>
    %cst_109 = arith.constant 1.000000e+00 : f32
    %316 = vector.broadcast %cst_109 : f32 to vector<18x128xf32>
    %317 = arith.addf %316, %315 : vector<18x128xf32>
    %318 = arith.divf %316, %317 : vector<18x128xf32>
    %319 = arith.mulf %312, %318 : vector<18x128xf32>
    %320 = arith.mulf %319, %313 : vector<18x128xf32>
    %c1_110 = arith.constant 1 : index
    %c0_111 = arith.constant 0 : index
    %c0_112 = arith.constant 0 : index
    %321 = vector.load %arg16[%c1_110, %c0_111, %c0_112] : memref<2x128x64xbf16, #tpu.memory_space<vmem>>, vector<1x128x64xbf16>
    %322 = vector.shape_cast %321 : vector<1x128x64xbf16> to vector<128x64xbf16>
    %323 = arith.truncf %320 : vector<18x128xf32> to vector<18x128xbf16>
    %cst_113 = arith.constant dense<0.000000e+00> : vector<18x64xf32>
    %324 = tpu.matmul %323, %322, %cst_113 {dimension_numbers = #tpu.dot_dimension_numbers<[1], [0], [0], [1], [0, 0, 1, 1], [], []>} : vector<18x128xbf16>, vector<128x64xbf16>, vector<18x64xf32> -> vector<18x64xf32>
    %325 = arith.addf %294, %324 : vector<18x64xf32>
    %326 = vector.extract_strided_slice %325 {offsets = [8, 0], sizes = [1, 64], strides = [1, 1]} : vector<18x64xf32> to vector<1x64xf32>
    %327 = vector.extract_strided_slice %325 {offsets = [17, 0], sizes = [1, 64], strides = [1, 1]} : vector<18x64xf32> to vector<1x64xf32>
    %328 = tpu.concatenate %326, %327 in 0 : vector<1x64xf32>, vector<1x64xf32> -> vector<2x64xf32>
    %c0_114 = arith.constant 0 : index
    %c0_115 = arith.constant 0 : index
    %329 = vector.load %arg17[%c0_114, %c0_115] : memref<1x64xf32, #tpu.memory_space<vmem>>, vector<1x64xf32>
    %330 = arith.mulf %328, %328 : vector<2x64xf32>
    %cst_116 = arith.constant dense<0.000000e+00> : vector<2xf32>
    %331 = vector.multi_reduction <add>, %330, %cst_116 [1] : vector<2x64xf32> to vector<2xf32>
    %332 = vector.shape_cast %331 : vector<2xf32> to vector<2x1xf32>
    %cst_117 = arith.constant 6.400000e+01 : f32
    %333 = vector.broadcast %cst_117 : f32 to vector<2x1xf32>
    %334 = arith.divf %332, %333 : vector<2x1xf32>
    %cst_118 = arith.constant 9.99999997E-7 : f32
    %335 = vector.broadcast %cst_118 : f32 to vector<2x1xf32>
    %336 = arith.addf %334, %335 : vector<2x1xf32>
    %337 = math.rsqrt %336 : vector<2x1xf32>
    %338 = vector.broadcast %337 : vector<2x1xf32> to vector<2x64xf32>
    %339 = arith.mulf %328, %338 : vector<2x64xf32>
    %340 = vector.broadcast %329 : vector<1x64xf32> to vector<2x64xf32>
    %341 = arith.mulf %339, %340 : vector<2x64xf32>
    %c0_119 = arith.constant 0 : index
    %c0_120 = arith.constant 0 : index
    %342 = vector.load %arg18[%c0_119, %c0_120] : memref<64x32xbf16, #tpu.memory_space<vmem>>, vector<64x32xbf16>
    %343 = arith.truncf %341 : vector<2x64xf32> to vector<2x64xbf16>
    %cst_121 = arith.constant dense<0.000000e+00> : vector<2x32xf32>
    %344 = tpu.matmul %343, %342, %cst_121 {dimension_numbers = #tpu.dot_dimension_numbers<[1], [0], [0], [1], [0, 0, 1, 1], [], []>} : vector<2x64xbf16>, vector<64x32xbf16>, vector<2x32xf32> -> vector<2x32xf32>
    %c0_122 = arith.constant 0 : index
    %c0_123 = arith.constant 0 : index
    %345 = vector.load %arg19[%c0_122, %c0_123] : memref<64x32xbf16, #tpu.memory_space<vmem>>, vector<64x32xbf16>
    %346 = arith.truncf %344 : vector<2x32xf32> to vector<2x32xbf16>
    %cst_124 = arith.constant dense<0.000000e+00> : vector<2x64xf32>
    %347 = tpu.matmul %346, %345, %cst_124 {dimension_numbers = #tpu.dot_dimension_numbers<[1], [1], [0], [0], [0, 0, 1, 0], [], []>} : vector<2x32xbf16>, vector<64x32xbf16>, vector<2x64xf32> -> vector<2x64xf32>
    %cst_125 = arith.constant dense<0xFF800000> : vector<2xf32>
    %348 = vector.multi_reduction <maximumf>, %347, %cst_125 [1] : vector<2x64xf32> to vector<2xf32>
    %349 = vector.shape_cast %348 : vector<2xf32> to vector<2x1xf32>
    %350 = vector.broadcast %349 : vector<2x1xf32> to vector<2x64xf32>
    %351 = arith.subf %347, %350 : vector<2x64xf32>
    %352 = math.exp %351 : vector<2x64xf32>
    %cst_126 = arith.constant dense<0.000000e+00> : vector<2xf32>
    %353 = vector.multi_reduction <add>, %352, %cst_126 [1] : vector<2x64xf32> to vector<2xf32>
    %354 = vector.shape_cast %353 : vector<2xf32> to vector<2x1xf32>
    %355 = math.log %354 : vector<2x1xf32>
    %356 = arith.addf %355, %349 : vector<2x1xf32>
    %357 = tpu.iota {dimensions = array<i32: 0>} : vector<2x64xi32>
    %358 = tpu.iota {dimensions = array<i32: 1>} : vector<2x64xi32>
    %cst_127 = arith.constant 0.000000e+00 : f32
    %359 = vector.broadcast %cst_127 : f32 to vector<2x64xf32>
    %c0_i32 = arith.constant 0 : i32
    %360 = vector.broadcast %c0_i32 : i32 to vector<2x64xi32>
    %361 = arith.cmpi eq, %357, %360 : vector<2x64xi32>
    %c0_128 = arith.constant 0 : index
    %362 = memref.load %arg1[%c0_128] : memref<2xi32, #tpu.memory_space<smem>>
    %363 = vector.broadcast %362 : i32 to vector<2x64xi32>
    %364 = arith.cmpi eq, %358, %363 : vector<2x64xi32>
    %365 = arith.andi %361, %364 : vector<2x64xi1>
    %cst_129 = arith.constant 1.000000e+00 : f32
    %cst_130 = arith.constant 0.000000e+00 : f32
    %366 = vector.broadcast %cst_129 : f32 to vector<2x64xf32>
    %367 = vector.broadcast %cst_130 : f32 to vector<2x64xf32>
    %368 = arith.select %365, %366, %367 : vector<2x64xi1>, vector<2x64xf32>
    %369 = arith.addf %359, %368 : vector<2x64xf32>
    %c1_i32 = arith.constant 1 : i32
    %370 = vector.broadcast %c1_i32 : i32 to vector<2x64xi32>
    %371 = arith.cmpi eq, %357, %370 : vector<2x64xi32>
    %c1_131 = arith.constant 1 : index
    %372 = memref.load %arg1[%c1_131] : memref<2xi32, #tpu.memory_space<smem>>
    %373 = vector.broadcast %372 : i32 to vector<2x64xi32>
    %374 = arith.cmpi eq, %358, %373 : vector<2x64xi32>
    %375 = arith.andi %371, %374 : vector<2x64xi1>
    %cst_132 = arith.constant 1.000000e+00 : f32
    %cst_133 = arith.constant 0.000000e+00 : f32
    %376 = vector.broadcast %cst_132 : f32 to vector<2x64xf32>
    %377 = vector.broadcast %cst_133 : f32 to vector<2x64xf32>
    %378 = arith.select %375, %376, %377 : vector<2x64xi1>, vector<2x64xf32>
    %379 = arith.addf %369, %378 : vector<2x64xf32>
    %380 = arith.mulf %347, %379 : vector<2x64xf32>
    %cst_134 = arith.constant dense<0.000000e+00> : vector<2xf32>
    %381 = vector.multi_reduction <add>, %380, %cst_134 [1] : vector<2x64xf32> to vector<2xf32>
    %382 = vector.shape_cast %381 : vector<2xf32> to vector<2x1xf32>
    %383 = arith.subf %356, %382 : vector<2x1xf32>
    %cst_135 = arith.constant dense<0.000000e+00> : vector<1xf32>
    %384 = vector.multi_reduction <add>, %383, %cst_135 [0] : vector<2x1xf32> to vector<1xf32>
    %385 = vector.shape_cast %384 : vector<1xf32> to vector<1x1xf32>
    %cst_136 = arith.constant 5.000000e-01 : f32
    %386 = vector.broadcast %cst_136 : f32 to vector<1x1xf32>
    %387 = arith.mulf %385, %386 : vector<1x1xf32>
    %c0_137 = arith.constant 0 : index
    %c0_138 = arith.constant 0 : index
    %388 = vector.load %arg20[%c0_137, %c0_138] : memref<1x1xf32, #tpu.memory_space<vmem>>, vector<1x1xf32>
    tpu.vector_store %arg20[%c0_137, %c0_138], %387 {strides = array<i32>} : memref<1x1xf32, #tpu.memory_space<vmem>>, vector<1x1xf32>,
    return
  }
  func.func @transform_0(%arg0: i32, %arg1: memref<2xi32, #tpu.memory_space<smem>>) -> (i32, i32) {
    %c0_i32 = arith.constant 0 : i32
    %c0_i32_0 = arith.constant 0 : i32
    %c0_i32_1 = arith.constant 0 : i32
    return %c0_i32, %c0_i32_0 : i32, i32
  }
  func.func @transform_1(%arg0: i32, %arg1: memref<2xi32, #tpu.memory_space<smem>>) -> (i32, i32) {
    %c0_i32 = arith.constant 0 : i32
    %c0_i32_0 = arith.constant 0 : i32
    %c0_i32_1 = arith.constant 0 : i32
    return %c0_i32, %c0_i32_0 : i32, i32
  }
  func.func @transform_2(%arg0: i32, %arg1: memref<2xi32, #tpu.memory_space<smem>>) -> (i32, i32) {
    %c0_i32 = arith.constant 0 : i32
    %c0_i32_0 = arith.constant 0 : i32
    %c0_i32_1 = arith.constant 0 : i32
    return %c0_i32, %c0_i32_0 : i32, i32
  }
  func.func @transform_3(%arg0: i32, %arg1: memref<2xi32, #tpu.memory_space<smem>>) -> (i32, i32) {
    %c0_i32 = arith.constant 0 : i32
    %c0_i32_0 = arith.constant 0 : i32
    %c0_i32_1 = arith.constant 0 : i32
    return %c0_i32, %c0_i32_0 : i32, i32
  }
  func.func @transform_4(%arg0: i32, %arg1: memref<2xi32, #tpu.memory_space<smem>>) -> (i32, i32) {
    %c0_i32 = arith.constant 0 : i32
    %c0_i32_0 = arith.constant 0 : i32
    %c0_i32_1 = arith.constant 0 : i32
    return %c0_i32, %c0_i32_0 : i32, i32
  }
  func.func @transform_5(%arg0: i32, %arg1: memref<2xi32, #tpu.memory_space<smem>>) -> (i32, i32) {
    %c0_i32 = arith.constant 0 : i32
    %c0_i32_0 = arith.constant 0 : i32
    %c0_i32_1 = arith.constant 0 : i32
    return %c0_i32, %c0_i32_0 : i32, i32
  }
  func.func @transform_6(%arg0: i32, %arg1: memref<2xi32, #tpu.memory_space<smem>>) -> (i32, i32) {
    %c0_i32 = arith.constant 0 : i32
    %c0_i32_0 = arith.constant 0 : i32
    %c0_i32_1 = arith.constant 0 : i32
    return %c0_i32, %c0_i32_0 : i32, i32
  }
  func.func @transform_7(%arg0: i32, %arg1: memref<2xi32, #tpu.memory_space<smem>>) -> (i32, i32) {
    %c0_i32 = arith.constant 0 : i32
    %c0_i32_0 = arith.constant 0 : i32
    %c0_i32_1 = arith.constant 0 : i32
    return %c0_i32, %c0_i32_0 : i32, i32
  }
  func.func @transform_8(%arg0: i32, %arg1: memref<2xi32, #tpu.memory_space<smem>>) -> (i32, i32) {
    %c0_i32 = arith.constant 0 : i32
    %c0_i32_0 = arith.constant 0 : i32
    %c0_i32_1 = arith.constant 0 : i32
    return %c0_i32, %c0_i32_0 : i32, i32
  }
  func.func @transform_9(%arg0: i32, %arg1: memref<2xi32, #tpu.memory_space<smem>>) -> (i32, i32) {
    %c0_i32 = arith.constant 0 : i32
    %c0_i32_0 = arith.constant 0 : i32
    %c0_i32_1 = arith.constant 0 : i32
    return %c0_i32, %c0_i32_0 : i32, i32
  }
  func.func @transform_10(%arg0: i32, %arg1: memref<2xi32, #tpu.memory_space<smem>>) -> (i32, i32) {
    %c0_i32 = arith.constant 0 : i32
    %c0_i32_0 = arith.constant 0 : i32
    %c0_i32_1 = arith.constant 0 : i32
    return %c0_i32, %c0_i32_0 : i32, i32
  }
  func.func @transform_11(%arg0: i32, %arg1: memref<2xi32, #tpu.memory_space<smem>>) -> (i32, i32, i32) {
    %c0_i32 = arith.constant 0 : i32
    %c0_i32_0 = arith.constant 0 : i32
    %c0_i32_1 = arith.constant 0 : i32
    %c0_i32_2 = arith.constant 0 : i32
    return %c0_i32, %c0_i32_0, %c0_i32_1 : i32, i32, i32
  }
  func.func @transform_12(%arg0: i32, %arg1: memref<2xi32, #tpu.memory_space<smem>>) -> (i32, i32, i32) {
    %c0_i32 = arith.constant 0 : i32
    %c0_i32_0 = arith.constant 0 : i32
    %c0_i32_1 = arith.constant 0 : i32
    %c0_i32_2 = arith.constant 0 : i32
    return %c0_i32, %c0_i32_0, %c0_i32_1 : i32, i32, i32
  }
  func.func @transform_13(%arg0: i32, %arg1: memref<2xi32, #tpu.memory_space<smem>>) -> (i32, i32, i32) {
    %c0_i32 = arith.constant 0 : i32
    %c0_i32_0 = arith.constant 0 : i32
    %c0_i32_1 = arith.constant 0 : i32
    %c0_i32_2 = arith.constant 0 : i32
    return %c0_i32, %c0_i32_0, %c0_i32_1 : i32, i32, i32
  }
  func.func @transform_14(%arg0: i32, %arg1: memref<2xi32, #tpu.memory_space<smem>>) -> (i32, i32, i32) {
    %c0_i32 = arith.constant 0 : i32
    %c0_i32_0 = arith.constant 0 : i32
    %c0_i32_1 = arith.constant 0 : i32
    %c0_i32_2 = arith.constant 0 : i32
    return %c0_i32, %c0_i32_0, %c0_i32_1 : i32, i32, i32
  }
  func.func @transform_15(%arg0: i32, %arg1: memref<2xi32, #tpu.memory_space<smem>>) -> (i32, i32) {
    %c0_i32 = arith.constant 0 : i32
    %c0_i32_0 = arith.constant 0 : i32
    %c0_i32_1 = arith.constant 0 : i32
    return %c0_i32, %c0_i32_0 : i32, i32
  }
  func.func @transform_16(%arg0: i32, %arg1: memref<2xi32, #tpu.memory_space<smem>>) -> (i32, i32) {
    %c0_i32 = arith.constant 0 : i32
    %c0_i32_0 = arith.constant 0 : i32
    %c0_i32_1 = arith.constant 0 : i32
    return %c0_i32, %c0_i32_0 : i32, i32
  }
  func.func @transform_17(%arg0: i32, %arg1: memref<2xi32, #tpu.memory_space<smem>>) -> (i32, i32) {
    %c0_i32 = arith.constant 0 : i32
    %c0_i32_0 = arith.constant 0 : i32
    %c0_i32_1 = arith.constant 0 : i32
    return %c0_i32, %c0_i32_0 : i32, i32
  }
  func.func @transform_18(%arg0: i32, %arg1: memref<2xi32, #tpu.memory_space<smem>>) -> (i32, i32) {
    %c0_i32 = arith.constant 0 : i32
    %c0_i32_0 = arith.constant 0 : i32
    %c0_i32_1 = arith.constant 0 : i32
    return %c0_i32, %c0_i32_0 : i32, i32
  }
}

</mosaic_0001>

<llo_original>
// kernel: tile.18
$region0: #{tile.18}
  #allocation0 [shape = 's32[1]{0}', space=sflag, size = 0x4, scoped, tag = 'scoped memory for tile.18']
  %s0 = inlined_call_operand.vmem [shape: f32[9,16], index: 0, kind: input, shape index: {}]
  %s1 = inlined_call_operand.vmem [shape: f32[2,9,4,16], index: 1, kind: output, shape index: {}]
  // Predicated region
  $region2: #{tile.18} parent=0 // pred_check
    _
  $region3: #{tile.18} parent=0 // pred_check_branch
    %3 = sbr.rel (0) target = $region5
  $region4: #{tile.18} parent=0 // pred_region
    _
  $region5: #{tile.18} parent=0 // pred_fallthru
    _
  %v4 = vld [vmem:[%s0] ss:$0 sm:$0xff]
  %5 = vst [vmem:[%s1] sm:$0xf] %v4
  %s6 = scalar_lea.vmem %s1, 36
  %7 = vst [vmem:[%s6] sm:$0xf] %v4
  %s8 = scalar_lea.vmem %s0, 1
  %v9 = vld [vmem:[%s8] ss:$0 sm:$0xff]
  %s10 = scalar_lea.vmem %s1, 4
  %11 = vst [vmem:[%s10] sm:$0xf] %v9
  %s12 = scalar_lea.vmem %s1, 40
  %13 = vst [vmem:[%s12] sm:$0xf] %v9
  %s14 = scalar_lea.vmem %s0, 2
  %v15 = vld [vmem:[%s14] ss:$0 sm:$0xff]
  %s16 = scalar_lea.vmem %s1, 8
  %17 = vst [vmem:[%s16] sm:$0xf] %v15
  %s18 = scalar_lea.vmem %s1, 44
  %19 = vst [vmem:[%s18] sm:$0xf] %v15
  %s20 = scalar_lea.vmem %s0, 3
  %v21 = vld [vmem:[%s20] ss:$0 sm:$0xff]
  %s22 = scalar_lea.vmem %s1, 12
  %23 = vst [vmem:[%s22] sm:$0xf] %v21
  %s24 = scalar_lea.vmem %s1, 48
  %25 = vst [vmem:[%s24] sm:$0xf] %v21
  %s26 = scalar_lea.vmem %s0, 4
  %v27 = vld [vmem:[%s26] ss:$0 sm:$0xff]
  %s28 = scalar_lea.vmem %s1, 16
  %29 = vst [vmem:[%s28] sm:$0xf] %v27
  %s30 = scalar_lea.vmem %s1, 52
  %31 = vst [vmem:[%s30] sm:$0xf] %v27
  %s32 = scalar_lea.vmem %s0, 5
  %v33 = vld [vmem:[%s32] ss:$0 sm:$0xff]
  %s34 = scalar_lea.vmem %s1, 20
  %35 = vst [vmem:[%s34] sm:$0xf] %v33
  %s36 = scalar_lea.vmem %s1, 56
  %37 = vst [vmem:[%s36] sm:$0xf] %v33
  %s38 = scalar_lea.vmem %s0, 6
  %v39 = vld [vmem:[%s38] ss:$0 sm:$0xff]
  %s40 = scalar_lea.vmem %s1, 24
  %41 = vst [vmem:[%s40] sm:$0xf] %v39
  %s42 = scalar_lea.vmem %s1, 60
  %43 = vst [vmem:[%s42] sm:$0xf] %v39
  %s44 = scalar_lea.vmem %s0, 7
  %v45 = vld [vmem:[%s44] ss:$0 sm:$0xff]
  %s46 = scalar_lea.vmem %s1, 28
  %47 = vst [vmem:[%s46] sm:$0xf] %v45
  %s48 = scalar_lea.vmem %s1, 64
  %49 = vst [vmem:[%s48] sm:$0xf] %v45
  %s50 = scalar_lea.vmem %s0, 8
  %v51 = vld [vmem:[%s50] ss:$0 sm:$0xff]
  %s52 = scalar_lea.vmem %s1, 32
  %53 = vst [vmem:[%s52] sm:$0xf] %v51
  %s54 = scalar_lea.vmem %s1, 68
  %55 = vst [vmem:[%s54] sm:$0xf] %v51

// kernel: tile.19
$region0: #{tile.19}
  %s0 = inlined_call_operand.vmem [shape: f32[2,9,4,16], index: 0, kind: input, shape index: {}]
  %s1 = inlined_call_operand.vmem [shape: f32[18,64], index: 1, kind: output, shape index: {}]
  $region1: #{tile.19} parent=0
    #allocation0 [shape = 'u8[73728]{0}', space=vmem, size = 0x12000, scoped, tag = 'scoped mem for input reshape']
    %s3 = ssub.s32 16, 1
    %s4 = scalar_lea.vmem %s0, 68
    %v5 = vld [vmem:[%s4] sm:%s3]
    %s6 = scalar_lea.vmem [#allocation0], 136
    %7 = vst [vmem:[%s6] sm:%s3] %v5
    %s8 = scalar_lea.vmem %s0, 64
    %v9 = vld [vmem:[%s8] sm:%s3]
    %s10 = scalar_lea.vmem [#allocation0], 128
    %11 = vst [vmem:[%s10] sm:%s3] %v9
    %s12 = scalar_lea.vmem %s0, 60
    %v13 = vld [vmem:[%s12] sm:%s3]
    %s14 = scalar_lea.vmem [#allocation0], 120
    %15 = vst [vmem:[%s14] sm:%s3] %v13
    %s16 = scalar_lea.vmem %s0, 56
    %v17 = vld [vmem:[%s16] sm:%s3]
    %s18 = scalar_lea.vmem [#allocation0], 112
    %19 = vst [vmem:[%s18] sm:%s3] %v17
    %s20 = scalar_lea.vmem %s0, 52
    %v21 = vld [vmem:[%s20] sm:%s3]
    %s22 = scalar_lea.vmem [#allocation0], 104
    %23 = vst [vmem:[%s22] sm:%s3] %v21
    %s24 = scalar_lea.vmem %s0, 48
    %v25 = vld [vmem:[%s24] sm:%s3]
    %s26 = scalar_lea.vmem [#allocation0], 96
    %27 = vst [vmem:[%s26] sm:%s3] %v25
    %s28 = scalar_lea.vmem %s0, 44
    %v29 = vld [vmem:[%s28] sm:%s3]
    %s30 = scalar_lea.vmem [#allocation0], 88
    %31 = vst [vmem:[%s30] sm:%s3] %v29
    %s32 = scalar_lea.vmem %s0, 40
    %v33 = vld [vmem:[%s32] sm:%s3]
    %s34 = scalar_lea.vmem [#allocation0], 80
    %35 = vst [vmem:[%s34] sm:%s3] %v33
    %s36 = scalar_lea.vmem %s0, 36
    %v37 = vld [vmem:[%s36] sm:%s3]
    %s38 = scalar_lea.vmem [#allocation0], 72
    %39 = vst [vmem:[%s38] sm:%s3] %v37
    %s40 = scalar_lea.vmem %s0, 32
    %v41 = vld [vmem:[%s40] sm:%s3]
    %s42 = scalar_lea.vmem [#allocation0], 64
    %43 = vst [vmem:[%s42] sm:%s3] %v41
    %s44 = scalar_lea.vmem %s0, 28
    %v45 = vld [vmem:[%s44] sm:%s3]
    %s46 = scalar_lea.vmem [#allocation0], 56
    %47 = vst [vmem:[%s46] sm:%s3] %v45
    %s48 = scalar_lea.vmem %s0, 24
    %v49 = vld [vmem:[%s48] sm:%s3]
    %s50 = scalar_lea.vmem [#allocation0], 48
    %51 = vst [vmem:[%s50] sm:%s3] %v49
    %s52 = scalar_lea.vmem %s0, 20
    %v53 = vld [vmem:[%s52] sm:%s3]
    %s54 = scalar_lea.vmem [#allocation0], 40
    %55 = vst [vmem:[%s54] sm:%s3] %v53
    %s56 = scalar_lea.vmem %s0, 16
    %v57 = vld [vmem:[%s56] sm:%s3]
    %s58 = scalar_lea.vmem [#allocation0], 32
    %59 = vst [vmem:[%s58] sm:%s3] %v57
    %s60 = scalar_lea.vmem %s0, 12
    %v61 = vld [vmem:[%s60] sm:%s3]
    %s62 = scalar_lea.vmem [#allocation0], 24
    %63 = vst [vmem:[%s62] sm:%s3] %v61
    %s64 = scalar_lea.vmem %s0, 8
    %v65 = vld [vmem:[%s64] sm:%s3]
    %s66 = scalar_lea.vmem [#allocation0], 16
    %67 = vst [vmem:[%s66] sm:%s3] %v65
    %s68 = scalar_lea.vmem %s0, 4
    %v69 = vld [vmem:[%s68] sm:%s3]
    %s70 = scalar_lea.vmem [#allocation0], 8
    %71 = vst [vmem:[%s70] sm:%s3] %v69
    %v72 = vld [vmem:[%s0] sm:%s3]
    %73 = vst [vmem:[#allocation0] sm:%s3] %v72
    %v74 = vld [vmem:[#allocation0] ss:$8 sm:$0xf]
    %v75 = vld [vmem:[#allocation0] ss:$8 sm:$0xf0]
    %vm76 = vcmask 1047556
    %v77 = vsel %vm76, %v75, %v74
    %vm78 = vcmask 130048
    %79 = vst.msk [vmem:[%s1] sm:$0xff] %vm78, %v77
    %s80 = scalar_lea.vmem [#allocation0], 64
    %v81 = vld [vmem:[%s80] ss:$8 sm:$0xf]
    %s82 = scalar_lea.vmem [#allocation0], 64
    %v83 = vld [vmem:[%s82] ss:$8 sm:$0xf0]
    %vm84 = vcmask 1047556
    %v85 = vsel %vm84, %v83, %v81
    %vm86 = vcmask 130048
    %s87 = scalar_lea.vmem %s1, 8
    %88 = vst.msk [vmem:[%s87] sm:$0xff] %vm86, %v85
    %s89 = scalar_lea.vmem [#allocation0], 128
    %s90 = smov 3
    %v91 = vld [vmem:[%s89] ss:$8 sm:%s90]
    %vm92 = vcmask 130048
    %s93 = scalar_lea.vmem %s1, 16
    %94 = vst.msk [vmem:[%s93] sm:$0x3] %vm92, %v91
    %s95 = scalar_lea.vmem [#allocation0], 3
    %v96 = vld [vmem:[%s95] ss:$8 sm:$0xf]
    %s97 = scalar_lea.vmem [#allocation0], 3
    %v98 = vld [vmem:[%s97] ss:$8 sm:$0xf0]
    %vm99 = vcmask 1047556
    %v100 = vsel %vm99, %v98, %v96
    %101 = vrot.lane.b32.xlu0 %v100, 48
    %v102 = vpop.permute.xlu0 %101
    %vm103 = vcmask 523648
    %104 = vst.msk [vmem:[%s1] sm:$0xff] %vm103, %v102
    %s105 = scalar_lea.vmem [#allocation0], 67
    %v106 = vld [vmem:[%s105] ss:$8 sm:$0xf]
    %s107 = scalar_lea.vmem [#allocation0], 67
    %v108 = vld [vmem:[%s107] ss:$8 sm:$0xf0]
    %vm109 = vcmask 1047556
    %v110 = vsel %vm109, %v108, %v106
    %111 = vrot.lane.b32.xlu0 %v110, 48
    %v112 = vpop.permute.xlu0 %111
    %vm113 = vcmask 523648
    %s114 = scalar_lea.vmem %s1, 8
    %115 = vst.msk [vmem:[%s114] sm:$0xff] %vm113, %v112
    %s116 = scalar_lea.vmem [#allocation0], 131
    %s117 = smov 3
    %v118 = vld [vmem:[%s116] ss:$8 sm:%s117]
    %119 = vrot.lane.b32.xlu0 %v118, 48
    %v120 = vpop.permute.xlu0 %119
    %vm121 = vcmask 523648
    %s122 = scalar_lea.vmem %s1, 16
    %123 = vst.msk [vmem:[%s122] sm:$0x3] %vm121, %v120
    %s124 = scalar_lea.vmem [#allocation0], 2
    %v125 = vld [vmem:[%s124] ss:$8 sm:$0xf]
    %s126 = scalar_lea.vmem [#allocation0], 2
    %v127 = vld [vmem:[%s126] ss:$8 sm:$0xf0]
    %vm128 = vcmask 1047556
    %v129 = vsel %vm128, %v127, %v125
    %130 = vrot.lane.b32.xlu0 %v129, 32
    %v131 = vpop.permute.xlu0 %130
    %vm132 = vcmask 392448
    %133 = vst.msk [vmem:[%s1] sm:$0xff] %vm132, %v131
    %s134 = scalar_lea.vmem [#allocation0], 66
    %v135 = vld [vmem:[%s134] ss:$8 sm:$0xf]
    %s136 = scalar_lea.vmem [#allocation0], 66
    %v137 = vld [vmem:[%s136] ss:$8 sm:$0xf0]
    %vm138 = vcmask 1047556
    %v139 = vsel %vm138, %v137, %v135
    %140 = vrot.lane.b32.xlu0 %v139, 32
    %v141 = vpop.permute.xlu0 %140
    %vm142 = vcmask 392448
    %s143 = scalar_lea.vmem %s1, 8
    %144 = vst.msk [vmem:[%s143] sm:$0xff] %vm142, %v141
    %s145 = scalar_lea.vmem [#allocation0], 130
    %s146 = smov 3
    %v147 = vld [vmem:[%s145] ss:$8 sm:%s146]
    %148 = vrot.lane.b32.xlu0 %v147, 32
    %v149 = vpop.permute.xlu0 %148
    %vm150 = vcmask 392448
    %s151 = scalar_lea.vmem %s1, 16
    %152 = vst.msk [vmem:[%s151] sm:$0x3] %vm150, %v149
    %s153 = scalar_lea.vmem [#allocation0], 1
    %v154 = vld [vmem:[%s153] ss:$8 sm:$0xf]
    %s155 = scalar_lea.vmem [#allocation0], 1
    %v156 = vld [vmem:[%s155] ss:$8 sm:$0xf0]
    %vm157 = vcmask 1047556
    %v158 = vsel %vm157, %v156, %v154
    %159 = vrot.lane.b32.xlu0 %v158, 16
    %v160 = vpop.permute.xlu0 %159
    %vm161 = vcmask 261248
    %162 = vst.msk [vmem:[%s1] sm:$0xff] %vm161, %v160
    %s163 = scalar_lea.vmem [#allocation0], 65
    %v164 = vld [vmem:[%s163] ss:$8 sm:$0xf]
    %s165 = scalar_lea.vmem [#allocation0], 65
    %v166 = vld [vmem:[%s165] ss:$8 sm:$0xf0]
    %vm167 = vcmask 1047556
    %v168 = vsel %vm167, %v166, %v164
    %169 = vrot.lane.b32.xlu0 %v168, 16
    %v170 = vpop.permute.xlu0 %169
    %vm171 = vcmask 261248
    %s172 = scalar_lea.vmem %s1, 8
    %173 = vst.msk [vmem:[%s172] sm:$0xff] %vm171, %v170
    %s174 = scalar_lea.vmem [#allocation0], 129
    %s175 = smov 3
    %v176 = vld [vmem:[%s174] ss:$8 sm:%s175]
    %177 = vrot.lane.b32.xlu0 %v176, 16
    %v178 = vpop.permute.xlu0 %177
    %vm179 = vcmask 261248
    %s180 = scalar_lea.vmem %s1, 16
    %181 = vst.msk [vmem:[%s180] sm:$0x3] %vm179, %v178

// kernel: _forward_data_type0.1
$region0: #{_forward_data_type0.1}
  #allocation0 [shape = 'u32[]', space=smem, size = 0x4, offset = 0x4, fixed_abs, tag = 'smem constant byte address 0x4 - core index']
  #allocation1 [shape = 'u32[72,128]{1,0:T(1,128)}', space=vmem, size = 0x9000, scoped, tag = 'internal scratch']
  #allocation2 [shape = 's32[1]{0}', space=sflag, size = 0x4, scoped, tag = 'scoped memory for _forward_data_type0.1']
  #allocation3 [shape = 'u8[512]{0}', space=smem, size = 0x200, scoped, tag = 'prefetched SMEM operand 0']
  %s0 = inlined_call_operand.vmem [shape: s32[2], index: 0, kind: input, shape index: {}]
  %s1 = inlined_call_operand.vmem [shape: f32[8,32], index: 1, kind: input, shape index: {}]
  %s2 = inlined_call_operand.vmem [shape: f32[3,64], index: 2, kind: input, shape index: {}]
  %s3 = inlined_call_operand.vmem [shape: f32[2,64], index: 3, kind: input, shape index: {}]
  %s4 = inlined_call_operand.vmem [shape: f32[18,18], index: 4, kind: input, shape index: {}]
  %s5 = inlined_call_operand.vmem [shape: f32[18,64], index: 5, kind: input, shape index: {}]
  %s6 = inlined_call_operand.vmem [shape: f32[18,64], index: 6, kind: input, shape index: {}]
  %s7 = inlined_call_operand.vmem [shape: bf16[64,64], index: 7, kind: input, shape index: {}]
  %s8 = inlined_call_operand.vmem [shape: bf16[32,64], index: 8, kind: input, shape index: {}]
  %s9 = inlined_call_operand.vmem [shape: f32[1,64], index: 9, kind: input, shape index: {}]
  %s10 = inlined_call_operand.vmem [shape: f32[2,64], index: 10, kind: input, shape index: {}]
  %s11 = inlined_call_operand.vmem [shape: f32[2,64], index: 11, kind: input, shape index: {}]
  %s12 = inlined_call_operand.vmem [shape: bf16[2,64,192], index: 12, kind: input, shape index: {}]
  %s13 = inlined_call_operand.vmem [shape: bf16[2,64,64], index: 13, kind: input, shape index: {}]
  %s14 = inlined_call_operand.vmem [shape: bf16[2,64,256], index: 14, kind: input, shape index: {}]
  %s15 = inlined_call_operand.vmem [shape: bf16[2,128,64], index: 15, kind: input, shape index: {}]
  %s16 = inlined_call_operand.vmem [shape: f32[1,64], index: 16, kind: input, shape index: {}]
  %s17 = inlined_call_operand.vmem [shape: bf16[64,32], index: 17, kind: input, shape index: {}]
  %s18 = inlined_call_operand.vmem [shape: bf16[64,32], index: 18, kind: input, shape index: {}]
  %s19 = inlined_call_operand.hbm [shape: f32[1,1], index: 19, kind: output, shape index: {}]
  %s20 = sld [smem:[#allocation0]]
  $region82: #{_forward_data_type0.1} parent=0
    _
  %s22 = ssub.s32 1, %s20
  %s23 = scalar_select 0, %s22, %s20
  %s25 = sshll.u32 %s0, 4
  %s26 = int_to_ptr.vmem [resolvable:$true] %s25
  %28 = dma.vmem_to_smem %s26, 16, [#allocation3], [#allocation2]
  %30 = dma.done [#allocation2], 16
  %31 = sfence
  $region1: #{_forward_data_type0.1} parent=0
    #allocation4 [shape = 'u8[512]{0}', space=vmem, size = 0x400, scoped, tag = 'output window, operand 0, single buffered']
    #allocation5 [shape = 's32[1]{0}', space=sflag, size = 0x4, scoped, tag = 'scoped memory for _forward_data_type0.1']
    %32 = vsyncpa [#allocation5], 0
    // Predicated region
    $region2: #{_forward_data_type0.1} parent=1 // pred_check
      _
    $region3: #{_forward_data_type0.1} parent=1 // pred_check_branch
      %34 = sbr.rel (0) target = $region5
    $region4: #{_forward_data_type0.1} parent=1 // pred_region
      _
    $region5: #{_forward_data_type0.1} parent=1 // pred_fallthru
      _
    // Predicated region
    $region6: #{_forward_data_type0.1} parent=1 // pred_check
      _
    $region7: #{_forward_data_type0.1} parent=1 // pred_check_branch
      %36 = sbr.rel (0) target = $region9
    $region8: #{_forward_data_type0.1} parent=1 // pred_region
      _
    $region9: #{_forward_data_type0.1} parent=1 // pred_fallthru
      _
    // Predicated region
    $region10: #{_forward_data_type0.1} parent=1 // pred_check
      _
    $region11: #{_forward_data_type0.1} parent=1 // pred_check_branch
      %38 = sbr.rel (0) target = $region13
    $region12: #{_forward_data_type0.1} parent=1 // pred_region
      _
    $region13: #{_forward_data_type0.1} parent=1 // pred_fallthru
      _
    // Predicated region
    $region14: #{_forward_data_type0.1} parent=1 // pred_check
      _
    $region15: #{_forward_data_type0.1} parent=1 // pred_check_branch
      %40 = sbr.rel (0) target = $region17
    $region16: #{_forward_data_type0.1} parent=1 // pred_region
      _
    $region17: #{_forward_data_type0.1} parent=1 // pred_fallthru
      _
    // Predicated region
    $region18: #{_forward_data_type0.1} parent=1 // pred_check
      _
    $region19: #{_forward_data_type0.1} parent=1 // pred_check_branch
      %42 = sbr.rel (0) target = $region21
    $region20: #{_forward_data_type0.1} parent=1 // pred_region
      _
    $region21: #{_forward_data_type0.1} parent=1 // pred_fallthru
      _
    // Predicated region
    $region22: #{_forward_data_type0.1} parent=1 // pred_check
      _
    $region23: #{_forward_data_type0.1} parent=1 // pred_check_branch
      %44 = sbr.rel (0) target = $region25
    $region24: #{_forward_data_type0.1} parent=1 // pred_region
      _
    $region25: #{_forward_data_type0.1} parent=1 // pred_fallthru
      _
    // Predicated region
    $region26: #{_forward_data_type0.1} parent=1 // pred_check
      _
    $region27: #{_forward_data_type0.1} parent=1 // pred_check_branch
      %46 = sbr.rel (0) target = $region29
    $region28: #{_forward_data_type0.1} parent=1 // pred_region
      _
    $region29: #{_forward_data_type0.1} parent=1 // pred_fallthru
      _
    // Predicated region
    $region30: #{_forward_data_type0.1} parent=1 // pred_check
      _
    $region31: #{_forward_data_type0.1} parent=1 // pred_check_branch
      %48 = sbr.rel (0) target = $region33
    $region32: #{_forward_data_type0.1} parent=1 // pred_region
      _
    $region33: #{_forward_data_type0.1} parent=1 // pred_fallthru
      _
    // Predicated region
    $region34: #{_forward_data_type0.1} parent=1 // pred_check
      _
    $region35: #{_forward_data_type0.1} parent=1 // pred_check_branch
      %50 = sbr.rel (0) target = $region37
    $region36: #{_forward_data_type0.1} parent=1 // pred_region
      _
    $region37: #{_forward_data_type0.1} parent=1 // pred_fallthru
      _
    // Predicated region
    $region38: #{_forward_data_type0.1} parent=1 // pred_check
      _
    $region39: #{_forward_data_type0.1} parent=1 // pred_check_branch
      %52 = sbr.rel (0) target = $region41
    $region40: #{_forward_data_type0.1} parent=1 // pred_region
      _
    $region41: #{_forward_data_type0.1} parent=1 // pred_fallthru
      _
    // Predicated region
    $region42: #{_forward_data_type0.1} parent=1 // pred_check
      _
    $region43: #{_forward_data_type0.1} parent=1 // pred_check_branch
      %54 = sbr.rel (0) target = $region45
    $region44: #{_forward_data_type0.1} parent=1 // pred_region
      _
    $region45: #{_forward_data_type0.1} parent=1 // pred_fallthru
      _
    // Predicated region
    $region46: #{_forward_data_type0.1} parent=1 // pred_check
      _
    $region47: #{_forward_data_type0.1} parent=1 // pred_check_branch
      %56 = sbr.rel (0) target = $region49
    $region48: #{_forward_data_type0.1} parent=1 // pred_region
      _
    $region49: #{_forward_data_type0.1} parent=1 // pred_fallthru
      _
    // Predicated region
    $region50: #{_forward_data_type0.1} parent=1 // pred_check
      _
    $region51: #{_forward_data_type0.1} parent=1 // pred_check_branch
      %58 = sbr.rel (0) target = $region53
    $region52: #{_forward_data_type0.1} parent=1 // pred_region
      _
    $region53: #{_forward_data_type0.1} parent=1 // pred_fallthru
      _
    // Predicated region
    $region54: #{_forward_data_type0.1} parent=1 // pred_check
      _
    $region55: #{_forward_data_type0.1} parent=1 // pred_check_branch
      %60 = sbr.rel (0) target = $region57
    $region56: #{_forward_data_type0.1} parent=1 // pred_region
      _
    $region57: #{_forward_data_type0.1} parent=1 // pred_fallthru
      _
    // Predicated region
    $region58: #{_forward_data_type0.1} parent=1 // pred_check
      _
    $region59: #{_forward_data_type0.1} parent=1 // pred_check_branch
      %62 = sbr.rel (0) target = $region61
    $region60: #{_forward_data_type0.1} parent=1 // pred_region
      _
    $region61: #{_forward_data_type0.1} parent=1 // pred_fallthru
      _
    // Predicated region
    $region62: #{_forward_data_type0.1} parent=1 // pred_check
      _
    $region63: #{_forward_data_type0.1} parent=1 // pred_check_branch
      %64 = sbr.rel (0) target = $region65
    $region64: #{_forward_data_type0.1} parent=1 // pred_region
      _
    $region65: #{_forward_data_type0.1} parent=1 // pred_fallthru
      _
    // Predicated region
    $region66: #{_forward_data_type0.1} parent=1 // pred_check
      _
    $region67: #{_forward_data_type0.1} parent=1 // pred_check_branch
      %66 = sbr.rel (0) target = $region69
    $region68: #{_forward_data_type0.1} parent=1 // pred_region
      _
    $region69: #{_forward_data_type0.1} parent=1 // pred_fallthru
      _
    // Predicated region
    $region70: #{_forward_data_type0.1} parent=1 // pred_check
      _
    $region71: #{_forward_data_type0.1} parent=1 // pred_check_branch
      %68 = sbr.rel (0) target = $region73
    $region72: #{_forward_data_type0.1} parent=1 // pred_region
      _
    $region73: #{_forward_data_type0.1} parent=1 // pred_fallthru
      _
    %v70 = vld [vmem:[%s1] sm:$0xff]
    %v71 = vld [vmem:[%s8] sm:$0xf]
    %v72 = vld [vmem:[%s8 + $0x4] sm:$0xf]
    %v73 = vld [vmem:[%s8 + $0x8] sm:$0xf]
    %v74 = vld [vmem:[%s8 + $0xc] sm:$0xf]
    %v75 = vpack.c.bf16 %v70, %v70
    %v76 = vld [vmem:[%s9] sm:$0x1]
    %v78 = vperm.slane %v76, 0
    %v84 = vunpack.c.l.b16 %v71
    %v85 = vunpack.c.l.b16 %v72
    %v86 = vunpack.c.l.b16 %v73
    %v87 = vunpack.c.l.b16 %v74
    %v88 = vpack.c.b16 %v85, %v84
    %v89 = vpack.c.b16 %v87, %v86
    %vm92 = vcmask 261120
    %v94 = vsel %vm92, %v75, 0
    %96 = vmatpush.bf16.msra.mxu0 0
    %97 = vmatpush.bf16.msra.mxu0 0
    %98 = vmatpush.bf16.msra.mxu0 0
    %99 = vmatpush.bf16.msra.mxu0 0
    %100 = vmatpush.bf16.msra.mxu0 0
    %101 = vmatpush.bf16.msra.mxu0 0
    %102 = vmatpush.bf16.msra.mxu0 %v89
    %103 = vmatpush.bf16.msra.mxu0 %v88
    %104 = vmatmul.bf16.gmra.mxu0 %v94
    %v105 = vpop.f32.mrf.mxu0
    %v106 = vadd.f32 %v78, %v105
    %v107 = vpop.f32.mrf.mxu0
    %108 = vdwg.mxu0
    %v109 = vld [vmem:[%s2] sm:$0x7]
    %v110 = vld [vmem:[%s3] sm:$0x3]
    %v112 = vrot.slane %v106, 5
    %v115 = vrot.slane %v110, 1
    %v118 = vrot.slane %v109, 7
    %vm120 = vcmask 1042432
    %v121 = vsel %vm120, %v109, %v112
    %vm122 = vcmask 1046528
    %v123 = vsel %vm122, %v121, %v115
    %vm124 = vcmask 1040384
    %v125 = vsel %vm124, %v115, %v118
    %vm126 = vcmask 1043456
    %v127 = vsel %vm126, %v125, %v106
    %v128 = vld [vmem:[%s4] sm:$0xff]
    %v129 = vld [vmem:[%s4 + $0x8] sm:$0xff]
    %v130 = vld [vmem:[%s4 + $0x10] sm:$0x3]
    %v131 = vld [vmem:[%s5] sm:$0xff]
    %v132 = vld [vmem:[%s5 + $0x8] sm:$0xff]
    %v133 = vld [vmem:[%s5 + $0x10] sm:$0x3]
    %v134 = vld [vmem:[%s6] sm:$0xff]
    %v135 = vld [vmem:[%s6 + $0x8] sm:$0xff]
    %v136 = vld [vmem:[%s6 + $0x10] sm:$0x3]
    %v137 = vld [vmem:[%s7] sm:$0xf]
    %v138 = vld [vmem:[%s7 + $0x4] sm:$0xf]
    %v139 = vld [vmem:[%s7 + $0x8] sm:$0xf]
    %v140 = vld [vmem:[%s7 + $0xc] sm:$0xf]
    %v141 = vld [vmem:[%s7 + $0x10] sm:$0xf]
    %v142 = vld [vmem:[%s7 + $0x14] sm:$0xf]
    %v143 = vld [vmem:[%s7 + $0x18] sm:$0xf]
    %v144 = vld [vmem:[%s7 + $0x1c] sm:$0xf]
    %v145 = vld [vmem:[%s10] sm:$0x1]
    %v146 = vmul.f32 %v123, %v123
    %v147 = vmul.f32 %v127, %v127
    %v148 = vmul.f32 %v110, %v110
    %vm149 = vcmask 523264
    %v150 = vsel %vm149, %v146, 0.0
    %151 = vadd.xlane.f32.xlu0 %v150
    %v152 = vpop.xlane.xlu0 %151
    %v153 = vsel %vm149, %v147, 0.0
    %154 = vadd.xlane.f32.xlu0 %v153
    %v155 = vpop.xlane.xlu0 %154
    %vm156 = vcmask 517120
    %v157 = vsel %vm156, %v148, 0.0
    %158 = vadd.xlane.f32.xlu0 %v157
    %v159 = vpop.xlane.xlu0 %158
    %v160 = vrcp.pop 64.0
    %v161 = vmul.f32 64.0, %v160
    %v162 = vsub.f32 1.0, %v161
    %v163 = vmul.f32 %v160, %v162
    %v164 = vadd.f32 %v160, %v163
    %vm165 = vweird.f32 %v160
    %v166 = vsel %vm165, %v160, %v164
    %v167 = vmul.f32 %v152, %v166
    %v168 = vmul.f32 %v155, %v166
    %v169 = vmul.f32 %v159, %v166
    %v170 = vadd.f32 %v167, 1e-06
    %v171 = vadd.f32 %v168, 1e-06
    %v172 = vadd.f32 %v169, 1e-06
    %v173 = vrsqrt.pop %v170
    %v174 = vmul.f32 %v173, %v170
    %v175 = vmul.f32 %v174, %v173
    %v176 = vmul.f32 0.5, %v175
    %v177 = vsub.f32 1.5, %v176
    %v178 = vmul.f32 %v173, %v177
    %vm179 = vweird.f32 %v170
    %vm180 = vweird.f32 %v173
    %vm181 = vmor %vm179, %vm180
    %v182 = vsel %vm181, %v173, %v178
    %v183 = vrsqrt.pop %v171
    %v184 = vmul.f32 %v183, %v171
    %v185 = vmul.f32 %v184, %v183
    %v186 = vmul.f32 0.5, %v185
    %v187 = vsub.f32 1.5, %v186
    %v188 = vmul.f32 %v183, %v187
    %vm189 = vweird.f32 %v171
    %vm190 = vweird.f32 %v183
    %vm191 = vmor %vm189, %vm190
    %v192 = vsel %vm191, %v183, %v188
    %v193 = vrsqrt.pop %v172
    %v194 = vmul.f32 %v193, %v172
    %v195 = vmul.f32 %v194, %v193
    %v196 = vmul.f32 0.5, %v195
    %v197 = vsub.f32 1.5, %v196
    %v198 = vmul.f32 %v193, %v197
    %vm199 = vweird.f32 %v172
    %vm200 = vweird.f32 %v193
    %vm201 = vmor %vm199, %vm200
    %v202 = vsel %vm201, %v193, %v198
    %v203 = vmul.f32 %v123, %v182
    %v204 = vmul.f32 %v127, %v192
    %v205 = vmul.f32 %v110, %v202
    %v206 = vperm.slane %v145, 0
    %v207 = vmul.f32 %v203, %v206
    %v208 = vmul.f32 %v204, %v206
    %v209 = vmul.f32 %v205, %v206
    %v210 = vld [vmem:[%s12] sm:$0xff]
    %v211 = vld [vmem:[%s12 + $0x8] sm:$0xff]
    %v212 = vld [vmem:[%s12 + $0x10] sm:$0xff]
    %v213 = vld [vmem:[%s12 + $0x18] sm:$0xff]
    %v214 = vld [vmem:[%s12 + $0x20] sm:$0xff]
    %v215 = vld [vmem:[%s12 + $0x28] sm:$0xff]
    %v216 = vld [vmem:[%s12 + $0x30] sm:$0xff]
    %v217 = vld [vmem:[%s12 + $0x38] sm:$0xff]
    %v218 = vpack.c.bf16 %v208, %v207
    %v219 = vpack.c.bf16 %v209, %v209
    %v228 = vunpack.c.l.b16 %v210
    %v229 = vunpack.c.h.b16 %v210
    %v230 = vunpack.c.l.b16 %v211
    %v231 = vunpack.c.h.b16 %v211
    %v232 = vunpack.c.l.b16 %v212
    %v233 = vunpack.c.h.b16 %v212
    %v234 = vunpack.c.l.b16 %v213
    %v235 = vunpack.c.h.b16 %v213
    %v236 = vunpack.c.l.b16 %v214
    %v237 = vunpack.c.h.b16 %v214
    %v238 = vunpack.c.l.b16 %v215
    %v239 = vunpack.c.h.b16 %v215
    %v240 = vunpack.c.l.b16 %v216
    %v241 = vunpack.c.h.b16 %v216
    %v242 = vunpack.c.l.b16 %v217
    %v243 = vunpack.c.h.b16 %v217
    %v244 = vpack.c.b16 %v230, %v228
    %v245 = vpack.c.b16 %v231, %v229
    %v246 = vpack.c.b16 %v234, %v232
    %v247 = vpack.c.b16 %v235, %v233
    %v248 = vpack.c.b16 %v238, %v236
    %v249 = vpack.c.b16 %v239, %v237
    %v250 = vpack.c.b16 %v242, %v240
    %v251 = vpack.c.b16 %v243, %v241
    %v261 = vsel %vm149, %v218, 0
    %v264 = vsel %vm149, %v219, 0
    %266 = vmatpush.bf16.msra.mxu0 0
    %267 = vmatpush.bf16.msra.mxu0 0
    %268 = vmatpush.bf16.msra.mxu0 0
    %269 = vmatpush.bf16.msra.mxu0 0
    %270 = vmatpush.bf16.msra.mxu0 %v250
    %271 = vmatpush.bf16.msra.mxu0 %v248
    %272 = vmatpush.bf16.msra.mxu0 %v246
    %273 = vmatpush.bf16.msra.mxu0 %v244
    %274 = vmatmul.bf16.gmra.mxu0 %v261
    %v275 = vpop.f32.mrf.mxu0
    %v276 = vadd.f32 0.0, %v275
    %v277 = vpop.f32.mrf.mxu0
    %v278 = vadd.f32 0.0, %v277
    %279 = vmatmul.bf16.gmra.mxu0 %v264
    %v280 = vpop.f32.mrf.mxu0
    %v281 = vadd.f32 0.0, %v280
    %v282 = vpop.f32.mrf.mxu0
    %283 = vdwg.mxu0
    %284 = vmatpush.bf16.msra.mxu0 0
    %285 = vmatpush.bf16.msra.mxu0 0
    %286 = vmatpush.bf16.msra.mxu0 0
    %287 = vmatpush.bf16.msra.mxu0 0
    %288 = vmatpush.bf16.msra.mxu0 %v251
    %289 = vmatpush.bf16.msra.mxu0 %v249
    %290 = vmatpush.bf16.msra.mxu0 %v247
    %291 = vmatpush.bf16.msra.mxu0 %v245
    %292 = vmatmul.bf16.gmra.mxu0 %v261
    %v293 = vpop.f32.mrf.mxu0
    %v294 = vadd.f32 0.0, %v293
    %v295 = vpop.f32.mrf.mxu0
    %v296 = vadd.f32 0.0, %v295
    %297 = vmatmul.bf16.gmra.mxu0 %v264
    %v298 = vpop.f32.mrf.mxu0
    %v299 = vadd.f32 0.0, %v298
    %v300 = vpop.f32.mrf.mxu0
    %301 = vdwg.mxu0
    %v302 = vmul.f32 %v276, %v131
    %v303 = vmul.f32 %v278, %v132
    %v304 = vmul.f32 %v281, %v133
    %v305 = vpack.c.bf16 %v278, %v276
    %v306 = vpack.c.bf16 %v281, %v281
    %v315 = vunpack.c.l.b16 %v137
    %v316 = vunpack.c.l.b16 %v138
    %v317 = vunpack.c.l.b16 %v139
    %v318 = vunpack.c.l.b16 %v140
    %v319 = vunpack.c.l.b16 %v141
    %v320 = vunpack.c.l.b16 %v142
    %v321 = vunpack.c.l.b16 %v143
    %v322 = vunpack.c.l.b16 %v144
    %v323 = vpack.c.b16 %v316, %v315
    %v324 = vpack.c.b16 %v318, %v317
    %v325 = vpack.c.b16 %v320, %v319
    %v326 = vpack.c.b16 %v322, %v321
    %v332 = vsel %vm149, %v305, 0
    %v335 = vsel %vm149, %v306, 0
    %337 = vmatpush.bf16.msra.mxu0 0
    %338 = vmatpush.bf16.msra.mxu0 0
    %339 = vmatpush.bf16.msra.mxu0 0
    %340 = vmatpush.bf16.msra.mxu0 0
    %341 = vmatpush.bf16.msra.mxu0 %v326
    %342 = vmatpush.bf16.msra.mxu0 %v325
    %343 = vmatpush.bf16.msra.mxu0 %v324
    %344 = vmatpush.bf16.msra.mxu0 %v323
    %345 = vmatmul.bf16.gmra.mxu0 %v332
    %v346 = vpop.f32.mrf.mxu0
    %v347 = vadd.f32 0.0, %v346
    %v348 = vpop.f32.mrf.mxu0
    %v349 = vadd.f32 0.0, %v348
    %350 = vmatmul.bf16.gmra.mxu0 %v335
    %v351 = vpop.f32.mrf.mxu0
    %v352 = vadd.f32 0.0, %v351
    %v353 = vpop.f32.mrf.mxu0
    %354 = vdwg.mxu0
    %v355 = vmul.f32 %v347, %v134
    %v356 = vmul.f32 %v349, %v135
    %v357 = vmul.f32 %v352, %v136
    %v358 = vadd.f32 %v302, %v355
    %v359 = vadd.f32 %v303, %v356
    %v360 = vadd.f32 %v304, %v357
    %364 = vrot.lane.b32.xlu0 %v131, 64
    %v365 = vpop.permute.xlu0 %364
    %366 = vrot.lane.b32.xlu0 %v132, 64
    %v367 = vpop.permute.xlu0 %366
    %368 = vrot.lane.b32.xlu0 %v133, 64
    %v369 = vpop.permute.xlu0 %368
    %v373 = vmul.f32 %v276, %v365
    %v374 = vmul.f32 %v278, %v367
    %v375 = vmul.f32 %v281, %v369
    %378 = vrot.lane.b32.xlu0 %v305, 64
    %v379 = vpop.permute.xlu0 %378
    %380 = vrot.lane.b32.xlu0 %v306, 64
    %v381 = vpop.permute.xlu0 %380
    %v383 = vsel %vm149, %v379, 0
    %v386 = vsel %vm149, %v381, 0
    %388 = vmatpush.bf16.msra.mxu0 0
    %389 = vmatpush.bf16.msra.mxu0 0
    %390 = vmatpush.bf16.msra.mxu0 0
    %391 = vmatpush.bf16.msra.mxu0 0
    %392 = vmatpush.bf16.msra.mxu0 %v326
    %393 = vmatpush.bf16.msra.mxu0 %v325
    %394 = vmatpush.bf16.msra.mxu0 %v324
    %395 = vmatpush.bf16.msra.mxu0 %v323
    %396 = vmatmul.bf16.gmra.mxu0 %v383
    %v397 = vpop.f32.mrf.mxu0
    %v398 = vadd.f32 0.0, %v397
    %v399 = vpop.f32.mrf.mxu0
    %v400 = vadd.f32 0.0, %v399
    %401 = vmatmul.bf16.gmra.mxu0 %v386
    %v402 = vpop.f32.mrf.mxu0
    %v403 = vadd.f32 0.0, %v402
    %v404 = vpop.f32.mrf.mxu0
    %405 = vdwg.mxu0
    %v406 = vmul.f32 %v398, %v134
    %v407 = vmul.f32 %v400, %v135
    %v408 = vmul.f32 %v403, %v136
    %412 = vrot.lane.b32.xlu0 %v406, 64
    %v413 = vpop.permute.xlu0 %412
    %414 = vrot.lane.b32.xlu0 %v407, 64
    %v415 = vpop.permute.xlu0 %414
    %416 = vrot.lane.b32.xlu0 %v408, 64
    %v417 = vpop.permute.xlu0 %416
    %v421 = vadd.f32 %v373, %v413
    %v422 = vadd.f32 %v374, %v415
    %v423 = vadd.f32 %v375, %v417
    %v424 = vpack.c.bf16 %v359, %v358
    %v425 = vpack.c.bf16 %v360, %v360
    %v426 = vpack.c.bf16 %v422, %v421
    %v427 = vpack.c.bf16 %v423, %v423
    %430 = vrot.lane.b32.xlu0 %v426, 64
    %v431 = vpop.permute.xlu0 %430
    %432 = vrot.lane.b32.xlu0 %v427, 64
    %v433 = vpop.permute.xlu0 %432
    %vm434 = vcmask 130048
    %v436 = vsel %vm434, %v424, 0
    %v439 = vsel %vm434, %v425, 0
    %v442 = vsel %vm434, %v431, 0
    %v445 = vsel %vm434, %v433, 0
    %447 = vmatpush.bf16.xpose.msra.mxu0 0
    %448 = vmatpush.bf16.xpose.msra.mxu0 0
    %449 = vmatpush.bf16.xpose.msra.mxu0 0
    %450 = vmatpush.bf16.xpose.msra.mxu0 0
    %451 = vmatpush.bf16.xpose.msra.mxu0 0
    %452 = vmatpush.bf16.xpose.msra.mxu0 0
    %453 = vmatpush.bf16.xpose.msra.mxu0 %v445
    %454 = vmatpush.bf16.xpose.msra.mxu0 %v442
    %455 = vmatmul.bf16.gmra.mxu0 %v436
    %v456 = vpop.f32.mrf.mxu0
    %v457 = vadd.f32 0.0, %v456
    %v458 = vpop.f32.mrf.mxu0
    %v459 = vadd.f32 0.0, %v458
    %460 = vmatmul.bf16.gmra.mxu0 %v439
    %v461 = vpop.f32.mrf.mxu0
    %v462 = vadd.f32 0.0, %v461
    %v463 = vpop.f32.mrf.mxu0
    %464 = vdwg.mxu0
    %v465 = vmul.f32 %v457, 0.25
    %v466 = vmul.f32 %v459, 0.25
    %v467 = vmul.f32 %v462, 0.25
    %v468 = vadd.f32 %v465, %v128
    %v469 = vadd.f32 %v466, %v129
    %v470 = vadd.f32 %v467, %v130
    %vm471 = vcmask 146432
    %v472 = vsel %vm471, %v468, -inf
    %473 = vmax.xlane.f32.xlu0 %v472
    %v474 = vpop.xlane.xlu0 %473
    %v475 = vsel %vm471, %v469, -inf
    %476 = vmax.xlane.f32.xlu0 %v475
    %v477 = vpop.xlane.xlu0 %476
    %vm478 = vcmask 140288
    %v479 = vsel %vm478, %v470, -inf
    %480 = vmax.xlane.f32.xlu0 %v479
    %v481 = vpop.xlane.xlu0 %480
    %v482 = vsub.f32 %v468, %v474
    %v483 = vsub.f32 %v469, %v477
    %v484 = vsub.f32 %v470, %v481
    %v485 = vmul.f32 %v482, 1.442695
    %v486 = vpow.pop %v485
    %v487 = vmul.f32 %v483, 1.442695
    %v488 = vpow.pop %v487
    %v489 = vmul.f32 %v484, 1.442695
    %v490 = vpow.pop %v489
    %v491 = vsel %vm471, %v486, 0.0
    %492 = vadd.xlane.f32.xlu0 %v491
    %v493 = vpop.xlane.xlu0 %492
    %v494 = vsel %vm471, %v488, 0.0
    %495 = vadd.xlane.f32.xlu0 %v494
    %v496 = vpop.xlane.xlu0 %495
    %v497 = vsel %vm478, %v490, 0.0
    %498 = vadd.xlane.f32.xlu0 %v497
    %v499 = vpop.xlane.xlu0 %498
    %v500 = vrcp.pop %v493
    %v501 = vrcp.pop %v496
    %v502 = vrcp.pop %v499
    %v503 = vpack.c.bf16 %v488, %v486
    %v504 = vpack.c.bf16 %v490, %v490
    %v505 = vpack.c.bf16 %v296, %v294
    %v506 = vpack.c.bf16 %v299, %v299
    %v508 = vsel %vm471, %v503, 0
    %v511 = vsel %vm471, %v504, 0
    %v514 = vsel %vm124, %v506, 0
    %516 = vmatpush.bf16.msra.mxu0 0
    %517 = vmatpush.bf16.msra.mxu0 0
    %518 = vmatpush.bf16.msra.mxu0 0
    %519 = vmatpush.bf16.msra.mxu0 0
    %520 = vmatpush.bf16.msra.mxu0 0
    %521 = vmatpush.bf16.msra.mxu0 0
    %522 = vmatpush.bf16.msra.mxu0 %v514
    %523 = vmatpush.bf16.msra.mxu0 %v505
    %524 = vmatmul.bf16.gmra.mxu0 %v508
    %v525 = vpop.f32.mrf.mxu0
    %v526 = vadd.f32 0.0, %v525
    %v527 = vpop.f32.mrf.mxu0
    %v528 = vadd.f32 0.0, %v527
    %529 = vmatmul.bf16.gmra.mxu0 %v511
    %v530 = vpop.f32.mrf.mxu0
    %v531 = vadd.f32 0.0, %v530
    %v532 = vpop.f32.mrf.mxu0
    %533 = vdwg.mxu0
    %v534 = vmul.f32 %v526, %v500
    %v535 = vmul.f32 %v528, %v501
    %v536 = vmul.f32 %v531, %v502
    %539 = vrot.lane.b32.xlu0 %v424, 112
    %v540 = vpop.permute.xlu0 %539
    %541 = vrot.lane.b32.xlu0 %v425, 112
    %v542 = vpop.permute.xlu0 %541
    %543 = vrot.lane.b32.xlu0 %v426, 48
    %v544 = vpop.permute.xlu0 %543
    %545 = vrot.lane.b32.xlu0 %v427, 48
    %v546 = vpop.permute.xlu0 %545
    %v548 = vsel %vm434, %v540, 0
    %v551 = vsel %vm434, %v542, 0
    %v554 = vsel %vm434, %v544, 0
    %v557 = vsel %vm434, %v546, 0
    %559 = vmatpush.bf16.xpose.msra.mxu0 0
    %560 = vmatpush.bf16.xpose.msra.mxu0 0
    %561 = vmatpush.bf16.xpose.msra.mxu0 0
    %562 = vmatpush.bf16.xpose.msra.mxu0 0
    %563 = vmatpush.bf16.xpose.msra.mxu0 0
    %564 = vmatpush.bf16.xpose.msra.mxu0 0
    %565 = vmatpush.bf16.xpose.msra.mxu0 %v557
    %566 = vmatpush.bf16.xpose.msra.mxu0 %v554
    %567 = vmatmul.bf16.gmra.mxu0 %v548
    %v568 = vpop.f32.mrf.mxu0
    %v569 = vadd.f32 0.0, %v568
    %v570 = vpop.f32.mrf.mxu0
    %v571 = vadd.f32 0.0, %v570
    %572 = vmatmul.bf16.gmra.mxu0 %v551
    %v573 = vpop.f32.mrf.mxu0
    %v574 = vadd.f32 0.0, %v573
    %v575 = vpop.f32.mrf.mxu0
    %576 = vdwg.mxu0
    %v577 = vmul.f32 %v569, 0.25
    %v578 = vmul.f32 %v571, 0.25
    %v579 = vmul.f32 %v574, 0.25
    %v580 = vadd.f32 %v577, %v128
    %v581 = vadd.f32 %v578, %v129
    %v582 = vadd.f32 %v579, %v130
    %v583 = vsel %vm471, %v580, -inf
    %584 = vmax.xlane.f32.xlu0 %v583
    %v585 = vpop.xlane.xlu0 %584
    %v586 = vsel %vm471, %v581, -inf
    %587 = vmax.xlane.f32.xlu0 %v586
    %v588 = vpop.xlane.xlu0 %587
    %v589 = vsel %vm478, %v582, -inf
    %590 = vmax.xlane.f32.xlu0 %v589
    %v591 = vpop.xlane.xlu0 %590
    %v592 = vsub.f32 %v580, %v585
    %v593 = vsub.f32 %v581, %v588
    %v594 = vsub.f32 %v582, %v591
    %v595 = vmul.f32 %v592, 1.442695
    %v596 = vpow.pop %v595
    %v597 = vmul.f32 %v593, 1.442695
    %v598 = vpow.pop %v597
    %v599 = vmul.f32 %v594, 1.442695
    %v600 = vpow.pop %v599
    %v601 = vsel %vm471, %v596, 0.0
    %602 = vadd.xlane.f32.xlu0 %v601
    %v603 = vpop.xlane.xlu0 %602
    %v604 = vsel %vm471, %v598, 0.0
    %605 = vadd.xlane.f32.xlu0 %v604
    %v606 = vpop.xlane.xlu0 %605
    %v607 = vsel %vm478, %v600, 0.0
    %608 = vadd.xlane.f32.xlu0 %v607
    %v609 = vpop.xlane.xlu0 %608
    %v610 = vrcp.pop %v603
    %v611 = vrcp.pop %v606
    %v612 = vrcp.pop %v609
    %v613 = vpack.c.bf16 %v598, %v596
    %v614 = vpack.c.bf16 %v600, %v600
    %617 = vrot.lane.b32.xlu0 %v505, 112
    %v618 = vpop.permute.xlu0 %617
    %619 = vrot.lane.b32.xlu0 %v506, 112
    %v620 = vpop.permute.xlu0 %619
    %v623 = vsel %vm471, %v613, 0
    %v626 = vsel %vm471, %v614, 0
    %v629 = vsel %vm124, %v620, 0
    %631 = vmatpush.bf16.msra.mxu0 0
    %632 = vmatpush.bf16.msra.mxu0 0
    %633 = vmatpush.bf16.msra.mxu0 0
    %634 = vmatpush.bf16.msra.mxu0 0
    %635 = vmatpush.bf16.msra.mxu0 0
    %636 = vmatpush.bf16.msra.mxu0 0
    %637 = vmatpush.bf16.msra.mxu0 %v629
    %638 = vmatpush.bf16.msra.mxu0 %v618
    %639 = vmatmul.bf16.gmra.mxu0 %v623
    %v640 = vpop.f32.mrf.mxu0
    %v641 = vadd.f32 0.0, %v640
    %v642 = vpop.f32.mrf.mxu0
    %v643 = vadd.f32 0.0, %v642
    %644 = vmatmul.bf16.gmra.mxu0 %v626
    %v645 = vpop.f32.mrf.mxu0
    %v646 = vadd.f32 0.0, %v645
    %v647 = vpop.f32.mrf.mxu0
    %648 = vdwg.mxu0
    %v649 = vmul.f32 %v641, %v610
    %v650 = vmul.f32 %v643, %v611
    %v651 = vmul.f32 %v646, %v612
    %652 = vrot.lane.b32.xlu0 %v424, 96
    %v653 = vpop.permute.xlu0 %652
    %654 = vrot.lane.b32.xlu0 %v425, 96
    %v655 = vpop.permute.xlu0 %654
    %656 = vrot.lane.b32.xlu0 %v426, 32
    %v657 = vpop.permute.xlu0 %656
    %658 = vrot.lane.b32.xlu0 %v427, 32
    %v659 = vpop.permute.xlu0 %658
    %v661 = vsel %vm434, %v653, 0
    %v664 = vsel %vm434, %v655, 0
    %v667 = vsel %vm434, %v657, 0
    %v670 = vsel %vm434, %v659, 0
    %672 = vmatpush.bf16.xpose.msra.mxu0 0
    %673 = vmatpush.bf16.xpose.msra.mxu0 0
    %674 = vmatpush.bf16.xpose.msra.mxu0 0
    %675 = vmatpush.bf16.xpose.msra.mxu0 0
    %676 = vmatpush.bf16.xpose.msra.mxu0 0
    %677 = vmatpush.bf16.xpose.msra.mxu0 0
    %678 = vmatpush.bf16.xpose.msra.mxu0 %v670
    %679 = vmatpush.bf16.xpose.msra.mxu0 %v667
    %680 = vmatmul.bf16.gmra.mxu0 %v661
    %v681 = vpop.f32.mrf.mxu0
    %v682 = vadd.f32 0.0, %v681
    %v683 = vpop.f32.mrf.mxu0
    %v684 = vadd.f32 0.0, %v683
    %685 = vmatmul.bf16.gmra.mxu0 %v664
    %v686 = vpop.f32.mrf.mxu0
    %v687 = vadd.f32 0.0, %v686
    %v688 = vpop.f32.mrf.mxu0
    %689 = vdwg.mxu0
    %v690 = vmul.f32 %v682, 0.25
    %v691 = vmul.f32 %v684, 0.25
    %v692 = vmul.f32 %v687, 0.25
    %v693 = vadd.f32 %v690, %v128
    %v694 = vadd.f32 %v691, %v129
    %v695 = vadd.f32 %v692, %v130
    %v696 = vsel %vm471, %v693, -inf
    %697 = vmax.xlane.f32.xlu0 %v696
    %v698 = vpop.xlane.xlu0 %697
    %v699 = vsel %vm471, %v694, -inf
    %700 = vmax.xlane.f32.xlu0 %v699
    %v701 = vpop.xlane.xlu0 %700
    %v702 = vsel %vm478, %v695, -inf
    %703 = vmax.xlane.f32.xlu0 %v702
    %v704 = vpop.xlane.xlu0 %703
    %v705 = vsub.f32 %v693, %v698
    %v706 = vsub.f32 %v694, %v701
    %v707 = vsub.f32 %v695, %v704
    %v708 = vmul.f32 %v705, 1.442695
    %v709 = vpow.pop %v708
    %v710 = vmul.f32 %v706, 1.442695
    %v711 = vpow.pop %v710
    %v712 = vmul.f32 %v707, 1.442695
    %v713 = vpow.pop %v712
    %v714 = vsel %vm471, %v709, 0.0
    %715 = vadd.xlane.f32.xlu0 %v714
    %v716 = vpop.xlane.xlu0 %715
    %v717 = vsel %vm471, %v711, 0.0
    %718 = vadd.xlane.f32.xlu0 %v717
    %v719 = vpop.xlane.xlu0 %718
    %v720 = vsel %vm478, %v713, 0.0
    %721 = vadd.xlane.f32.xlu0 %v720
    %v722 = vpop.xlane.xlu0 %721
    %v723 = vrcp.pop %v716
    %v724 = vrcp.pop %v719
    %v725 = vrcp.pop %v722
    %v726 = vpack.c.bf16 %v711, %v709
    %v727 = vpack.c.bf16 %v713, %v713
    %728 = vrot.lane.b32.xlu0 %v505, 96
    %v729 = vpop.permute.xlu0 %728
    %730 = vrot.lane.b32.xlu0 %v506, 96
    %v731 = vpop.permute.xlu0 %730
    %v734 = vsel %vm471, %v726, 0
    %v737 = vsel %vm471, %v727, 0
    %v740 = vsel %vm124, %v731, 0
    %742 = vmatpush.bf16.msra.mxu0 0
    %743 = vmatpush.bf16.msra.mxu0 0
    %744 = vmatpush.bf16.msra.mxu0 0
    %745 = vmatpush.bf16.msra.mxu0 0
    %746 = vmatpush.bf16.msra.mxu0 0
    %747 = vmatpush.bf16.msra.mxu0 0
    %748 = vmatpush.bf16.msra.mxu0 %v740
    %749 = vmatpush.bf16.msra.mxu0 %v729
    %750 = vmatmul.bf16.gmra.mxu0 %v734
    %v751 = vpop.f32.mrf.mxu0
    %v752 = vadd.f32 0.0, %v751
    %v753 = vpop.f32.mrf.mxu0
    %v754 = vadd.f32 0.0, %v753
    %755 = vmatmul.bf16.gmra.mxu0 %v737
    %v756 = vpop.f32.mrf.mxu0
    %v757 = vadd.f32 0.0, %v756
    %v758 = vpop.f32.mrf.mxu0
    %759 = vdwg.mxu0
    %v760 = vmul.f32 %v752, %v723
    %v761 = vmul.f32 %v754, %v724
    %v762 = vmul.f32 %v757, %v725
    %763 = vrot.lane.b32.xlu0 %v424, 80
    %v764 = vpop.permute.xlu0 %763
    %765 = vrot.lane.b32.xlu0 %v425, 80
    %v766 = vpop.permute.xlu0 %765
    %767 = vrot.lane.b32.xlu0 %v426, 16
    %v768 = vpop.permute.xlu0 %767
    %769 = vrot.lane.b32.xlu0 %v427, 16
    %v770 = vpop.permute.xlu0 %769
    %v772 = vsel %vm434, %v764, 0
    %v775 = vsel %vm434, %v766, 0
    %v778 = vsel %vm434, %v768, 0
    %v781 = vsel %vm434, %v770, 0
    %783 = vmatpush.bf16.xpose.msra.mxu0 0
    %784 = vmatpush.bf16.xpose.msra.mxu0 0
    %785 = vmatpush.bf16.xpose.msra.mxu0 0
    %786 = vmatpush.bf16.xpose.msra.mxu0 0
    %787 = vmatpush.bf16.xpose.msra.mxu0 0
    %788 = vmatpush.bf16.xpose.msra.mxu0 0
    %789 = vmatpush.bf16.xpose.msra.mxu0 %v781
    %790 = vmatpush.bf16.xpose.msra.mxu0 %v778
    %791 = vmatmul.bf16.gmra.mxu0 %v772
    %v792 = vpop.f32.mrf.mxu0
    %v793 = vadd.f32 0.0, %v792
    %v794 = vpop.f32.mrf.mxu0
    %v795 = vadd.f32 0.0, %v794
    %796 = vmatmul.bf16.gmra.mxu0 %v775
    %v797 = vpop.f32.mrf.mxu0
    %v798 = vadd.f32 0.0, %v797
    %v799 = vpop.f32.mrf.mxu0
    %800 = vdwg.mxu0
    %v801 = vmul.f32 %v793, 0.25
    %v802 = vmul.f32 %v795, 0.25
    %v803 = vmul.f32 %v798, 0.25
    %v804 = vadd.f32 %v801, %v128
    %v805 = vadd.f32 %v802, %v129
    %v806 = vadd.f32 %v803, %v130
    %v807 = vsel %vm471, %v804, -inf
    %808 = vmax.xlane.f32.xlu0 %v807
    %v809 = vpop.xlane.xlu0 %808
    %v810 = vsel %vm471, %v805, -inf
    %811 = vmax.xlane.f32.xlu0 %v810
    %v812 = vpop.xlane.xlu0 %811
    %v813 = vsel %vm478, %v806, -inf
    %814 = vmax.xlane.f32.xlu0 %v813
    %v815 = vpop.xlane.xlu0 %814
    %v816 = vsub.f32 %v804, %v809
    %v817 = vsub.f32 %v805, %v812
    %v818 = vsub.f32 %v806, %v815
    %v819 = vmul.f32 %v816, 1.442695
    %v820 = vpow.pop %v819
    %v821 = vmul.f32 %v817, 1.442695
    %v822 = vpow.pop %v821
    %v823 = vmul.f32 %v818, 1.442695
    %v824 = vpow.pop %v823
    %v825 = vsel %vm471, %v820, 0.0
    %826 = vadd.xlane.f32.xlu0 %v825
    %v827 = vpop.xlane.xlu0 %826
    %v828 = vsel %vm471, %v822, 0.0
    %829 = vadd.xlane.f32.xlu0 %v828
    %v830 = vpop.xlane.xlu0 %829
    %v831 = vsel %vm478, %v824, 0.0
    %832 = vadd.xlane.f32.xlu0 %v831
    %v833 = vpop.xlane.xlu0 %832
    %v834 = vrcp.pop %v827
    %v835 = vrcp.pop %v830
    %v836 = vrcp.pop %v833
    %v837 = vpack.c.bf16 %v822, %v820
    %v838 = vpack.c.bf16 %v824, %v824
    %839 = vrot.lane.b32.xlu0 %v505, 80
    %v840 = vpop.permute.xlu0 %839
    %841 = vrot.lane.b32.xlu0 %v506, 80
    %v842 = vpop.permute.xlu0 %841
    %v845 = vsel %vm471, %v837, 0
    %v848 = vsel %vm471, %v838, 0
    %v851 = vsel %vm124, %v842, 0
    %853 = vmatpush.bf16.msra.mxu0 0
    %854 = vmatpush.bf16.msra.mxu0 0
    %855 = vmatpush.bf16.msra.mxu0 0
    %856 = vmatpush.bf16.msra.mxu0 0
    %857 = vmatpush.bf16.msra.mxu0 0
    %858 = vmatpush.bf16.msra.mxu0 0
    %859 = vmatpush.bf16.msra.mxu0 %v851
    %860 = vmatpush.bf16.msra.mxu0 %v840
    %861 = vmatmul.bf16.gmra.mxu0 %v845
    %v862 = vpop.f32.mrf.mxu0
    %v863 = vadd.f32 0.0, %v862
    %v864 = vpop.f32.mrf.mxu0
    %v865 = vadd.f32 0.0, %v864
    %866 = vmatmul.bf16.gmra.mxu0 %v848
    %v867 = vpop.f32.mrf.mxu0
    %v868 = vadd.f32 0.0, %v867
    %v869 = vpop.f32.mrf.mxu0
    %870 = vdwg.mxu0
    %v871 = vmul.f32 %v863, %v834
    %v872 = vmul.f32 %v865, %v835
    %v873 = vmul.f32 %v868, %v836
    %877 = vrot.lane.b32.xlu0 %v649, 16
    %v878 = vpop.permute.xlu0 %877
    %879 = vrot.lane.b32.xlu0 %v650, 16
    %v880 = vpop.permute.xlu0 %879
    %881 = vrot.lane.b32.xlu0 %v651, 16
    %v882 = vpop.permute.xlu0 %881
    %889 = vrot.lane.b32.xlu0 %v760, 32
    %v890 = vpop.permute.xlu0 %889
    %891 = vrot.lane.b32.xlu0 %v761, 32
    %v892 = vpop.permute.xlu0 %891
    %893 = vrot.lane.b32.xlu0 %v762, 32
    %v894 = vpop.permute.xlu0 %893
    %901 = vrot.lane.b32.xlu0 %v871, 48
    %v902 = vpop.permute.xlu0 %901
    %903 = vrot.lane.b32.xlu0 %v872, 48
    %v904 = vpop.permute.xlu0 %903
    %905 = vrot.lane.b32.xlu0 %v873, 48
    %v906 = vpop.permute.xlu0 %905
    %v910 = vsel %vm434, %v534, %v878
    %v911 = vsel %vm434, %v535, %v880
    %v912 = vsel %vm434, %v536, %v882
    %v913 = vsel %vm92, %v910, %v890
    %v914 = vsel %vm92, %v911, %v892
    %v915 = vsel %vm92, %v912, %v894
    %vm916 = vcmask 392192
    %v917 = vsel %vm916, %v913, %v902
    %v918 = vsel %vm916, %v914, %v904
    %v919 = vsel %vm916, %v915, %v906
    %v920 = vld [vmem:[%s13] sm:$0xf]
    %v921 = vld [vmem:[%s13 + $0x4] sm:$0xf]
    %v922 = vld [vmem:[%s13 + $0x8] sm:$0xf]
    %v923 = vld [vmem:[%s13 + $0xc] sm:$0xf]
    %v924 = vld [vmem:[%s13 + $0x10] sm:$0xf]
    %v925 = vld [vmem:[%s13 + $0x14] sm:$0xf]
    %v926 = vld [vmem:[%s13 + $0x18] sm:$0xf]
    %v927 = vld [vmem:[%s13 + $0x1c] sm:$0xf]
    %v928 = vpack.c.bf16 %v918, %v917
    %v929 = vpack.c.bf16 %v919, %v919
    %v938 = vunpack.c.l.b16 %v920
    %v939 = vunpack.c.l.b16 %v921
    %v940 = vunpack.c.l.b16 %v922
    %v941 = vunpack.c.l.b16 %v923
    %v942 = vunpack.c.l.b16 %v924
    %v943 = vunpack.c.l.b16 %v925
    %v944 = vunpack.c.l.b16 %v926
    %v945 = vunpack.c.l.b16 %v927
    %v946 = vpack.c.b16 %v939, %v938
    %v947 = vpack.c.b16 %v941, %v940
    %v948 = vpack.c.b16 %v943, %v942
    %v949 = vpack.c.b16 %v945, %v944
    %v955 = vsel %vm149, %v928, 0
    %v958 = vsel %vm149, %v929, 0
    %960 = vmatpush.bf16.msra.mxu0 0
    %961 = vmatpush.bf16.msra.mxu0 0
    %962 = vmatpush.bf16.msra.mxu0 0
    %963 = vmatpush.bf16.msra.mxu0 0
    %964 = vmatpush.bf16.msra.mxu0 %v949
    %965 = vmatpush.bf16.msra.mxu0 %v948
    %966 = vmatpush.bf16.msra.mxu0 %v947
    %967 = vmatpush.bf16.msra.mxu0 %v946
    %968 = vmatmul.bf16.gmra.mxu0 %v955
    %v969 = vpop.f32.mrf.mxu0
    %v970 = vadd.f32 0.0, %v969
    %v971 = vpop.f32.mrf.mxu0
    %v972 = vadd.f32 0.0, %v971
    %973 = vmatmul.bf16.gmra.mxu0 %v958
    %v974 = vpop.f32.mrf.mxu0
    %v975 = vadd.f32 0.0, %v974
    %v976 = vpop.f32.mrf.mxu0
    %977 = vdwg.mxu0
    %v978 = vadd.f32 %v123, %v970
    %v979 = vadd.f32 %v127, %v972
    %v980 = vadd.f32 %v110, %v975
    %v981 = vld [vmem:[%s11] sm:$0x1]
    %v982 = vmul.f32 %v978, %v978
    %v983 = vmul.f32 %v979, %v979
    %v984 = vmul.f32 %v980, %v980
    %v985 = vsel %vm149, %v982, 0.0
    %986 = vadd.xlane.f32.xlu0 %v985
    %v987 = vpop.xlane.xlu0 %986
    %v988 = vsel %vm149, %v983, 0.0
    %989 = vadd.xlane.f32.xlu0 %v988
    %v990 = vpop.xlane.xlu0 %989
    %v991 = vsel %vm156, %v984, 0.0
    %992 = vadd.xlane.f32.xlu0 %v991
    %v993 = vpop.xlane.xlu0 %992
    %v994 = vmul.f32 %v987, %v166
    %v995 = vmul.f32 %v990, %v166
    %v996 = vmul.f32 %v993, %v166
    %v997 = vadd.f32 %v994, 1e-06
    %v998 = vadd.f32 %v995, 1e-06
    %v999 = vadd.f32 %v996, 1e-06
    %v1000 = vrsqrt.pop %v997
    %v1001 = vmul.f32 %v1000, %v997
    %v1002 = vmul.f32 %v1001, %v1000
    %v1003 = vmul.f32 0.5, %v1002
    %v1004 = vsub.f32 1.5, %v1003
    %v1005 = vmul.f32 %v1000, %v1004
    %vm1006 = vweird.f32 %v997
    %vm1007 = vweird.f32 %v1000
    %vm1008 = vmor %vm1006, %vm1007
    %v1009 = vsel %vm1008, %v1000, %v1005
    %v1010 = vrsqrt.pop %v998
    %v1011 = vmul.f32 %v1010, %v998
    %v1012 = vmul.f32 %v1011, %v1010
    %v1013 = vmul.f32 0.5, %v1012
    %v1014 = vsub.f32 1.5, %v1013
    %v1015 = vmul.f32 %v1010, %v1014
    %vm1016 = vweird.f32 %v998
    %vm1017 = vweird.f32 %v1010
    %vm1018 = vmor %vm1016, %vm1017
    %v1019 = vsel %vm1018, %v1010, %v1015
    %v1020 = vrsqrt.pop %v999
    %v1021 = vmul.f32 %v1020, %v999
    %v1022 = vmul.f32 %v1021, %v1020
    %v1023 = vmul.f32 0.5, %v1022
    %v1024 = vsub.f32 1.5, %v1023
    %v1025 = vmul.f32 %v1020, %v1024
    %vm1026 = vweird.f32 %v999
    %vm1027 = vweird.f32 %v1020
    %vm1028 = vmor %vm1026, %vm1027
    %v1029 = vsel %vm1028, %v1020, %v1025
    %v1030 = vmul.f32 %v978, %v1009
    %v1031 = vmul.f32 %v979, %v1019
    %v1032 = vmul.f32 %v980, %v1029
    %v1033 = vperm.slane %v981, 0
    %v1034 = vmul.f32 %v1030, %v1033
    %v1035 = vmul.f32 %v1031, %v1033
    %v1036 = vmul.f32 %v1032, %v1033
    %v1037 = vld [vmem:[%s14] sm:$0xff]
    %v1038 = vld [vmem:[%s14 + $0x8] sm:$0xff]
    %v1039 = vld [vmem:[%s14 + $0x10] sm:$0xff]
    %v1040 = vld [vmem:[%s14 + $0x18] sm:$0xff]
    %v1041 = vld [vmem:[%s14 + $0x20] sm:$0xff]
    %v1042 = vld [vmem:[%s14 + $0x28] sm:$0xff]
    %v1043 = vld [vmem:[%s14 + $0x30] sm:$0xff]
    %v1044 = vld [vmem:[%s14 + $0x38] sm:$0xff]
    %v1045 = vpack.c.bf16 %v1035, %v1034
    %v1046 = vpack.c.bf16 %v1036, %v1036
    %v1055 = vunpack.c.l.b16 %v1037
    %v1056 = vunpack.c.h.b16 %v1037
    %v1057 = vunpack.c.l.b16 %v1038
    %v1058 = vunpack.c.h.b16 %v1038
    %v1059 = vunpack.c.l.b16 %v1039
    %v1060 = vunpack.c.h.b16 %v1039
    %v1061 = vunpack.c.l.b16 %v1040
    %v1062 = vunpack.c.h.b16 %v1040
    %v1063 = vunpack.c.l.b16 %v1041
    %v1064 = vunpack.c.h.b16 %v1041
    %v1065 = vunpack.c.l.b16 %v1042
    %v1066 = vunpack.c.h.b16 %v1042
    %v1067 = vunpack.c.l.b16 %v1043
    %v1068 = vunpack.c.h.b16 %v1043
    %v1069 = vunpack.c.l.b16 %v1044
    %v1070 = vunpack.c.h.b16 %v1044
    %v1071 = vpack.c.b16 %v1057, %v1055
    %v1072 = vpack.c.b16 %v1058, %v1056
    %v1073 = vpack.c.b16 %v1061, %v1059
    %v1074 = vpack.c.b16 %v1062, %v1060
    %v1075 = vpack.c.b16 %v1065, %v1063
    %v1076 = vpack.c.b16 %v1066, %v1064
    %v1077 = vpack.c.b16 %v1069, %v1067
    %v1078 = vpack.c.b16 %v1070, %v1068
    %v1088 = vsel %vm149, %v1045, 0
    %v1091 = vsel %vm149, %v1046, 0
    %1093 = vmatpush.bf16.msra.mxu0 0
    %1094 = vmatpush.bf16.msra.mxu0 0
    %1095 = vmatpush.bf16.msra.mxu0 0
    %1096 = vmatpush.bf16.msra.mxu0 0
    %1097 = vmatpush.bf16.msra.mxu0 %v1077
    %1098 = vmatpush.bf16.msra.mxu0 %v1075
    %1099 = vmatpush.bf16.msra.mxu0 %v1073
    %1100 = vmatpush.bf16.msra.mxu0 %v1071
    %1101 = vmatmul.bf16.gmra.mxu0 %v1088
    %v1102 = vpop.f32.mrf.mxu0
    %v1103 = vadd.f32 0.0, %v1102
    %v1104 = vpop.f32.mrf.mxu0
    %v1105 = vadd.f32 0.0, %v1104
    %1106 = vmatmul.bf16.gmra.mxu0 %v1091
    %v1107 = vpop.f32.mrf.mxu0
    %v1108 = vadd.f32 0.0, %v1107
    %v1109 = vpop.f32.mrf.mxu0
    %1110 = vdwg.mxu0
    %1111 = vmatpush.bf16.msra.mxu0 0
    %1112 = vmatpush.bf16.msra.mxu0 0
    %1113 = vmatpush.bf16.msra.mxu0 0
    %1114 = vmatpush.bf16.msra.mxu0 0
    %1115 = vmatpush.bf16.msra.mxu0 %v1078
    %1116 = vmatpush.bf16.msra.mxu0 %v1076
    %1117 = vmatpush.bf16.msra.mxu0 %v1074
    %1118 = vmatpush.bf16.msra.mxu0 %v1072
    %1119 = vmatmul.bf16.gmra.mxu0 %v1088
    %v1120 = vpop.f32.mrf.mxu0
    %v1121 = vadd.f32 0.0, %v1120
    %v1122 = vpop.f32.mrf.mxu0
    %v1123 = vadd.f32 0.0, %v1122
    %1124 = vmatmul.bf16.gmra.mxu0 %v1091
    %v1125 = vpop.f32.mrf.mxu0
    %v1126 = vadd.f32 0.0, %v1125
    %v1127 = vpop.f32.mrf.mxu0
    %1128 = vdwg.mxu0
    %v1129 = vxor.u32 %v1103, 2147483648
    %v1130 = vxor.u32 %v1105, 2147483648
    %v1131 = vxor.u32 %v1108, 2147483648
    %v1132 = vmul.f32 %v1129, 1.442695
    %v1133 = vpow.pop %v1132
    %v1134 = vmul.f32 %v1130, 1.442695
    %v1135 = vpow.pop %v1134
    %v1136 = vmul.f32 %v1131, 1.442695
    %v1137 = vpow.pop %v1136
    %v1138 = vadd.f32 %v1133, 1.0
    %v1139 = vadd.f32 %v1135, 1.0
    %v1140 = vadd.f32 %v1137, 1.0
    %v1141 = vrcp.pop %v1138
    %v1142 = vmul.f32 %v1138, %v1141
    %v1143 = vsub.f32 1.0, %v1142
    %v1144 = vmul.f32 %v1141, %v1143
    %v1145 = vadd.f32 %v1141, %v1144
    %vm1146 = vweird.f32 %v1138
    %vm1147 = vweird.f32 %v1141
    %vm1148 = vmor %vm1146, %vm1147
    %v1149 = vsel %vm1148, %v1141, %v1145
    %v1150 = vand.u32 2147483647, %v1138
    %vm1151 = vcmp.eq.f32.partialorder %v1150, 8.507059e+37
    %v1152 = vand.u32 %v1138, 2147483648
    %v1153 = vor.u32 1.1754944e-38, %v1152
    %v1154 = vsel %vm1151, %v1153, %v1149
    %v1155 = vmul.f32 1.0, %v1154
    %v1156 = vrcp.pop %v1139
    %v1157 = vmul.f32 %v1139, %v1156
    %v1158 = vsub.f32 1.0, %v1157
    %v1159 = vmul.f32 %v1156, %v1158
    %v1160 = vadd.f32 %v1156, %v1159
    %vm1161 = vweird.f32 %v1139
    %vm1162 = vweird.f32 %v1156
    %vm1163 = vmor %vm1161, %vm1162
    %v1164 = vsel %vm1163, %v1156, %v1160
    %v1165 = vand.u32 2147483647, %v1139
    %vm1166 = vcmp.eq.f32.partialorder %v1165, 8.507059e+37
    %v1167 = vand.u32 %v1139, 2147483648
    %v1168 = vor.u32 1.1754944e-38, %v1167
    %v1169 = vsel %vm1166, %v1168, %v1164
    %v1170 = vmul.f32 1.0, %v1169
    %v1171 = vrcp.pop %v1140
    %v1172 = vmul.f32 %v1140, %v1171
    %v1173 = vsub.f32 1.0, %v1172
    %v1174 = vmul.f32 %v1171, %v1173
    %v1175 = vadd.f32 %v1171, %v1174
    %vm1176 = vweird.f32 %v1140
    %vm1177 = vweird.f32 %v1171
    %vm1178 = vmor %vm1176, %vm1177
    %v1179 = vsel %vm1178, %v1171, %v1175
    %v1180 = vand.u32 2147483647, %v1140
    %vm1181 = vcmp.eq.f32.partialorder %v1180, 8.507059e+37
    %v1182 = vand.u32 %v1140, 2147483648
    %v1183 = vor.u32 1.1754944e-38, %v1182
    %v1184 = vsel %vm1181, %v1183, %v1179
    %v1185 = vmul.f32 1.0, %v1184
    %v1186 = vmul.f32 %v1103, %v1155
    %v1187 = vmul.f32 %v1105, %v1170
    %v1188 = vmul.f32 %v1108, %v1185
    %v1189 = vmul.f32 %v1186, %v1121
    %v1190 = vmul.f32 %v1187, %v1123
    %v1191 = vmul.f32 %v1188, %v1126
    %v1192 = vld [vmem:[%s15] sm:$0xf]
    %v1193 = vld [vmem:[%s15 + $0x4] sm:$0xf]
    %v1194 = vld [vmem:[%s15 + $0x8] sm:$0xf]
    %v1195 = vld [vmem:[%s15 + $0xc] sm:$0xf]
    %v1196 = vld [vmem:[%s15 + $0x10] sm:$0xf]
    %v1197 = vld [vmem:[%s15 + $0x14] sm:$0xf]
    %v1198 = vld [vmem:[%s15 + $0x18] sm:$0xf]
    %v1199 = vld [vmem:[%s15 + $0x1c] sm:$0xf]
    %v1200 = vld [vmem:[%s15 + $0x20] sm:$0xf]
    %v1201 = vld [vmem:[%s15 + $0x24] sm:$0xf]
    %v1202 = vld [vmem:[%s15 + $0x28] sm:$0xf]
    %v1203 = vld [vmem:[%s15 + $0x2c] sm:$0xf]
    %v1204 = vld [vmem:[%s15 + $0x30] sm:$0xf]
    %v1205 = vld [vmem:[%s15 + $0x34] sm:$0xf]
    %v1206 = vld [vmem:[%s15 + $0x38] sm:$0xf]
    %v1207 = vld [vmem:[%s15 + $0x3c] sm:$0xf]
    %v1208 = vpack.c.bf16 %v1190, %v1189
    %v1209 = vpack.c.bf16 %v1191, %v1191
    %v1226 = vunpack.c.l.b16 %v1192
    %v1227 = vunpack.c.l.b16 %v1193
    %v1228 = vunpack.c.l.b16 %v1194
    %v1229 = vunpack.c.l.b16 %v1195
    %v1230 = vunpack.c.l.b16 %v1196
    %v1231 = vunpack.c.l.b16 %v1197
    %v1232 = vunpack.c.l.b16 %v1198
    %v1233 = vunpack.c.l.b16 %v1199
    %v1234 = vunpack.c.l.b16 %v1200
    %v1235 = vunpack.c.l.b16 %v1201
    %v1236 = vunpack.c.l.b16 %v1202
    %v1237 = vunpack.c.l.b16 %v1203
    %v1238 = vunpack.c.l.b16 %v1204
    %v1239 = vunpack.c.l.b16 %v1205
    %v1240 = vunpack.c.l.b16 %v1206
    %v1241 = vunpack.c.l.b16 %v1207
    %v1242 = vpack.c.b16 %v1227, %v1226
    %v1243 = vpack.c.b16 %v1229, %v1228
    %v1244 = vpack.c.b16 %v1231, %v1230
    %v1245 = vpack.c.b16 %v1233, %v1232
    %v1246 = vpack.c.b16 %v1235, %v1234
    %v1247 = vpack.c.b16 %v1237, %v1236
    %v1248 = vpack.c.b16 %v1239, %v1238
    %v1249 = vpack.c.b16 %v1241, %v1240
    %1258 = vmatpush.bf16.msra.mxu0 %v1249
    %1259 = vmatpush.bf16.msra.mxu0 %v1248
    %1260 = vmatpush.bf16.msra.mxu0 %v1247
    %1261 = vmatpush.bf16.msra.mxu0 %v1246
    %1262 = vmatpush.bf16.msra.mxu0 %v1245
    %1263 = vmatpush.bf16.msra.mxu0 %v1244
    %1264 = vmatpush.bf16.msra.mxu0 %v1243
    %1265 = vmatpush.bf16.msra.mxu0 %v1242
    %1266 = vmatmul.bf16.gmra.mxu0 %v1208
    %v1267 = vpop.f32.mrf.mxu0
    %v1268 = vadd.f32 0.0, %v1267
    %v1269 = vpop.f32.mrf.mxu0
    %v1270 = vadd.f32 0.0, %v1269
    %1271 = vmatmul.bf16.gmra.mxu0 %v1209
    %v1272 = vpop.f32.mrf.mxu0
    %v1273 = vadd.f32 0.0, %v1272
    %v1274 = vpop.f32.mrf.mxu0
    %1275 = vdwg.mxu0
    %v1276 = vadd.f32 %v978, %v1268
    %v1277 = vadd.f32 %v979, %v1270
    %v1278 = vadd.f32 %v980, %v1273
    %v1279 = vld [vmem:[%s10 + $0x1] sm:$0x1]
    %v1280 = vmul.f32 %v1276, %v1276
    %v1281 = vmul.f32 %v1277, %v1277
    %v1282 = vmul.f32 %v1278, %v1278
    %v1283 = vsel %vm149, %v1280, 0.0
    %1284 = vadd.xlane.f32.xlu0 %v1283
    %v1285 = vpop.xlane.xlu0 %1284
    %v1286 = vsel %vm149, %v1281, 0.0
    %1287 = vadd.xlane.f32.xlu0 %v1286
    %v1288 = vpop.xlane.xlu0 %1287
    %v1289 = vsel %vm156, %v1282, 0.0
    %1290 = vadd.xlane.f32.xlu0 %v1289
    %v1291 = vpop.xlane.xlu0 %1290
    %v1292 = vmul.f32 %v1285, %v166
    %v1293 = vmul.f32 %v1288, %v166
    %v1294 = vmul.f32 %v1291, %v166
    %v1295 = vadd.f32 %v1292, 1e-06
    %v1296 = vadd.f32 %v1293, 1e-06
    %v1297 = vadd.f32 %v1294, 1e-06
    %v1298 = vrsqrt.pop %v1295
    %v1299 = vmul.f32 %v1298, %v1295
    %v1300 = vmul.f32 %v1299, %v1298
    %v1301 = vmul.f32 0.5, %v1300
    %v1302 = vsub.f32 1.5, %v1301
    %v1303 = vmul.f32 %v1298, %v1302
    %vm1304 = vweird.f32 %v1295
    %vm1305 = vweird.f32 %v1298
    %vm1306 = vmor %vm1304, %vm1305
    %v1307 = vsel %vm1306, %v1298, %v1303
    %v1308 = vrsqrt.pop %v1296
    %v1309 = vmul.f32 %v1308, %v1296
    %v1310 = vmul.f32 %v1309, %v1308
    %v1311 = vmul.f32 0.5, %v1310
    %v1312 = vsub.f32 1.5, %v1311
    %v1313 = vmul.f32 %v1308, %v1312
    %vm1314 = vweird.f32 %v1296
    %vm1315 = vweird.f32 %v1308
    %vm1316 = vmor %vm1314, %vm1315
    %v1317 = vsel %vm1316, %v1308, %v1313
    %v1318 = vrsqrt.pop %v1297
    %v1319 = vmul.f32 %v1318, %v1297
    %v1320 = vmul.f32 %v1319, %v1318
    %v1321 = vmul.f32 0.5, %v1320
    %v1322 = vsub.f32 1.5, %v1321
    %v1323 = vmul.f32 %v1318, %v1322
    %vm1324 = vweird.f32 %v1297
    %vm1325 = vweird.f32 %v1318
    %vm1326 = vmor %vm1324, %vm1325
    %v1327 = vsel %vm1326, %v1318, %v1323
    %v1328 = vmul.f32 %v1276, %v1307
    %v1329 = vmul.f32 %v1277, %v1317
    %v1330 = vmul.f32 %v1278, %v1327
    %v1331 = vperm.slane %v1279, 0
    %v1332 = vmul.f32 %v1328, %v1331
    %v1333 = vmul.f32 %v1329, %v1331
    %v1334 = vmul.f32 %v1330, %v1331
    %s1335 = scalar_lea.vmem %s12, 64
    %v1336 = vld [vmem:[%s1335] sm:$0xff]
    %v1337 = vld [vmem:[%s1335 + $0x8] sm:$0xff]
    %v1338 = vld [vmem:[%s1335 + $0x10] sm:$0xff]
    %v1339 = vld [vmem:[%s1335 + $0x18] sm:$0xff]
    %v1340 = vld [vmem:[%s1335 + $0x20] sm:$0xff]
    %v1341 = vld [vmem:[%s1335 + $0x28] sm:$0xff]
    %v1342 = vld [vmem:[%s1335 + $0x30] sm:$0xff]
    %v1343 = vld [vmem:[%s1335 + $0x38] sm:$0xff]
    %v1344 = vpack.c.bf16 %v1333, %v1332
    %v1345 = vpack.c.bf16 %v1334, %v1334
    %v1354 = vunpack.c.l.b16 %v1336
    %v1355 = vunpack.c.h.b16 %v1336
    %v1356 = vunpack.c.l.b16 %v1337
    %v1357 = vunpack.c.h.b16 %v1337
    %v1358 = vunpack.c.l.b16 %v1338
    %v1359 = vunpack.c.h.b16 %v1338
    %v1360 = vunpack.c.l.b16 %v1339
    %v1361 = vunpack.c.h.b16 %v1339
    %v1362 = vunpack.c.l.b16 %v1340
    %v1363 = vunpack.c.h.b16 %v1340
    %v1364 = vunpack.c.l.b16 %v1341
    %v1365 = vunpack.c.h.b16 %v1341
    %v1366 = vunpack.c.l.b16 %v1342
    %v1367 = vunpack.c.h.b16 %v1342
    %v1368 = vunpack.c.l.b16 %v1343
    %v1369 = vunpack.c.h.b16 %v1343
    %v1370 = vpack.c.b16 %v1356, %v1354
    %v1371 = vpack.c.b16 %v1357, %v1355
    %v1372 = vpack.c.b16 %v1360, %v1358
    %v1373 = vpack.c.b16 %v1361, %v1359
    %v1374 = vpack.c.b16 %v1364, %v1362
    %v1375 = vpack.c.b16 %v1365, %v1363
    %v1376 = vpack.c.b16 %v1368, %v1366
    %v1377 = vpack.c.b16 %v1369, %v1367
    %v1387 = vsel %vm149, %v1344, 0
    %v1390 = vsel %vm149, %v1345, 0
    %1392 = vmatpush.bf16.msra.mxu0 0
    %1393 = vmatpush.bf16.msra.mxu0 0
    %1394 = vmatpush.bf16.msra.mxu0 0
    %1395 = vmatpush.bf16.msra.mxu0 0
    %1396 = vmatpush.bf16.msra.mxu0 %v1376
    %1397 = vmatpush.bf16.msra.mxu0 %v1374
    %1398 = vmatpush.bf16.msra.mxu0 %v1372
    %1399 = vmatpush.bf16.msra.mxu0 %v1370
    %1400 = vmatmul.bf16.gmra.mxu0 %v1387
    %v1401 = vpop.f32.mrf.mxu0
    %v1402 = vadd.f32 0.0, %v1401
    %v1403 = vpop.f32.mrf.mxu0
    %v1404 = vadd.f32 0.0, %v1403
    %1405 = vmatmul.bf16.gmra.mxu0 %v1390
    %v1406 = vpop.f32.mrf.mxu0
    %v1407 = vadd.f32 0.0, %v1406
    %v1408 = vpop.f32.mrf.mxu0
    %1409 = vdwg.mxu0
    %1410 = vmatpush.bf16.msra.mxu0 0
    %1411 = vmatpush.bf16.msra.mxu0 0
    %1412 = vmatpush.bf16.msra.mxu0 0
    %1413 = vmatpush.bf16.msra.mxu0 0
    %1414 = vmatpush.bf16.msra.mxu0 %v1377
    %1415 = vmatpush.bf16.msra.mxu0 %v1375
    %1416 = vmatpush.bf16.msra.mxu0 %v1373
    %1417 = vmatpush.bf16.msra.mxu0 %v1371
    %1418 = vmatmul.bf16.gmra.mxu0 %v1387
    %v1419 = vpop.f32.mrf.mxu0
    %v1420 = vadd.f32 0.0, %v1419
    %v1421 = vpop.f32.mrf.mxu0
    %v1422 = vadd.f32 0.0, %v1421
    %1423 = vmatmul.bf16.gmra.mxu0 %v1390
    %v1424 = vpop.f32.mrf.mxu0
    %v1425 = vadd.f32 0.0, %v1424
    %v1426 = vpop.f32.mrf.mxu0
    %1427 = vdwg.mxu0
    %v1428 = vmul.f32 %v1402, %v131
    %v1429 = vmul.f32 %v1404, %v132
    %v1430 = vmul.f32 %v1407, %v133
    %v1431 = vpack.c.bf16 %v1404, %v1402
    %v1432 = vpack.c.bf16 %v1407, %v1407
    %v1434 = vsel %vm149, %v1431, 0
    %v1437 = vsel %vm149, %v1432, 0
    %1439 = vmatpush.bf16.msra.mxu0 0
    %1440 = vmatpush.bf16.msra.mxu0 0
    %1441 = vmatpush.bf16.msra.mxu0 0
    %1442 = vmatpush.bf16.msra.mxu0 0
    %1443 = vmatpush.bf16.msra.mxu0 %v326
    %1444 = vmatpush.bf16.msra.mxu0 %v325
    %1445 = vmatpush.bf16.msra.mxu0 %v324
    %1446 = vmatpush.bf16.msra.mxu0 %v323
    %1447 = vmatmul.bf16.gmra.mxu0 %v1434
    %v1448 = vpop.f32.mrf.mxu0
    %v1449 = vadd.f32 0.0, %v1448
    %v1450 = vpop.f32.mrf.mxu0
    %v1451 = vadd.f32 0.0, %v1450
    %1452 = vmatmul.bf16.gmra.mxu0 %v1437
    %v1453 = vpop.f32.mrf.mxu0
    %v1454 = vadd.f32 0.0, %v1453
    %v1455 = vpop.f32.mrf.mxu0
    %1456 = vdwg.mxu0
    %v1457 = vmul.f32 %v1449, %v134
    %v1458 = vmul.f32 %v1451, %v135
    %v1459 = vmul.f32 %v1454, %v136
    %v1460 = vadd.f32 %v1428, %v1457
    %v1461 = vadd.f32 %v1429, %v1458
    %v1462 = vadd.f32 %v1430, %v1459
    %v1463 = vmul.f32 %v1402, %v365
    %v1464 = vmul.f32 %v1404, %v367
    %v1465 = vmul.f32 %v1407, %v369
    %1468 = vrot.lane.b32.xlu0 %v1431, 64
    %v1469 = vpop.permute.xlu0 %1468
    %1470 = vrot.lane.b32.xlu0 %v1432, 64
    %v1471 = vpop.permute.xlu0 %1470
    %v1473 = vsel %vm149, %v1469, 0
    %v1476 = vsel %vm149, %v1471, 0
    %1478 = vmatpush.bf16.msra.mxu0 0
    %1479 = vmatpush.bf16.msra.mxu0 0
    %1480 = vmatpush.bf16.msra.mxu0 0
    %1481 = vmatpush.bf16.msra.mxu0 0
    %1482 = vmatpush.bf16.msra.mxu0 %v326
    %1483 = vmatpush.bf16.msra.mxu0 %v325
    %1484 = vmatpush.bf16.msra.mxu0 %v324
    %1485 = vmatpush.bf16.msra.mxu0 %v323
    %1486 = vmatmul.bf16.gmra.mxu0 %v1473
    %v1487 = vpop.f32.mrf.mxu0
    %v1488 = vadd.f32 0.0, %v1487
    %v1489 = vpop.f32.mrf.mxu0
    %v1490 = vadd.f32 0.0, %v1489
    %1491 = vmatmul.bf16.gmra.mxu0 %v1476
    %v1492 = vpop.f32.mrf.mxu0
    %v1493 = vadd.f32 0.0, %v1492
    %v1494 = vpop.f32.mrf.mxu0
    %1495 = vdwg.mxu0
    %v1496 = vmul.f32 %v1488, %v134
    %v1497 = vmul.f32 %v1490, %v135
    %v1498 = vmul.f32 %v1493, %v136
    %1502 = vrot.lane.b32.xlu0 %v1496, 64
    %v1503 = vpop.permute.xlu0 %1502
    %1504 = vrot.lane.b32.xlu0 %v1497, 64
    %v1505 = vpop.permute.xlu0 %1504
    %1506 = vrot.lane.b32.xlu0 %v1498, 64
    %v1507 = vpop.permute.xlu0 %1506
    %v1511 = vadd.f32 %v1463, %v1503
    %v1512 = vadd.f32 %v1464, %v1505
    %v1513 = vadd.f32 %v1465, %v1507
    %v1514 = vpack.c.bf16 %v1461, %v1460
    %v1515 = vpack.c.bf16 %v1462, %v1462
    %v1516 = vpack.c.bf16 %v1512, %v1511
    %v1517 = vpack.c.bf16 %v1513, %v1513
    %1520 = vrot.lane.b32.xlu0 %v1516, 64
    %v1521 = vpop.permute.xlu0 %1520
    %1522 = vrot.lane.b32.xlu0 %v1517, 64
    %v1523 = vpop.permute.xlu0 %1522
    %v1525 = vsel %vm434, %v1514, 0
    %v1528 = vsel %vm434, %v1515, 0
    %v1531 = vsel %vm434, %v1521, 0
    %v1534 = vsel %vm434, %v1523, 0
    %1536 = vmatpush.bf16.xpose.msra.mxu0 0
    %1537 = vmatpush.bf16.xpose.msra.mxu0 0
    %1538 = vmatpush.bf16.xpose.msra.mxu0 0
    %1539 = vmatpush.bf16.xpose.msra.mxu0 0
    %1540 = vmatpush.bf16.xpose.msra.mxu0 0
    %1541 = vmatpush.bf16.xpose.msra.mxu0 0
    %1542 = vmatpush.bf16.xpose.msra.mxu0 %v1534
    %1543 = vmatpush.bf16.xpose.msra.mxu0 %v1531
    %1544 = vmatmul.bf16.gmra.mxu0 %v1525
    %v1545 = vpop.f32.mrf.mxu0
    %v1546 = vadd.f32 0.0, %v1545
    %v1547 = vpop.f32.mrf.mxu0
    %v1548 = vadd.f32 0.0, %v1547
    %1549 = vmatmul.bf16.gmra.mxu0 %v1528
    %v1550 = vpop.f32.mrf.mxu0
    %v1551 = vadd.f32 0.0, %v1550
    %v1552 = vpop.f32.mrf.mxu0
    %1553 = vdwg.mxu0
    %v1554 = vmul.f32 %v1546, 0.25
    %v1555 = vmul.f32 %v1548, 0.25
    %v1556 = vmul.f32 %v1551, 0.25
    %v1557 = vadd.f32 %v1554, %v128
    %v1558 = vadd.f32 %v1555, %v129
    %v1559 = vadd.f32 %v1556, %v130
    %v1560 = vsel %vm471, %v1557, -inf
    %1561 = vmax.xlane.f32.xlu0 %v1560
    %v1562 = vpop.xlane.xlu0 %1561
    %v1563 = vsel %vm471, %v1558, -inf
    %1564 = vmax.xlane.f32.xlu0 %v1563
    %v1565 = vpop.xlane.xlu0 %1564
    %v1566 = vsel %vm478, %v1559, -inf
    %1567 = vmax.xlane.f32.xlu0 %v1566
    %v1568 = vpop.xlane.xlu0 %1567
    %v1569 = vsub.f32 %v1557, %v1562
    %v1570 = vsub.f32 %v1558, %v1565
    %v1571 = vsub.f32 %v1559, %v1568
    %v1572 = vmul.f32 %v1569, 1.442695
    %v1573 = vpow.pop %v1572
    %v1574 = vmul.f32 %v1570, 1.442695
    %v1575 = vpow.pop %v1574
    %v1576 = vmul.f32 %v1571, 1.442695
    %v1577 = vpow.pop %v1576
    %v1578 = vsel %vm471, %v1573, 0.0
    %1579 = vadd.xlane.f32.xlu0 %v1578
    %v1580 = vpop.xlane.xlu0 %1579
    %v1581 = vsel %vm471, %v1575, 0.0
    %1582 = vadd.xlane.f32.xlu0 %v1581
    %v1583 = vpop.xlane.xlu0 %1582
    %v1584 = vsel %vm478, %v1577, 0.0
    %1585 = vadd.xlane.f32.xlu0 %v1584
    %v1586 = vpop.xlane.xlu0 %1585
    %v1587 = vrcp.pop %v1580
    %v1588 = vrcp.pop %v1583
    %v1589 = vrcp.pop %v1586
    %v1590 = vpack.c.bf16 %v1575, %v1573
    %v1591 = vpack.c.bf16 %v1577, %v1577
    %v1592 = vpack.c.bf16 %v1422, %v1420
    %v1593 = vpack.c.bf16 %v1425, %v1425
    %v1595 = vsel %vm471, %v1590, 0
    %v1598 = vsel %vm471, %v1591, 0
    %v1601 = vsel %vm124, %v1593, 0
    %1603 = vmatpush.bf16.msra.mxu0 0
    %1604 = vmatpush.bf16.msra.mxu0 0
    %1605 = vmatpush.bf16.msra.mxu0 0
    %1606 = vmatpush.bf16.msra.mxu0 0
    %1607 = vmatpush.bf16.msra.mxu0 0
    %1608 = vmatpush.bf16.msra.mxu0 0
    %1609 = vmatpush.bf16.msra.mxu0 %v1601
    %1610 = vmatpush.bf16.msra.mxu0 %v1592
    %1611 = vmatmul.bf16.gmra.mxu0 %v1595
    %v1612 = vpop.f32.mrf.mxu0
    %v1613 = vadd.f32 0.0, %v1612
    %v1614 = vpop.f32.mrf.mxu0
    %v1615 = vadd.f32 0.0, %v1614
    %1616 = vmatmul.bf16.gmra.mxu0 %v1598
    %v1617 = vpop.f32.mrf.mxu0
    %v1618 = vadd.f32 0.0, %v1617
    %v1619 = vpop.f32.mrf.mxu0
    %1620 = vdwg.mxu0
    %v1621 = vmul.f32 %v1613, %v1587
    %v1622 = vmul.f32 %v1615, %v1588
    %v1623 = vmul.f32 %v1618, %v1589
    %1626 = vrot.lane.b32.xlu0 %v1514, 112
    %v1627 = vpop.permute.xlu0 %1626
    %1628 = vrot.lane.b32.xlu0 %v1515, 112
    %v1629 = vpop.permute.xlu0 %1628
    %1630 = vrot.lane.b32.xlu0 %v1516, 48
    %v1631 = vpop.permute.xlu0 %1630
    %1632 = vrot.lane.b32.xlu0 %v1517, 48
    %v1633 = vpop.permute.xlu0 %1632
    %v1635 = vsel %vm434, %v1627, 0
    %v1638 = vsel %vm434, %v1629, 0
    %v1641 = vsel %vm434, %v1631, 0
    %v1644 = vsel %vm434, %v1633, 0
    %1646 = vmatpush.bf16.xpose.msra.mxu0 0
    %1647 = vmatpush.bf16.xpose.msra.mxu0 0
    %1648 = vmatpush.bf16.xpose.msra.mxu0 0
    %1649 = vmatpush.bf16.xpose.msra.mxu0 0
    %1650 = vmatpush.bf16.xpose.msra.mxu0 0
    %1651 = vmatpush.bf16.xpose.msra.mxu0 0
    %1652 = vmatpush.bf16.xpose.msra.mxu0 %v1644
    %1653 = vmatpush.bf16.xpose.msra.mxu0 %v1641
    %1654 = vmatmul.bf16.gmra.mxu0 %v1635
    %v1655 = vpop.f32.mrf.mxu0
    %v1656 = vadd.f32 0.0, %v1655
    %v1657 = vpop.f32.mrf.mxu0
    %v1658 = vadd.f32 0.0, %v1657
    %1659 = vmatmul.bf16.gmra.mxu0 %v1638
    %v1660 = vpop.f32.mrf.mxu0
    %v1661 = vadd.f32 0.0, %v1660
    %v1662 = vpop.f32.mrf.mxu0
    %1663 = vdwg.mxu0
    %v1664 = vmul.f32 %v1656, 0.25
    %v1665 = vmul.f32 %v1658, 0.25
    %v1666 = vmul.f32 %v1661, 0.25
    %v1667 = vadd.f32 %v1664, %v128
    %v1668 = vadd.f32 %v1665, %v129
    %v1669 = vadd.f32 %v1666, %v130
    %v1670 = vsel %vm471, %v1667, -inf
    %1671 = vmax.xlane.f32.xlu0 %v1670
    %v1672 = vpop.xlane.xlu0 %1671
    %v1673 = vsel %vm471, %v1668, -inf
    %1674 = vmax.xlane.f32.xlu0 %v1673
    %v1675 = vpop.xlane.xlu0 %1674
    %v1676 = vsel %vm478, %v1669, -inf
    %1677 = vmax.xlane.f32.xlu0 %v1676
    %v1678 = vpop.xlane.xlu0 %1677
    %v1679 = vsub.f32 %v1667, %v1672
    %v1680 = vsub.f32 %v1668, %v1675
    %v1681 = vsub.f32 %v1669, %v1678
    %v1682 = vmul.f32 %v1679, 1.442695
    %v1683 = vpow.pop %v1682
    %v1684 = vmul.f32 %v1680, 1.442695
    %v1685 = vpow.pop %v1684
    %v1686 = vmul.f32 %v1681, 1.442695
    %v1687 = vpow.pop %v1686
    %v1688 = vsel %vm471, %v1683, 0.0
    %1689 = vadd.xlane.f32.xlu0 %v1688
    %v1690 = vpop.xlane.xlu0 %1689
    %v1691 = vsel %vm471, %v1685, 0.0
    %1692 = vadd.xlane.f32.xlu0 %v1691
    %v1693 = vpop.xlane.xlu0 %1692
    %v1694 = vsel %vm478, %v1687, 0.0
    %1695 = vadd.xlane.f32.xlu0 %v1694
    %v1696 = vpop.xlane.xlu0 %1695
    %v1697 = vrcp.pop %v1690
    %v1698 = vrcp.pop %v1693
    %v1699 = vrcp.pop %v1696
    %v1700 = vpack.c.bf16 %v1685, %v1683
    %v1701 = vpack.c.bf16 %v1687, %v1687
    %1704 = vrot.lane.b32.xlu0 %v1592, 112
    %v1705 = vpop.permute.xlu0 %1704
    %1706 = vrot.lane.b32.xlu0 %v1593, 112
    %v1707 = vpop.permute.xlu0 %1706
    %v1710 = vsel %vm471, %v1700, 0
    %v1713 = vsel %vm471, %v1701, 0
    %v1716 = vsel %vm124, %v1707, 0
    %1718 = vmatpush.bf16.msra.mxu0 0
    %1719 = vmatpush.bf16.msra.mxu0 0
    %1720 = vmatpush.bf16.msra.mxu0 0
    %1721 = vmatpush.bf16.msra.mxu0 0
    %1722 = vmatpush.bf16.msra.mxu0 0
    %1723 = vmatpush.bf16.msra.mxu0 0
    %1724 = vmatpush.bf16.msra.mxu0 %v1716
    %1725 = vmatpush.bf16.msra.mxu0 %v1705
    %1726 = vmatmul.bf16.gmra.mxu0 %v1710
    %v1727 = vpop.f32.mrf.mxu0
    %v1728 = vadd.f32 0.0, %v1727
    %v1729 = vpop.f32.mrf.mxu0
    %v1730 = vadd.f32 0.0, %v1729
    %1731 = vmatmul.bf16.gmra.mxu0 %v1713
    %v1732 = vpop.f32.mrf.mxu0
    %v1733 = vadd.f32 0.0, %v1732
    %v1734 = vpop.f32.mrf.mxu0
    %1735 = vdwg.mxu0
    %v1736 = vmul.f32 %v1728, %v1697
    %v1737 = vmul.f32 %v1730, %v1698
    %v1738 = vmul.f32 %v1733, %v1699
    %1739 = vrot.lane.b32.xlu0 %v1514, 96
    %v1740 = vpop.permute.xlu0 %1739
    %1741 = vrot.lane.b32.xlu0 %v1515, 96
    %v1742 = vpop.permute.xlu0 %1741
    %1743 = vrot.lane.b32.xlu0 %v1516, 32
    %v1744 = vpop.permute.xlu0 %1743
    %1745 = vrot.lane.b32.xlu0 %v1517, 32
    %v1746 = vpop.permute.xlu0 %1745
    %v1748 = vsel %vm434, %v1740, 0
    %v1751 = vsel %vm434, %v1742, 0
    %v1754 = vsel %vm434, %v1744, 0
    %v1757 = vsel %vm434, %v1746, 0
    %1759 = vmatpush.bf16.xpose.msra.mxu0 0
    %1760 = vmatpush.bf16.xpose.msra.mxu0 0
    %1761 = vmatpush.bf16.xpose.msra.mxu0 0
    %1762 = vmatpush.bf16.xpose.msra.mxu0 0
    %1763 = vmatpush.bf16.xpose.msra.mxu0 0
    %1764 = vmatpush.bf16.xpose.msra.mxu0 0
    %1765 = vmatpush.bf16.xpose.msra.mxu0 %v1757
    %1766 = vmatpush.bf16.xpose.msra.mxu0 %v1754
    %1767 = vmatmul.bf16.gmra.mxu0 %v1748
    %v1768 = vpop.f32.mrf.mxu0
    %v1769 = vadd.f32 0.0, %v1768
    %v1770 = vpop.f32.mrf.mxu0
    %v1771 = vadd.f32 0.0, %v1770
    %1772 = vmatmul.bf16.gmra.mxu0 %v1751
    %v1773 = vpop.f32.mrf.mxu0
    %v1774 = vadd.f32 0.0, %v1773
    %v1775 = vpop.f32.mrf.mxu0
    %1776 = vdwg.mxu0
    %v1777 = vmul.f32 %v1769, 0.25
    %v1778 = vmul.f32 %v1771, 0.25
    %v1779 = vmul.f32 %v1774, 0.25
    %v1780 = vadd.f32 %v1777, %v128
    %v1781 = vadd.f32 %v1778, %v129
    %v1782 = vadd.f32 %v1779, %v130
    %v1783 = vsel %vm471, %v1780, -inf
    %1784 = vmax.xlane.f32.xlu0 %v1783
    %v1785 = vpop.xlane.xlu0 %1784
    %v1786 = vsel %vm471, %v1781, -inf
    %1787 = vmax.xlane.f32.xlu0 %v1786
    %v1788 = vpop.xlane.xlu0 %1787
    %v1789 = vsel %vm478, %v1782, -inf
    %1790 = vmax.xlane.f32.xlu0 %v1789
    %v1791 = vpop.xlane.xlu0 %1790
    %v1792 = vsub.f32 %v1780, %v1785
    %v1793 = vsub.f32 %v1781, %v1788
    %v1794 = vsub.f32 %v1782, %v1791
    %v1795 = vmul.f32 %v1792, 1.442695
    %v1796 = vpow.pop %v1795
    %v1797 = vmul.f32 %v1793, 1.442695
    %v1798 = vpow.pop %v1797
    %v1799 = vmul.f32 %v1794, 1.442695
    %v1800 = vpow.pop %v1799
    %v1801 = vsel %vm471, %v1796, 0.0
    %1802 = vadd.xlane.f32.xlu0 %v1801
    %v1803 = vpop.xlane.xlu0 %1802
    %v1804 = vsel %vm471, %v1798, 0.0
    %1805 = vadd.xlane.f32.xlu0 %v1804
    %v1806 = vpop.xlane.xlu0 %1805
    %v1807 = vsel %vm478, %v1800, 0.0
    %1808 = vadd.xlane.f32.xlu0 %v1807
    %v1809 = vpop.xlane.xlu0 %1808
    %v1810 = vrcp.pop %v1803
    %v1811 = vrcp.pop %v1806
    %v1812 = vrcp.pop %v1809
    %v1813 = vpack.c.bf16 %v1798, %v1796
    %v1814 = vpack.c.bf16 %v1800, %v1800
    %1815 = vrot.lane.b32.xlu0 %v1592, 96
    %v1816 = vpop.permute.xlu0 %1815
    %1817 = vrot.lane.b32.xlu0 %v1593, 96
    %v1818 = vpop.permute.xlu0 %1817
    %v1821 = vsel %vm471, %v1813, 0
    %v1824 = vsel %vm471, %v1814, 0
    %v1827 = vsel %vm124, %v1818, 0
    %1829 = vmatpush.bf16.msra.mxu0 0
    %1830 = vmatpush.bf16.msra.mxu0 0
    %1831 = vmatpush.bf16.msra.mxu0 0
    %1832 = vmatpush.bf16.msra.mxu0 0
    %1833 = vmatpush.bf16.msra.mxu0 0
    %1834 = vmatpush.bf16.msra.mxu0 0
    %1835 = vmatpush.bf16.msra.mxu0 %v1827
    %1836 = vmatpush.bf16.msra.mxu0 %v1816
    %1837 = vmatmul.bf16.gmra.mxu0 %v1821
    %v1838 = vpop.f32.mrf.mxu0
    %v1839 = vadd.f32 0.0, %v1838
    %v1840 = vpop.f32.mrf.mxu0
    %v1841 = vadd.f32 0.0, %v1840
    %1842 = vmatmul.bf16.gmra.mxu0 %v1824
    %v1843 = vpop.f32.mrf.mxu0
    %v1844 = vadd.f32 0.0, %v1843
    %v1845 = vpop.f32.mrf.mxu0
    %1846 = vdwg.mxu0
    %v1847 = vmul.f32 %v1839, %v1810
    %v1848 = vmul.f32 %v1841, %v1811
    %v1849 = vmul.f32 %v1844, %v1812
    %1850 = vrot.lane.b32.xlu0 %v1514, 80
    %v1851 = vpop.permute.xlu0 %1850
    %1852 = vrot.lane.b32.xlu0 %v1515, 80
    %v1853 = vpop.permute.xlu0 %1852
    %1854 = vrot.lane.b32.xlu0 %v1516, 16
    %v1855 = vpop.permute.xlu0 %1854
    %1856 = vrot.lane.b32.xlu0 %v1517, 16
    %v1857 = vpop.permute.xlu0 %1856
    %v1859 = vsel %vm434, %v1851, 0
    %v1862 = vsel %vm434, %v1853, 0
    %v1865 = vsel %vm434, %v1855, 0
    %v1868 = vsel %vm434, %v1857, 0
    %1870 = vmatpush.bf16.xpose.msra.mxu0 0
    %1871 = vmatpush.bf16.xpose.msra.mxu0 0
    %1872 = vmatpush.bf16.xpose.msra.mxu0 0
    %1873 = vmatpush.bf16.xpose.msra.mxu0 0
    %1874 = vmatpush.bf16.xpose.msra.mxu0 0
    %1875 = vmatpush.bf16.xpose.msra.mxu0 0
    %1876 = vmatpush.bf16.xpose.msra.mxu0 %v1868
    %1877 = vmatpush.bf16.xpose.msra.mxu0 %v1865
    %1878 = vmatmul.bf16.gmra.mxu0 %v1859
    %v1879 = vpop.f32.mrf.mxu0
    %v1880 = vadd.f32 0.0, %v1879
    %v1881 = vpop.f32.mrf.mxu0
    %v1882 = vadd.f32 0.0, %v1881
    %1883 = vmatmul.bf16.gmra.mxu0 %v1862
    %v1884 = vpop.f32.mrf.mxu0
    %v1885 = vadd.f32 0.0, %v1884
    %v1886 = vpop.f32.mrf.mxu0
    %1887 = vdwg.mxu0
    %v1888 = vmul.f32 %v1880, 0.25
    %v1889 = vmul.f32 %v1882, 0.25
    %v1890 = vmul.f32 %v1885, 0.25
    %v1891 = vadd.f32 %v1888, %v128
    %v1892 = vadd.f32 %v1889, %v129
    %v1893 = vadd.f32 %v1890, %v130
    %v1894 = vsel %vm471, %v1891, -inf
    %1895 = vmax.xlane.f32.xlu0 %v1894
    %v1896 = vpop.xlane.xlu0 %1895
    %v1897 = vsel %vm471, %v1892, -inf
    %1898 = vmax.xlane.f32.xlu0 %v1897
    %v1899 = vpop.xlane.xlu0 %1898
    %v1900 = vsel %vm478, %v1893, -inf
    %1901 = vmax.xlane.f32.xlu0 %v1900
    %v1902 = vpop.xlane.xlu0 %1901
    %v1903 = vsub.f32 %v1891, %v1896
    %v1904 = vsub.f32 %v1892, %v1899
    %v1905 = vsub.f32 %v1893, %v1902
    %v1906 = vmul.f32 %v1903, 1.442695
    %v1907 = vpow.pop %v1906
    %v1908 = vmul.f32 %v1904, 1.442695
    %v1909 = vpow.pop %v1908
    %v1910 = vmul.f32 %v1905, 1.442695
    %v1911 = vpow.pop %v1910
    %v1912 = vsel %vm471, %v1907, 0.0
    %1913 = vadd.xlane.f32.xlu0 %v1912
    %v1914 = vpop.xlane.xlu0 %1913
    %v1915 = vsel %vm471, %v1909, 0.0
    %1916 = vadd.xlane.f32.xlu0 %v1915
    %v1917 = vpop.xlane.xlu0 %1916
    %v1918 = vsel %vm478, %v1911, 0.0
    %1919 = vadd.xlane.f32.xlu0 %v1918
    %v1920 = vpop.xlane.xlu0 %1919
    %v1921 = vrcp.pop %v1914
    %v1922 = vrcp.pop %v1917
    %v1923 = vrcp.pop %v1920
    %v1924 = vpack.c.bf16 %v1909, %v1907
    %v1925 = vpack.c.bf16 %v1911, %v1911
    %1926 = vrot.lane.b32.xlu0 %v1592, 80
    %v1927 = vpop.permute.xlu0 %1926
    %1928 = vrot.lane.b32.xlu0 %v1593, 80
    %v1929 = vpop.permute.xlu0 %1928
    %v1932 = vsel %vm471, %v1924, 0
    %v1935 = vsel %vm471, %v1925, 0
    %v1938 = vsel %vm124, %v1929, 0
    %1940 = vmatpush.bf16.msra.mxu0 0
    %1941 = vmatpush.bf16.msra.mxu0 0
    %1942 = vmatpush.bf16.msra.mxu0 0
    %1943 = vmatpush.bf16.msra.mxu0 0
    %1944 = vmatpush.bf16.msra.mxu0 0
    %1945 = vmatpush.bf16.msra.mxu0 0
    %1946 = vmatpush.bf16.msra.mxu0 %v1938
    %1947 = vmatpush.bf16.msra.mxu0 %v1927
    %1948 = vmatmul.bf16.gmra.mxu0 %v1932
    %v1949 = vpop.f32.mrf.mxu0
    %v1950 = vadd.f32 0.0, %v1949
    %v1951 = vpop.f32.mrf.mxu0
    %v1952 = vadd.f32 0.0, %v1951
    %1953 = vmatmul.bf16.gmra.mxu0 %v1935
    %v1954 = vpop.f32.mrf.mxu0
    %v1955 = vadd.f32 0.0, %v1954
    %v1956 = vpop.f32.mrf.mxu0
    %1957 = vdwg.mxu0
    %v1958 = vmul.f32 %v1950, %v1921
    %v1959 = vmul.f32 %v1952, %v1922
    %v1960 = vmul.f32 %v1955, %v1923
    %1964 = vrot.lane.b32.xlu0 %v1736, 16
    %v1965 = vpop.permute.xlu0 %1964
    %1966 = vrot.lane.b32.xlu0 %v1737, 16
    %v1967 = vpop.permute.xlu0 %1966
    %1968 = vrot.lane.b32.xlu0 %v1738, 16
    %v1969 = vpop.permute.xlu0 %1968
    %1976 = vrot.lane.b32.xlu0 %v1847, 32
    %v1977 = vpop.permute.xlu0 %1976
    %1978 = vrot.lane.b32.xlu0 %v1848, 32
    %v1979 = vpop.permute.xlu0 %1978
    %1980 = vrot.lane.b32.xlu0 %v1849, 32
    %v1981 = vpop.permute.xlu0 %1980
    %1988 = vrot.lane.b32.xlu0 %v1958, 48
    %v1989 = vpop.permute.xlu0 %1988
    %1990 = vrot.lane.b32.xlu0 %v1959, 48
    %v1991 = vpop.permute.xlu0 %1990
    %1992 = vrot.lane.b32.xlu0 %v1960, 48
    %v1993 = vpop.permute.xlu0 %1992
    %v1997 = vsel %vm434, %v1621, %v1965
    %v1998 = vsel %vm434, %v1622, %v1967
    %v1999 = vsel %vm434, %v1623, %v1969
    %v2000 = vsel %vm92, %v1997, %v1977
    %v2001 = vsel %vm92, %v1998, %v1979
    %v2002 = vsel %vm92, %v1999, %v1981
    %v2003 = vsel %vm916, %v2000, %v1989
    %v2004 = vsel %vm916, %v2001, %v1991
    %v2005 = vsel %vm916, %v2002, %v1993
    %s2006 = scalar_lea.vmem %s13, 32
    %v2007 = vld [vmem:[%s2006] sm:$0xf]
    %v2008 = vld [vmem:[%s2006 + $0x4] sm:$0xf]
    %v2009 = vld [vmem:[%s2006 + $0x8] sm:$0xf]
    %v2010 = vld [vmem:[%s2006 + $0xc] sm:$0xf]
    %v2011 = vld [vmem:[%s2006 + $0x10] sm:$0xf]
    %v2012 = vld [vmem:[%s2006 + $0x14] sm:$0xf]
    %v2013 = vld [vmem:[%s2006 + $0x18] sm:$0xf]
    %v2014 = vld [vmem:[%s2006 + $0x1c] sm:$0xf]
    %v2015 = vpack.c.bf16 %v2004, %v2003
    %v2016 = vpack.c.bf16 %v2005, %v2005
    %v2025 = vunpack.c.l.b16 %v2007
    %v2026 = vunpack.c.l.b16 %v2008
    %v2027 = vunpack.c.l.b16 %v2009
    %v2028 = vunpack.c.l.b16 %v2010
    %v2029 = vunpack.c.l.b16 %v2011
    %v2030 = vunpack.c.l.b16 %v2012
    %v2031 = vunpack.c.l.b16 %v2013
    %v2032 = vunpack.c.l.b16 %v2014
    %v2033 = vpack.c.b16 %v2026, %v2025
    %v2034 = vpack.c.b16 %v2028, %v2027
    %v2035 = vpack.c.b16 %v2030, %v2029
    %v2036 = vpack.c.b16 %v2032, %v2031
    %v2042 = vsel %vm149, %v2015, 0
    %v2045 = vsel %vm149, %v2016, 0
    %2047 = vmatpush.bf16.msra.mxu0 0
    %2048 = vmatpush.bf16.msra.mxu0 0
    %2049 = vmatpush.bf16.msra.mxu0 0
    %2050 = vmatpush.bf16.msra.mxu0 0
    %2051 = vmatpush.bf16.msra.mxu0 %v2036
    %2052 = vmatpush.bf16.msra.mxu0 %v2035
    %2053 = vmatpush.bf16.msra.mxu0 %v2034
    %2054 = vmatpush.bf16.msra.mxu0 %v2033
    %2055 = vmatmul.bf16.gmra.mxu0 %v2042
    %v2056 = vpop.f32.mrf.mxu0
    %v2057 = vadd.f32 0.0, %v2056
    %v2058 = vpop.f32.mrf.mxu0
    %v2059 = vadd.f32 0.0, %v2058
    %2060 = vmatmul.bf16.gmra.mxu0 %v2045
    %v2061 = vpop.f32.mrf.mxu0
    %v2062 = vadd.f32 0.0, %v2061
    %v2063 = vpop.f32.mrf.mxu0
    %2064 = vdwg.mxu0
    %v2065 = vadd.f32 %v1276, %v2057
    %v2066 = vadd.f32 %v1277, %v2059
    %v2067 = vadd.f32 %v1278, %v2062
    %v2068 = vld [vmem:[%s11 + $0x1] sm:$0x1]
    %v2069 = vmul.f32 %v2065, %v2065
    %v2070 = vmul.f32 %v2066, %v2066
    %v2071 = vmul.f32 %v2067, %v2067
    %v2072 = vsel %vm149, %v2069, 0.0
    %2073 = vadd.xlane.f32.xlu0 %v2072
    %v2074 = vpop.xlane.xlu0 %2073
    %v2075 = vsel %vm149, %v2070, 0.0
    %2076 = vadd.xlane.f32.xlu0 %v2075
    %v2077 = vpop.xlane.xlu0 %2076
    %v2078 = vsel %vm156, %v2071, 0.0
    %2079 = vadd.xlane.f32.xlu0 %v2078
    %v2080 = vpop.xlane.xlu0 %2079
    %v2081 = vmul.f32 %v2074, %v166
    %v2082 = vmul.f32 %v2077, %v166
    %v2083 = vmul.f32 %v2080, %v166
    %v2084 = vadd.f32 %v2081, 1e-06
    %v2085 = vadd.f32 %v2082, 1e-06
    %v2086 = vadd.f32 %v2083, 1e-06
    %v2087 = vrsqrt.pop %v2084
    %v2088 = vmul.f32 %v2087, %v2084
    %v2089 = vmul.f32 %v2088, %v2087
    %v2090 = vmul.f32 0.5, %v2089
    %v2091 = vsub.f32 1.5, %v2090
    %v2092 = vmul.f32 %v2087, %v2091
    %vm2093 = vweird.f32 %v2084
    %vm2094 = vweird.f32 %v2087
    %vm2095 = vmor %vm2093, %vm2094
    %v2096 = vsel %vm2095, %v2087, %v2092
    %v2097 = vrsqrt.pop %v2085
    %v2098 = vmul.f32 %v2097, %v2085
    %v2099 = vmul.f32 %v2098, %v2097
    %v2100 = vmul.f32 0.5, %v2099
    %v2101 = vsub.f32 1.5, %v2100
    %v2102 = vmul.f32 %v2097, %v2101
    %vm2103 = vweird.f32 %v2085
    %vm2104 = vweird.f32 %v2097
    %vm2105 = vmor %vm2103, %vm2104
    %v2106 = vsel %vm2105, %v2097, %v2102
    %v2107 = vrsqrt.pop %v2086
    %v2108 = vmul.f32 %v2107, %v2086
    %v2109 = vmul.f32 %v2108, %v2107
    %v2110 = vmul.f32 0.5, %v2109
    %v2111 = vsub.f32 1.5, %v2110
    %v2112 = vmul.f32 %v2107, %v2111
    %vm2113 = vweird.f32 %v2086
    %vm2114 = vweird.f32 %v2107
    %vm2115 = vmor %vm2113, %vm2114
    %v2116 = vsel %vm2115, %v2107, %v2112
    %v2117 = vmul.f32 %v2065, %v2096
    %v2118 = vmul.f32 %v2066, %v2106
    %v2119 = vmul.f32 %v2067, %v2116
    %v2120 = vperm.slane %v2068, 0
    %v2121 = vmul.f32 %v2117, %v2120
    %v2122 = vmul.f32 %v2118, %v2120
    %v2123 = vmul.f32 %v2119, %v2120
    %s2124 = scalar_lea.vmem %s14, 64
    %v2125 = vld [vmem:[%s2124] sm:$0xff]
    %v2126 = vld [vmem:[%s2124 + $0x8] sm:$0xff]
    %v2127 = vld [vmem:[%s2124 + $0x10] sm:$0xff]
    %v2128 = vld [vmem:[%s2124 + $0x18] sm:$0xff]
    %v2129 = vld [vmem:[%s2124 + $0x20] sm:$0xff]
    %v2130 = vld [vmem:[%s2124 + $0x28] sm:$0xff]
    %v2131 = vld [vmem:[%s2124 + $0x30] sm:$0xff]
    %v2132 = vld [vmem:[%s2124 + $0x38] sm:$0xff]
    %v2133 = vpack.c.bf16 %v2122, %v2121
    %v2134 = vpack.c.bf16 %v2123, %v2123
    %v2143 = vunpack.c.l.b16 %v2125
    %v2144 = vunpack.c.h.b16 %v2125
    %v2145 = vunpack.c.l.b16 %v2126
    %v2146 = vunpack.c.h.b16 %v2126
    %v2147 = vunpack.c.l.b16 %v2127
    %v2148 = vunpack.c.h.b16 %v2127
    %v2149 = vunpack.c.l.b16 %v2128
    %v2150 = vunpack.c.h.b16 %v2128
    %v2151 = vunpack.c.l.b16 %v2129
    %v2152 = vunpack.c.h.b16 %v2129
    %v2153 = vunpack.c.l.b16 %v2130
    %v2154 = vunpack.c.h.b16 %v2130
    %v2155 = vunpack.c.l.b16 %v2131
    %v2156 = vunpack.c.h.b16 %v2131
    %v2157 = vunpack.c.l.b16 %v2132
    %v2158 = vunpack.c.h.b16 %v2132
    %v2159 = vpack.c.b16 %v2145, %v2143
    %v2160 = vpack.c.b16 %v2146, %v2144
    %v2161 = vpack.c.b16 %v2149, %v2147
    %v2162 = vpack.c.b16 %v2150, %v2148
    %v2163 = vpack.c.b16 %v2153, %v2151
    %v2164 = vpack.c.b16 %v2154, %v2152
    %v2165 = vpack.c.b16 %v2157, %v2155
    %v2166 = vpack.c.b16 %v2158, %v2156
    %v2176 = vsel %vm149, %v2133, 0
    %v2179 = vsel %vm149, %v2134, 0
    %2181 = vmatpush.bf16.msra.mxu0 0
    %2182 = vmatpush.bf16.msra.mxu0 0
    %2183 = vmatpush.bf16.msra.mxu0 0
    %2184 = vmatpush.bf16.msra.mxu0 0
    %2185 = vmatpush.bf16.msra.mxu0 %v2165
    %2186 = vmatpush.bf16.msra.mxu0 %v2163
    %2187 = vmatpush.bf16.msra.mxu0 %v2161
    %2188 = vmatpush.bf16.msra.mxu0 %v2159
    %2189 = vmatmul.bf16.gmra.mxu0 %v2176
    %v2190 = vpop.f32.mrf.mxu0
    %v2191 = vadd.f32 0.0, %v2190
    %v2192 = vpop.f32.mrf.mxu0
    %v2193 = vadd.f32 0.0, %v2192
    %2194 = vmatmul.bf16.gmra.mxu0 %v2179
    %v2195 = vpop.f32.mrf.mxu0
    %v2196 = vadd.f32 0.0, %v2195
    %v2197 = vpop.f32.mrf.mxu0
    %2198 = vdwg.mxu0
    %2199 = vmatpush.bf16.msra.mxu0 0
    %2200 = vmatpush.bf16.msra.mxu0 0
    %2201 = vmatpush.bf16.msra.mxu0 0
    %2202 = vmatpush.bf16.msra.mxu0 0
    %2203 = vmatpush.bf16.msra.mxu0 %v2166
    %2204 = vmatpush.bf16.msra.mxu0 %v2164
    %2205 = vmatpush.bf16.msra.mxu0 %v2162
    %2206 = vmatpush.bf16.msra.mxu0 %v2160
    %2207 = vmatmul.bf16.gmra.mxu0 %v2176
    %v2208 = vpop.f32.mrf.mxu0
    %v2209 = vadd.f32 0.0, %v2208
    %v2210 = vpop.f32.mrf.mxu0
    %v2211 = vadd.f32 0.0, %v2210
    %2212 = vmatmul.bf16.gmra.mxu0 %v2179
    %v2213 = vpop.f32.mrf.mxu0
    %v2214 = vadd.f32 0.0, %v2213
    %v2215 = vpop.f32.mrf.mxu0
    %2216 = vdwg.mxu0
    %v2217 = vxor.u32 %v2191, 2147483648
    %v2218 = vxor.u32 %v2193, 2147483648
    %v2219 = vxor.u32 %v2196, 2147483648
    %v2220 = vmul.f32 %v2217, 1.442695
    %v2221 = vpow.pop %v2220
    %v2222 = vmul.f32 %v2218, 1.442695
    %v2223 = vpow.pop %v2222
    %v2224 = vmul.f32 %v2219, 1.442695
    %v2225 = vpow.pop %v2224
    %v2226 = vadd.f32 %v2221, 1.0
    %v2227 = vadd.f32 %v2223, 1.0
    %v2228 = vadd.f32 %v2225, 1.0
    %v2229 = vrcp.pop %v2226
    %v2230 = vmul.f32 %v2226, %v2229
    %v2231 = vsub.f32 1.0, %v2230
    %v2232 = vmul.f32 %v2229, %v2231
    %v2233 = vadd.f32 %v2229, %v2232
    %vm2234 = vweird.f32 %v2226
    %vm2235 = vweird.f32 %v2229
    %vm2236 = vmor %vm2234, %vm2235
    %v2237 = vsel %vm2236, %v2229, %v2233
    %v2238 = vand.u32 2147483647, %v2226
    %vm2239 = vcmp.eq.f32.partialorder %v2238, 8.507059e+37
    %v2240 = vand.u32 %v2226, 2147483648
    %v2241 = vor.u32 1.1754944e-38, %v2240
    %v2242 = vsel %vm2239, %v2241, %v2237
    %v2243 = vmul.f32 1.0, %v2242
    %v2244 = vrcp.pop %v2227
    %v2245 = vmul.f32 %v2227, %v2244
    %v2246 = vsub.f32 1.0, %v2245
    %v2247 = vmul.f32 %v2244, %v2246
    %v2248 = vadd.f32 %v2244, %v2247
    %vm2249 = vweird.f32 %v2227
    %vm2250 = vweird.f32 %v2244
    %vm2251 = vmor %vm2249, %vm2250
    %v2252 = vsel %vm2251, %v2244, %v2248
    %v2253 = vand.u32 2147483647, %v2227
    %vm2254 = vcmp.eq.f32.partialorder %v2253, 8.507059e+37
    %v2255 = vand.u32 %v2227, 2147483648
    %v2256 = vor.u32 1.1754944e-38, %v2255
    %v2257 = vsel %vm2254, %v2256, %v2252
    %v2258 = vmul.f32 1.0, %v2257
    %v2259 = vrcp.pop %v2228
    %v2260 = vmul.f32 %v2228, %v2259
    %v2261 = vsub.f32 1.0, %v2260
    %v2262 = vmul.f32 %v2259, %v2261
    %v2263 = vadd.f32 %v2259, %v2262
    %vm2264 = vweird.f32 %v2228
    %vm2265 = vweird.f32 %v2259
    %vm2266 = vmor %vm2264, %vm2265
    %v2267 = vsel %vm2266, %v2259, %v2263
    %v2268 = vand.u32 2147483647, %v2228
    %vm2269 = vcmp.eq.f32.partialorder %v2268, 8.507059e+37
    %v2270 = vand.u32 %v2228, 2147483648
    %v2271 = vor.u32 1.1754944e-38, %v2270
    %v2272 = vsel %vm2269, %v2271, %v2267
    %v2273 = vmul.f32 1.0, %v2272
    %v2274 = vmul.f32 %v2191, %v2243
    %v2275 = vmul.f32 %v2193, %v2258
    %v2276 = vmul.f32 %v2196, %v2273
    %v2277 = vmul.f32 %v2274, %v2209
    %v2278 = vmul.f32 %v2275, %v2211
    %v2279 = vmul.f32 %v2276, %v2214
    %s2280 = scalar_lea.vmem %s15, 64
    %v2281 = vld [vmem:[%s2280] sm:$0xf]
    %v2282 = vld [vmem:[%s2280 + $0x4] sm:$0xf]
    %v2283 = vld [vmem:[%s2280 + $0x8] sm:$0xf]
    %v2284 = vld [vmem:[%s2280 + $0xc] sm:$0xf]
    %v2285 = vld [vmem:[%s2280 + $0x10] sm:$0xf]
    %v2286 = vld [vmem:[%s2280 + $0x14] sm:$0xf]
    %v2287 = vld [vmem:[%s2280 + $0x18] sm:$0xf]
    %v2288 = vld [vmem:[%s2280 + $0x1c] sm:$0xf]
    %v2289 = vld [vmem:[%s2280 + $0x20] sm:$0xf]
    %v2290 = vld [vmem:[%s2280 + $0x24] sm:$0xf]
    %v2291 = vld [vmem:[%s2280 + $0x28] sm:$0xf]
    %v2292 = vld [vmem:[%s2280 + $0x2c] sm:$0xf]
    %v2293 = vld [vmem:[%s2280 + $0x30] sm:$0xf]
    %v2294 = vld [vmem:[%s2280 + $0x34] sm:$0xf]
    %v2295 = vld [vmem:[%s2280 + $0x38] sm:$0xf]
    %v2296 = vld [vmem:[%s2280 + $0x3c] sm:$0xf]
    %v2297 = vpack.c.bf16 %v2278, %v2277
    %v2298 = vpack.c.bf16 %v2279, %v2279
    %v2315 = vunpack.c.l.b16 %v2281
    %v2316 = vunpack.c.l.b16 %v2282
    %v2317 = vunpack.c.l.b16 %v2283
    %v2318 = vunpack.c.l.b16 %v2284
    %v2319 = vunpack.c.l.b16 %v2285
    %v2320 = vunpack.c.l.b16 %v2286
    %v2321 = vunpack.c.l.b16 %v2287
    %v2322 = vunpack.c.l.b16 %v2288
    %v2323 = vunpack.c.l.b16 %v2289
    %v2324 = vunpack.c.l.b16 %v2290
    %v2325 = vunpack.c.l.b16 %v2291
    %v2326 = vunpack.c.l.b16 %v2292
    %v2327 = vunpack.c.l.b16 %v2293
    %v2328 = vunpack.c.l.b16 %v2294
    %v2329 = vunpack.c.l.b16 %v2295
    %v2330 = vunpack.c.l.b16 %v2296
    %v2331 = vpack.c.b16 %v2316, %v2315
    %v2332 = vpack.c.b16 %v2318, %v2317
    %v2333 = vpack.c.b16 %v2320, %v2319
    %v2334 = vpack.c.b16 %v2322, %v2321
    %v2335 = vpack.c.b16 %v2324, %v2323
    %v2336 = vpack.c.b16 %v2326, %v2325
    %v2337 = vpack.c.b16 %v2328, %v2327
    %v2338 = vpack.c.b16 %v2330, %v2329
    %2347 = vmatpush.bf16.msra.mxu0 %v2338
    %2348 = vmatpush.bf16.msra.mxu0 %v2337
    %2349 = vmatpush.bf16.msra.mxu0 %v2336
    %2350 = vmatpush.bf16.msra.mxu0 %v2335
    %2351 = vmatpush.bf16.msra.mxu0 %v2334
    %2352 = vmatpush.bf16.msra.mxu0 %v2333
    %2353 = vmatpush.bf16.msra.mxu0 %v2332
    %2354 = vmatpush.bf16.msra.mxu0 %v2331
    %2355 = vmatmul.bf16.gmra.mxu0 %v2297
    %v2356 = vpop.f32.mrf.mxu0
    %v2357 = vpop.f32.mrf.mxu0
    %v2358 = vadd.f32 0.0, %v2357
    %2359 = vmatmul.bf16.gmra.mxu0 %v2298
    %v2360 = vpop.f32.mrf.mxu0
    %v2361 = vadd.f32 0.0, %v2360
    %v2362 = vpop.f32.mrf.mxu0
    %2363 = vdwg.mxu0
    %v2364 = vadd.f32 %v2066, %v2358
    %v2365 = vadd.f32 %v2067, %v2361
    %v2366 = vsel %vm124, %v2364, %v2365
    %v2367 = vld [vmem:[%s16] sm:$0x1]
    %v2368 = vmul.f32 %v2366, %v2366
    %v2369 = vsel %vm156, %v2368, 0.0
    %2370 = vadd.xlane.f32.xlu0 %v2369
    %v2371 = vpop.xlane.xlu0 %2370
    %v2372 = vmul.f32 %v2371, %v166
    %v2373 = vadd.f32 %v2372, 1e-06
    %v2374 = vrsqrt.pop %v2373
    %v2375 = vmul.f32 %v2374, %v2373
    %v2376 = vmul.f32 %v2375, %v2374
    %v2377 = vmul.f32 0.5, %v2376
    %v2378 = vsub.f32 1.5, %v2377
    %v2379 = vmul.f32 %v2374, %v2378
    %vm2380 = vweird.f32 %v2373
    %vm2381 = vweird.f32 %v2374
    %vm2382 = vmor %vm2380, %vm2381
    %v2383 = vsel %vm2382, %v2374, %v2379
    %v2384 = vmul.f32 %v2366, %v2383
    %v2386 = vperm.slane %v2367, 0
    %v2388 = vmul.f32 %v2384, %v2386
    %v2389 = vld [vmem:[%s17] sm:$0xf]
    %v2390 = vld [vmem:[%s17 + $0x4] sm:$0xf]
    %v2391 = vld [vmem:[%s17 + $0x8] sm:$0xf]
    %v2392 = vld [vmem:[%s17 + $0xc] sm:$0xf]
    %v2393 = vld [vmem:[%s17 + $0x10] sm:$0xf]
    %v2394 = vld [vmem:[%s17 + $0x14] sm:$0xf]
    %v2395 = vld [vmem:[%s17 + $0x18] sm:$0xf]
    %v2396 = vld [vmem:[%s17 + $0x1c] sm:$0xf]
    %v2397 = vpack.c.bf16 %v2388, %v2388
    %v2406 = vunpack.c.l.b16 %v2389
    %v2407 = vunpack.c.l.b16 %v2390
    %v2408 = vunpack.c.l.b16 %v2391
    %v2409 = vunpack.c.l.b16 %v2392
    %v2410 = vunpack.c.l.b16 %v2393
    %v2411 = vunpack.c.l.b16 %v2394
    %v2412 = vunpack.c.l.b16 %v2395
    %v2413 = vunpack.c.l.b16 %v2396
    %v2414 = vpack.c.b16 %v2407, %v2406
    %v2415 = vpack.c.b16 %v2409, %v2408
    %v2416 = vpack.c.b16 %v2411, %v2410
    %v2417 = vpack.c.b16 %v2413, %v2412
    %v2423 = vsel %vm149, %v2397, 0
    %2425 = vmatpush.bf16.msra.mxu0 0
    %2426 = vmatpush.bf16.msra.mxu0 0
    %2427 = vmatpush.bf16.msra.mxu0 0
    %2428 = vmatpush.bf16.msra.mxu0 0
    %2429 = vmatpush.bf16.msra.mxu0 %v2417
    %2430 = vmatpush.bf16.msra.mxu0 %v2416
    %2431 = vmatpush.bf16.msra.mxu0 %v2415
    %2432 = vmatpush.bf16.msra.mxu0 %v2414
    %2433 = vmatmul.bf16.gmra.mxu0 %v2423
    %v2434 = vpop.f32.mrf.mxu0
    %v2435 = vadd.f32 0.0, %v2434
    %v2436 = vpop.f32.mrf.mxu0
    %2437 = vdwg.mxu0
    %v2438 = vld [vmem:[%s18] sm:$0xf]
    %v2439 = vld [vmem:[%s18 + $0x4] sm:$0xf]
    %v2440 = vld [vmem:[%s18 + $0x8] sm:$0xf]
    %v2441 = vld [vmem:[%s18 + $0xc] sm:$0xf]
    %v2442 = vld [vmem:[%s18 + $0x10] sm:$0xf]
    %v2443 = vld [vmem:[%s18 + $0x14] sm:$0xf]
    %v2444 = vld [vmem:[%s18 + $0x18] sm:$0xf]
    %v2445 = vld [vmem:[%s18 + $0x1c] sm:$0xf]
    %v2446 = vpack.c.bf16 %v2435, %v2435
    %v2455 = vunpack.c.l.b16 %v2438
    %v2456 = vunpack.c.l.b16 %v2439
    %v2457 = vunpack.c.l.b16 %v2440
    %v2458 = vunpack.c.l.b16 %v2441
    %v2459 = vunpack.c.l.b16 %v2442
    %v2460 = vunpack.c.l.b16 %v2443
    %v2461 = vunpack.c.l.b16 %v2444
    %v2462 = vunpack.c.l.b16 %v2445
    %v2463 = vpack.c.b16 %v2456, %v2455
    %v2464 = vpack.c.b16 %v2458, %v2457
    %v2465 = vpack.c.b16 %v2460, %v2459
    %v2466 = vpack.c.b16 %v2462, %v2461
    %v2468 = vsel %vm92, %v2446, 0
    %v2471 = vsel %vm92, %v2463, 0
    %v2474 = vsel %vm92, %v2464, 0
    %v2477 = vsel %vm92, %v2465, 0
    %v2480 = vsel %vm92, %v2466, 0
    %2482 = vmatpush.bf16.xpose.msra.mxu0 0
    %2483 = vmatpush.bf16.xpose.msra.mxu0 0
    %2484 = vmatpush.bf16.xpose.msra.mxu0 0
    %2485 = vmatpush.bf16.xpose.msra.mxu0 0
    %2486 = vmatpush.bf16.xpose.msra.mxu0 %v2480
    %2487 = vmatpush.bf16.xpose.msra.mxu0 %v2477
    %2488 = vmatpush.bf16.xpose.msra.mxu0 %v2474
    %2489 = vmatpush.bf16.xpose.msra.mxu0 %v2471
    %2490 = vmatmul.bf16.gmra.mxu0 %v2468
    %v2491 = vpop.f32.mrf.mxu0
    %v2492 = vadd.f32 0.0, %v2491
    %v2493 = vpop.f32.mrf.mxu0
    %2494 = vdwg.mxu0
    %v2495 = vsel %vm156, %v2492, -inf
    %2496 = vmax.xlane.f32.xlu0 %v2495
    %v2497 = vpop.xlane.xlu0 %2496
    %v2498 = vsub.f32 %v2492, %v2497
    %v2499 = vmul.f32 %v2498, 1.442695
    %v2500 = vpow.pop %v2499
    %v2501 = vsel %vm156, %v2500, 0.0
    %2502 = vadd.xlane.f32.xlu0 %v2501
    %v2503 = vpop.xlane.xlu0 %2502
    %v2504 = vlog2.pop %v2503
    %v2505 = vmul.f32 %v2504, 0.6931472
    %v2506 = vadd.f32 %v2505, %v2497
    %v2507 = vlaneseq
    %v2508 = vshrl.u32 %v2507, 7
    %v2509 = vlaneseq
    %v2510 = vand.u32 %v2509, 127
    %vm2511 = vcmp.eq.s32.totalorder %v2508, 0
    %s2512 = sld [smem:[#allocation3]]
    %v2513 = vstv %s2512
    %vm2514 = vcmp.eq.s32.totalorder %v2510, %v2513
    %vm2515 = vmand %vm2511, %vm2514
    %v2516 = vsel %vm2515, 1.0, 0.0
    %v2517 = vadd.f32 %v2516, 0.0
    %vm2518 = vcmp.eq.s32.totalorder %v2508, 1
    %s2519 = sld [smem:[#allocation3 + $0x1]]
    %v2520 = vstv %s2519
    %vm2521 = vcmp.eq.s32.totalorder %v2510, %v2520
    %vm2522 = vmand %vm2518, %vm2521
    %v2523 = vsel %vm2522, 1.0, 0.0
    %v2524 = vadd.f32 %v2517, %v2523
    %v2525 = vmul.f32 %v2492, %v2524
    %v2526 = vsel %vm156, %v2525, 0.0
    %2527 = vadd.xlane.f32.xlu0 %v2526
    %v2528 = vpop.xlane.xlu0 %2527
    %v2529 = vsub.f32 %v2506, %v2528
    %vm2530 = vcmask 1041408
    %v2531 = vsel %vm2530, %v2529, 0.0
    %v2532 = vrot.slane %v2531, 4
    %v2533 = vadd.f32 %v2531, %v2532
    %v2534 = vrot.slane %v2533, 2
    %v2535 = vadd.f32 %v2533, %v2534
    %v2536 = vrot.slane %v2535, 1
    %v2537 = vadd.f32 %v2535, %v2536
    %v2538 = vmul.f32 %v2537, 0.5
    %vm2539 = vcmask 0
    %2540 = vst.msk [vmem:[#allocation4] sm:$0x1] %vm2539, %v2538
    // Predicated region
    $region74: #{_forward_data_type0.1} parent=1 // pred_check
      _
    $region75: #{_forward_data_type0.1} parent=1 // pred_check_branch
      %2542 = sbr.rel (0) target = $region77
    $region76: #{_forward_data_type0.1} parent=1 // pred_region
      %2544 = vsyncadd [#allocation5], 0
      %s2546 = sshll.u32 [#allocation4], 4
      %s2547 = int_to_ptr.vmem [resolvable:$true] %s2546
      %s2548 = sshll.u32 %s19, 4
      %s2549 = int_to_ptr.hbm [resolvable:$true] %s2548
      %2551 = dma.vmem_to_hbm [thread:$0]  %s2547, 16, %s2549, [#allocation5]
    $region77: #{_forward_data_type0.1} parent=1 // pred_fallthru
      _
    // Predicated region
    $region78: #{_forward_data_type0.1} parent=1 // pred_check
      _
    $region79: #{_forward_data_type0.1} parent=1 // pred_check_branch
      %2553 = sbr.rel (0) target = $region81
    $region80: #{_forward_data_type0.1} parent=1 // pred_region
      %2555 = dma.done [#allocation5], 16
    $region81: #{_forward_data_type0.1} parent=1 // pred_fallthru
      _
    %2556 = vsyncpa [#allocation5], 1

</llo_original>
